<compile_context>
chip_gen: v5e
topology: v5e:2x2
jax: 0.10.0
libtpu: 0.0.40
codegen_flags: <defaults>
</compile_context>

<pallas_src>
import functools

import jax
import jax.numpy as jnp
from jax.experimental import pallas as pl
from jax.experimental.pallas import tpu as pltpu

BN_EPS = 1e-5
CDTYPE = jnp.bfloat16            # storage dtype for activations & weights

_VMEM_TARGET = 34 << 20          # per-step working-set target for tile choice
_CONV_VMEM_REQ = 50 << 20        # vmem_limit request (v7x-safe)
_MM_VMEM_REQ = 32 << 20


def _apply_act(y, act, slope):
    if act == "relu":
        return jnp.maximum(y, 0.0)
    if act == "leaky":
        return jnp.where(y >= 0.0, y, slope * y)
    if act == "sigmoid":
        return jax.nn.sigmoid(y)
    if act == "tanh":
        return jnp.tanh(y)
    return y


# ----------------------------------------------------------------------------
# Kernel A: halo-blocked 3x3 conv + folded BN + activation (+ fused 1x1 head)
#   input  : (nsrc, N, nH, th+2, W+2, C)   per-source zero-halo'd row blocks
#   weights: (nsrc, 3, 3*C, Cout)          K axis is (dx, ci)
#   grid   : (N, nH, nsrc)                 source (reduction) innermost
# ----------------------------------------------------------------------------
def _conv3x3_kernel(a_ref, w_ref, s_ref, b_ref, *rest, th, w_out, act, slope,
                    has_head, head_act):
    if has_head:
        wo_ref, bo_ref, o_ref, acc_ref = rest
    else:
        o_ref, acc_ref = rest

    k = pl.program_id(2)

    @pl.when(k == 0)
    def _():
        acc_ref[...] = jnp.zeros_like(acc_ref)

    a = a_ref[...]                                   # (th+2, W+2, c) bf16
    c = a.shape[-1]
    for dy in range(3):                              # dy: free major-dim slice
        # dx taps folded into the contraction: K = 3*c
        lhs = jnp.concatenate(
            [a[dy:dy + th, dx:dx + w_out, :] for dx in range(3)], axis=-1
        ).reshape(th * w_out, 3 * c)
        acc_ref[...] += jnp.dot(lhs, w_ref[dy],
                                preferred_element_type=jnp.float32)

    @pl.when(k == pl.num_programs(2) - 1)
    def _():
        y = acc_ref[...] * s_ref[...] + b_ref[...]
        y = _apply_act(y, act, slope)
        if has_head:                                 # fused 1x1 OutConv (f32)
            y = jnp.dot(y, wo_ref[...],
                        preferred_element_type=jnp.float32) + bo_ref[...]
            y = _apply_act(y, head_act, 0.0)
        o_ref[...] = y.reshape(o_ref.shape).astype(o_ref.dtype)


def _conv_vmem_est(th, w, c, cout, n_out, out_bytes):
    a_blk = (th + 2) * (w + 2) * c * 2
    w_blk = 3 * 3 * c * cout * 2
    o_blk = th * w * n_out * out_bytes
    acc = th * w * cout * 4
    lhs = th * w * 3 * c * 2
    # double-buffered blocks + accumulator + loaded tile + up to two live
    # K=3c lhs temporaries + fixed headroom for Mosaic internals.
    return int(2 * (a_blk + w_blk + o_blk) + acc + a_blk + 2 * lhs + (4 << 20))


def _pick_th(h, w, c, cout, n_out, out_bytes, nsrc, w_blk_bytes):
    th = h
    # Prefer >=2 row blocks (pipelining + v7x megacore) unless that would
    # re-stream large per-source weights on a multi-source layer.
    if h >= 16 and (nsrc == 1 or h >= 64 or w_blk_bytes <= (1 << 20)):
        th = h // 2
    while th > 8 and _conv_vmem_est(th, w, c, cout, n_out, out_bytes) > _VMEM_TARGET:
        th //= 2
    return th


def _halo_blocks(x, th):
    """(N,H,W,C) -> (N, H//th, th+2, W+2, C) with a 1px zero halo per block."""
    n, h, w, c = x.shape
    xp = jnp.pad(x, ((0, 0), (1, 1), (1, 1), (0, 0)))
    nh = h // th
    if nh == 1:
        return xp[:, None]
    return jnp.stack([xp[:, i * th:i * th + th + 2] for i in range(nh)], axis=1)


def conv3x3_fused(xs, wk, scale, bias, act="relu", slope=0.0,
                  head_w=None, head_b=None, head_act="none"):
    """Fused 3x3 conv.  xs: list of equal-shape NHWC inputs (logically
    channel-concatenated); wk: (len(xs), 3, 3*C, Cout) interleaved taps."""
    n, h, w, c = xs[0].shape
    nsrc = len(xs)
    cout = wk.shape[-1]
    assert wk.shape == (nsrc, 3, 3 * c, cout), (wk.shape, nsrc, c, cout)
    for x in xs:
        assert x.shape == (n, h, w, c)

    has_head = head_w is not None
    n_out = head_w.shape[1] if has_head else cout
    out_dtype = jnp.float32 if has_head else CDTYPE
    out_bytes = 4 if out_dtype == jnp.float32 else 2

    w_blk_bytes = 3 * 3 * c * cout * 2
    th = _pick_th(h, w, c, cout, n_out, out_bytes, nsrc, w_blk_bytes)
    nh = h // th

    # One ~1x-size halo'd copy per source (single fused XLA pass); the kernel
    # takes all 9 taps from it in VMEM -> no dx-slab HBM amplification.
    a = jnp.stack([_halo_blocks(x.astype(CDTYPE), th) for x in xs], axis=0)
    # (nsrc, N, nH, th+2, W+2, C)

    s2 = scale.reshape(1, cout).astype(jnp.float32)
    b2 = bias.reshape(1, cout).astype(jnp.float32)

    in_specs = [
        pl.BlockSpec((None, None, None, th + 2, w + 2, c),
                     lambda b, i, k: (k, b, i, 0, 0, 0)),
        pl.BlockSpec((None, 3, 3 * c, cout), lambda b, i, k: (k, 0, 0, 0)),
        pl.BlockSpec((1, cout), lambda b, i, k: (0, 0)),
        pl.BlockSpec((1, cout), lambda b, i, k: (0, 0)),
    ]
    args = [a, wk.astype(CDTYPE), s2, b2]
    if has_head:
        in_specs += [pl.BlockSpec((cout, n_out), lambda b, i, k: (0, 0)),
                     pl.BlockSpec((1, n_out), lambda b, i, k: (0, 0))]
        args += [head_w.astype(jnp.float32),
                 head_b.reshape(1, n_out).astype(jnp.float32)]

    out_specs = pl.BlockSpec((None, th, w, n_out), lambda b, i, k: (b, i, 0, 0))

    kern = functools.partial(_conv3x3_kernel, th=th, w_out=w, act=act,
                             slope=slope, has_head=has_head, head_act=head_act)
    return pl.pallas_call(
        kern,
        out_shape=jax.ShapeDtypeStruct((n, h, w, n_out), out_dtype),
        grid_spec=pltpu.PrefetchScalarGridSpec(
            num_scalar_prefetch=0,
            grid=(n, nh, nsrc),
            in_specs=in_specs,
            out_specs=out_specs,
            scratch_shapes=[pltpu.VMEM((th * w, cout), jnp.float32)],
        ),
        compiler_params=pltpu.CompilerParams(
            dimension_semantics=("parallel", "parallel", "arbitrary"),
            vmem_limit_bytes=_CONV_VMEM_REQ),
    )(*args)


# ----------------------------------------------------------------------------
# Kernel B: K-blocked fused matmul (tiny deep convs via im2col, cond MLP)
#   grid = (cout_blocks, K_blocks): weight stream pipelined; cout axis is
#   "parallel" so the deep layers shard across v7x's two TensorCores.
# ----------------------------------------------------------------------------
def _matmul_kernel(a_ref, w_ref, s_ref, b_ref, o_ref, acc_ref, *, act, slope):
    kk = pl.program_id(1)

    @pl.when(kk == 0)
    def _():
        acc_ref[...] = jnp.zeros_like(acc_ref)

    acc_ref[...] += jnp.dot(a_ref[...], w_ref[...],
                            preferred_element_type=jnp.float32)

    @pl.when(kk == pl.num_programs(1) - 1)
    def _():
        y = acc_ref[...] * s_ref[...] + b_ref[...]
        o_ref[...] = _apply_act(y, act, slope).astype(o_ref.dtype)


def matmul_fused(a, w, scale, bias, act="none", slope=0.0):
    m, k = a.shape
    cout = w.shape[1]
    nj = 2 if cout % 256 == 0 else 1
    cb = cout // nj

    tk = k
    if k > 2304 and k % 128 == 0:
        for cand in (2304, 1536, 1152, 768, 512, 256, 128):
            if k % cand == 0:
                tk = cand
                break
    nk = k // tk

    s2 = scale.reshape(1, cout).astype(jnp.float32)
    b2 = bias.reshape(1, cout).astype(jnp.float32)

    return pl.pallas_call(
        functools.partial(_matmul_kernel, act=act, slope=slope),
        out_shape=jax.ShapeDtypeStruct((m, cout), CDTYPE),
        grid_spec=pltpu.PrefetchScalarGridSpec(
            num_scalar_prefetch=0,
            grid=(nj, nk),
            in_specs=[pl.BlockSpec((m, tk), lambda j, kk: (0, kk)),
                      pl.BlockSpec((tk, cb), lambda j, kk: (kk, j)),
                      pl.BlockSpec((1, cb), lambda j, kk: (0, j)),
                      pl.BlockSpec((1, cb), lambda j, kk: (0, j))],
            out_specs=pl.BlockSpec((m, cb), lambda j, kk: (0, j)),
            scratch_shapes=[pltpu.VMEM((m, cb), jnp.float32)],
        ),
        compiler_params=pltpu.CompilerParams(
            dimension_semantics=("parallel", "arbitrary"),
            vmem_limit_bytes=_MM_VMEM_REQ),
    )(a.astype(CDTYPE), w.astype(CDTYPE), s2, b2)


# ----------------------------------------------------------------------------
# JAX glue (memory-bound, fused by XLA under jit)
# TODO(synk): maxpool / 2x upsample / embedding gather have no matmul to fuse;
# they stay as plain (bf16) XLA glue inside the jitted forward.
# ----------------------------------------------------------------------------
def maxpool2x2(x):
    n, h, w, c = x.shape
    return x.reshape(n, h // 2, 2, w // 2, 2, c).max(axis=(2, 4))


def upsample2x(x):
    """Separable 2x bilinear (align_corners=False) as a bf16 fixed-weight
    interleave: out[2i] = .75*in[i] + .25*in[i-1]; out[2i+1] = .75*in[i] + .25*in[i+1]."""
    n, h, w, c = x.shape
    a = jnp.asarray(0.75, x.dtype)
    b = jnp.asarray(0.25, x.dtype)
    # rows
    prev = jnp.concatenate([x[:, :1], x[:, :-1]], axis=1)
    nxt = jnp.concatenate([x[:, 1:], x[:, -1:]], axis=1)
    y = jnp.stack([a * x + b * prev, a * x + b * nxt], axis=2)
    y = y.reshape(n, 2 * h, w, c)
    # cols
    prev = jnp.concatenate([y[:, :, :1], y[:, :, :-1]], axis=2)
    nxt = jnp.concatenate([y[:, :, 1:], y[:, :, -1:]], axis=2)
    z = jnp.stack([a * y + b * prev, a * y + b * nxt], axis=3)
    return z.reshape(n, 2 * h, 2 * w, c)


def _im2col3x3(x):
    n, h, w, c = x.shape
    xp = jnp.pad(x, ((0, 0), (1, 1), (1, 1), (0, 0)))
    cols = [xp[:, dy:dy + h, dx:dx + w, :] for dy in range(3) for dx in range(3)]
    return jnp.concatenate(cols, axis=-1).reshape(n * h * w, 9 * c)


# ----------------------------------------------------------------------------
# Layer blocks
# ----------------------------------------------------------------------------
def double_conv_big(xs, p, act="relu", slope=0.0, head=None, head_act="none"):
    y = conv3x3_fused(xs, p["w1"], p["s1"], p["b1"], act=act, slope=slope)
    hw = None if head is None else head["w"]
    hb = None if head is None else head["b"]
    return conv3x3_fused([y], p["w2"], p["s2"], p["b2"], act=act, slope=slope,
                         head_w=hw, head_b=hb, head_act=head_act)


def double_conv_small(x, p, act="relu", slope=0.0):
    n, h, w, _ = x.shape
    c1 = p["s1"].shape[0]
    y = matmul_fused(_im2col3x3(x), p["w1"], p["s1"], p["b1"], act, slope)
    y = y.reshape(n, h, w, c1)
    c2 = p["s2"].shape[0]
    y = matmul_fused(_im2col3x3(y), p["w2"], p["s2"], p["b2"], act, slope)
    return y.reshape(n, h, w, c2)


def up_big(x_below, x_skip, p, head=None, head_act="none"):
    xu = upsample2x(x_below)
    return double_conv_big([x_skip, xu], p, head=head, head_act=head_act)


def up_small(x_below, x_skip, p):
    xu = upsample2x(x_below)
    return double_conv_small(jnp.concatenate([x_skip, xu], axis=-1), p)


# ----------------------------------------------------------------------------
# Parameter initialization (deterministic) + torch->Pallas weight layouts
# ----------------------------------------------------------------------------
def _conv_w_to_taps(w, split=1):
    """torch (Cout, Cin, 3, 3) -> (split, 3(dy), 3*(Cin//split), Cout) where
    the K axis is ordered (dx, ci)."""
    cout, cin = w.shape[:2]
    c = cin // split
    parts = []
    for s in range(split):
        ws = jnp.transpose(w[:, s * c:(s + 1) * c], (2, 3, 1, 0))  # (dy,dx,ci,co)
        parts.append(ws.reshape(3, 3 * c, cout))
    return jnp.stack(parts, axis=0)


def _conv_w_to_2d(w):
    """torch (Cout, Cin, 3, 3) -> (9*Cin, Cout); row = (dy*3+dx)*Cin + ci."""
    cout, cin = w.shape[0], w.shape[1]
    return jnp.transpose(w, (2, 3, 1, 0)).reshape(9 * cin, cout)


def _init_conv(key, cin, cout, ksize):
    kw, kb = jax.random.split(key)
    fan_in = float(cin * ksize * ksize)
    w = jax.random.normal(kw, (cout, cin, ksize, ksize), jnp.float32) / jnp.sqrt(fan_in)
    b = 0.01 * jax.random.normal(kb, (cout,), jnp.float32)
    return w, b


def _init_bn(key, c):
    k1, k2, k3, k4 = jax.random.split(key, 4)
    gamma = 1.0 + 0.1 * jax.random.normal(k1, (c,), jnp.float32)
    beta = 0.1 * jax.random.normal(k2, (c,), jnp.float32)
    mean = 0.1 * jax.random.normal(k3, (c,), jnp.float32)
    var = jnp.abs(1.0 + 0.1 * jax.random.normal(k4, (c,), jnp.float32))
    return gamma, beta, mean, var


def _make_double_conv(key, cin, cout, kind, split=1):
    k = jax.random.split(key, 4)
    w1, cb1 = _init_conv(k[0], cin, cout, 3)
    g1, be1, m1, v1 = _init_bn(k[1], cout)
    w2, cb2 = _init_conv(k[2], cout, cout, 3)
    g2, be2, m2, v2 = _init_bn(k[3], cout)
    s1 = g1 / jnp.sqrt(v1 + BN_EPS)
    b1 = (cb1 - m1) * s1 + be1
    s2 = g2 / jnp.sqrt(v2 + BN_EPS)
    b2 = (cb2 - m2) * s2 + be2
    if kind == "big":
        w1t = _conv_w_to_taps(w1, split=split).astype(CDTYPE)
        w2t = _conv_w_to_taps(w2, split=1).astype(CDTYPE)
    else:
        w1t = _conv_w_to_2d(w1).astype(CDTYPE)
        w2t = _conv_w_to_2d(w2).astype(CDTYPE)
    return dict(w1=w1t, s1=s1, b1=b1, w2=w2t, s2=s2, b2=b2)


def init_params(key, n_channels_in, n_channels_out, n_classes):
    ks = jax.random.split(key, 32)
    p = {}
    p["inc"] = _make_double_conv(ks[0], n_channels_in, 64, "big")
    p["down1"] = _make_double_conv(ks[1], 64, 128, "big")
    p["down2"] = _make_double_conv(ks[2], 128, 256, "big")
    p["down3"] = _make_double_conv(ks[3], 256, 512, "big")
    p["down4"] = _make_double_conv(ks[4], 512, 512, "big")
    p["down5"] = _make_double_conv(ks[5], 512, 512, "small")
    p["down6"] = _make_double_conv(ks[6], 512, 512, "small")
    p["down7"] = _make_double_conv(ks[7], 512, 512, "small")
    p["down8"] = _make_double_conv(ks[8], 512, 512, "small")
    p["bneck"] = _make_double_conv(ks[9], 1024, 512, "small")
    p["up1"] = _make_double_conv(ks[10], 1024, 512, "small")
    p["up2"] = _make_double_conv(ks[11], 1024, 512, "small")
    p["up3"] = _make_double_conv(ks[12], 1024, 512, "small")
    p["up4"] = _make_double_conv(ks[13], 1024, 512, "big", split=2)
    p["up5"] = _make_double_conv(ks[14], 1024, 256, "big", split=2)
    p["up6"] = _make_double_conv(ks[15], 512, 128, "big", split=2)
    p["up7"] = _make_double_conv(ks[16], 256, 64, "big", split=2)
    p["up8"] = _make_double_conv(ks[17], 128, 64, "big", split=2)
    # OutConv (1x1), folded into up8-conv2 epilogue (kept f32).
    wo, bo = _init_conv(ks[18], 64, n_channels_out, 1)
    p["outc"] = dict(w=jnp.transpose(wo[:, :, 0, 0]).astype(jnp.float32), b=bo)
    # Embedding(n_classes, 64) + cond_encoder (Linear no-bias + BN1d + ReLU) x2
    p["emb"] = 0.1 * jax.random.normal(ks[19], (n_classes, 64), jnp.float32)
    w1 = jax.random.normal(ks[20], (256, 64), jnp.float32) / jnp.sqrt(64.0)
    g, be, m, v = _init_bn(ks[21], 256)
    s = g / jnp.sqrt(v + BN_EPS)
    p["cond1"] = dict(w=jnp.transpose(w1).astype(CDTYPE), s=s, b=be - m * s)
    w2 = jax.random.normal(ks[22], (512, 256), jnp.float32) / jnp.sqrt(256.0)
    g, be, m, v = _init_bn(ks[23], 512)
    s = g / jnp.sqrt(v + BN_EPS)
    p["cond2"] = dict(w=jnp.transpose(w2).astype(CDTYPE), s=s, b=be - m * s)
    return p


# ----------------------------------------------------------------------------
# UNetModel.forward  (architecture forces 256x256 spatial input)
# ----------------------------------------------------------------------------
@functools.partial(jax.jit, static_argnames=("output_activation",))
def unet_forward(params, x_nchw, cond, output_activation="none"):
    x = jnp.transpose(x_nchw, (0, 2, 3, 1)).astype(CDTYPE)     # NCHW -> NHWC

    x1 = double_conv_big([x], params["inc"])                    # 256^2, 64
    x2 = double_conv_big([maxpool2x2(x1)], params["down1"])     # 128^2, 128
    x3 = double_conv_big([maxpool2x2(x2)], params["down2"])     # 64^2, 256
    x4 = double_conv_big([maxpool2x2(x3)], params["down3"])     # 32^2, 512
    x5 = double_conv_big([maxpool2x2(x4)], params["down4"])     # 16^2, 512
    x6 = double_conv_small(maxpool2x2(x5), params["down5"])     # 8^2, 512
    x7 = double_conv_small(maxpool2x2(x6), params["down6"])     # 4^2, 512
    x8 = double_conv_small(maxpool2x2(x7), params["down7"])     # 2^2, 512
    xb = double_conv_small(maxpool2x2(x8), params["down8"])     # 1^2, 512

    # conditioning branch
    e = params["emb"][cond]                                     # (N, 64)
    e = matmul_fused(e, params["cond1"]["w"], params["cond1"]["s"],
                     params["cond1"]["b"], "relu")              # (N, 256)
    e = matmul_fused(e, params["cond2"]["w"], params["cond2"]["s"],
                     params["cond2"]["b"], "relu")              # (N, 512)
    e = e.reshape(-1, 1, 1, 512)

    xb = jnp.concatenate([e, xb], axis=-1)                      # cat([e, x], 1)
    xb = double_conv_small(xb, params["bneck"], act="leaky", slope=0.2)

    u = up_small(xb, x8, params["up1"])                         # 2^2, 512
    u = up_small(u, x7, params["up2"])                          # 4^2, 512
    u = up_small(u, x6, params["up3"])                          # 8^2, 512
    u = up_big(u, x5, params["up4"])                            # 16^2, 512
    u = up_big(u, x4, params["up5"])                            # 32^2, 256
    u = up_big(u, x3, params["up6"])                            # 64^2, 128
    u = up_big(u, x2, params["up7"])                            # 128^2, 64
    head_act = output_activation if output_activation in ("sigmoid", "tanh") else "none"
    out = up_big(u, x1, params["up8"], head=params["outc"], head_act=head_act)
    # TODO(synk): final (N,H,W,2)->(N,2,H,W) repack is a tiny (0.5 MB) XLA
    # transpose; kept outside the kernel rather than an in-kernel transpose.
    return jnp.transpose(out, (0, 3, 1, 2))                     # NHWC -> NCHW


# ----------------------------------------------------------------------------
# Numerical self-check of both conv paths against lax.conv (f32 reference)
# ----------------------------------------------------------------------------
def _self_check():
    key = jax.random.PRNGKey(42)
    k1, k2, k3, k4, k5 = jax.random.split(key, 5)

    # Kernel A, fused-concat (2-source) path.
    xa = jax.random.normal(k1, (1, 32, 32, 16), jnp.float32).astype(CDTYPE)
    xb = jax.random.normal(k2, (1, 32, 32, 16), jnp.float32).astype(CDTYPE)
    w = 0.1 * jax.random.normal(k3, (24, 32, 3, 3), jnp.float32)
    got = conv3x3_fused([xa, xb], _conv_w_to_taps(w, split=2).astype(CDTYPE),
                        jnp.ones((24,), jnp.float32), jnp.zeros((24,), jnp.float32),
                        act="none").astype(jnp.float32)
    xcat = jnp.concatenate([xa, xb], axis=-1).astype(jnp.float32)
    ref = jax.lax.conv_general_dilated(
        xcat, jnp.transpose(w.astype(CDTYPE).astype(jnp.float32), (2, 3, 1, 0)),
        window_strides=(1, 1), padding=((1, 1), (1, 1)),
        dimension_numbers=("NHWC", "HWIO", "NHWC"),
        precision=jax.lax.Precision.HIGHEST)
    err = float(jnp.max(jnp.abs(got - ref)))
    tol = 0.01 * float(jnp.max(jnp.abs(ref))) + 1e-2
    assert err <= tol, f"conv3x3_fused mismatch: {err} > {tol}"

    # Kernel B (im2col) path.
    xs = jax.random.normal(k4, (1, 4, 4, 8), jnp.float32).astype(CDTYPE)
    ws = 0.2 * jax.random.normal(k5, (12, 8, 3, 3), jnp.float32)
    got2 = matmul_fused(_im2col3x3(xs), _conv_w_to_2d(ws).astype(CDTYPE),
                        jnp.ones((12,), jnp.float32), jnp.zeros((12,), jnp.float32),
                        "none").astype(jnp.float32).reshape(1, 4, 4, 12)
    ref2 = jax.lax.conv_general_dilated(
        xs.astype(jnp.float32),
        jnp.transpose(ws.astype(CDTYPE).astype(jnp.float32), (2, 3, 1, 0)),
        window_strides=(1, 1), padding=((1, 1), (1, 1)),
        dimension_numbers=("NHWC", "HWIO", "NHWC"),
        precision=jax.lax.Precision.HIGHEST)
    err2 = float(jnp.max(jnp.abs(got2 - ref2)))
    tol2 = 0.01 * float(jnp.max(jnp.abs(ref2))) + 1e-2
    assert err2 <= tol2, f"matmul_fused mismatch: {err2} > {tol2}"


# ----------------------------------------------------------------------------
if __name__ == "__main__":
    _self_check()

    key = jax.random.PRNGKey(0)
    kp, kx, kc = jax.random.split(key, 3)

    N = 1
    n_channels_in, n_channels_out, n_classes = 3, 2, 10
    # 8 downsamplings + concat with the (B,512,1,1) cond embedding force 256x256.
    H = W = 256

    params = init_params(kp, n_channels_in, n_channels_out, n_classes)
    x = jax.random.normal(kx, (N, n_channels_in, H, W), jnp.float32)   # NCHW
    cond = jax.random.randint(kc, (N,), 0, n_classes, dtype=jnp.int32)

    out = unet_forward(params, x, cond, output_activation="none")
    out = jax.block_until_ready(out)
    assert out.shape == (N, n_channels_out, H, W), out.shape
    assert bool(jnp.isfinite(out).all())
    print("KERNEL_OK")
</pallas_src>

<mosaic_0001>
module attributes {stable_mosaic.version = 11 : i64} {
  func.func @_conv3x3_kernel(%arg0: i32, %arg1: i32, %arg2: i32, %arg3: memref<1x1x1x18x34x16xbf16, #tpu.memory_space<vmem>>, %arg4: memref<1x3x48x24xbf16, #tpu.memory_space<vmem>>, %arg5: memref<1x24xf32, #tpu.memory_space<vmem>>, %arg6: memref<1x24xf32, #tpu.memory_space<vmem>>, %arg7: memref<1x16x32x24xbf16, #tpu.memory_space<vmem>>, %arg8: memref<512x24xf32, #tpu.memory_space<vmem>>) attributes {dimension_semantics = [#tpu.dimension_semantics<parallel>, #tpu.dimension_semantics<parallel>, #tpu.dimension_semantics<arbitrary>], iteration_bounds = array<i64: 1, 2, 2>, scalar_prefetch = 0 : i64, scratch_operands = 1 : i64, tpu.core_type = #tpu.core_type<tc>, window_params = [{transform_indices = @transform_0, window_bounds = array<i64: 1, 1, 1, 18, 34, 16>}, {transform_indices = @transform_1, window_bounds = array<i64: 1, 3, 48, 24>}, {pipeline_mode = #tpu.pipeline_mode<synchronous>, transform_indices = @transform_2, window_bounds = array<i64: 1, 24>}, {pipeline_mode = #tpu.pipeline_mode<synchronous>, transform_indices = @transform_3, window_bounds = array<i64: 1, 24>}, {transform_indices = @transform_4, window_bounds = array<i64: 1, 16, 32, 24>}]} {
    %c0_i32 = arith.constant 0 : i32
    %0 = arith.cmpi eq, %arg2, %c0_i32 : i32
    %1 = arith.extui %0 : i1 to i32
    %c0_i32_0 = arith.constant 0 : i32
    %2 = arith.cmpi ne, %1, %c0_i32_0 : i32
    scf.if %2 {
      %cst_31 = arith.constant 0.000000e+00 : f32
      %41 = vector.broadcast %cst_31 : f32 to vector<512x24xf32>
      %c0_32 = arith.constant 0 : index
      %c0_33 = arith.constant 0 : index
      %42 = vector.load %arg8[%c0_32, %c0_33] : memref<512x24xf32, #tpu.memory_space<vmem>>, vector<512x24xf32>
      tpu.vector_store %arg8[%c0_32, %c0_33], %41 {strides = array<i32>} : memref<512x24xf32, #tpu.memory_space<vmem>>, vector<512x24xf32>,
    } else {
    }
    %c0 = arith.constant 0 : index
    %c0_1 = arith.constant 0 : index
    %c0_2 = arith.constant 0 : index
    %c0_3 = arith.constant 0 : index
    %c0_4 = arith.constant 0 : index
    %c0_5 = arith.constant 0 : index
    %3 = vector.load %arg3[%c0, %c0_1, %c0_2, %c0_3, %c0_4, %c0_5] : memref<1x1x1x18x34x16xbf16, #tpu.memory_space<vmem>>, vector<1x1x1x18x34x16xbf16>
    %4 = vector.shape_cast %3 : vector<1x1x1x18x34x16xbf16> to vector<18x34x16xbf16>
    %5 = vector.extract_strided_slice %4 {offsets = [0, 0, 0], sizes = [16, 32, 16], strides = [1, 1, 1]} : vector<18x34x16xbf16> to vector<16x32x16xbf16>
    %6 = vector.extract_strided_slice %4 {offsets = [0, 1, 0], sizes = [16, 32, 16], strides = [1, 1, 1]} : vector<18x34x16xbf16> to vector<16x32x16xbf16>
    %7 = vector.extract_strided_slice %4 {offsets = [0, 2, 0], sizes = [16, 32, 16], strides = [1, 1, 1]} : vector<18x34x16xbf16> to vector<16x32x16xbf16>
    %8 = tpu.concatenate %5, %6, %7 in 2 : vector<16x32x16xbf16>, vector<16x32x16xbf16>, vector<16x32x16xbf16> -> vector<16x32x48xbf16>
    %9 = vector.shape_cast %8 : vector<16x32x48xbf16> to vector<512x48xbf16>
    %c0_6 = arith.constant 0 : index
    %c0_7 = arith.constant 0 : index
    %10 = vector.load %arg8[%c0_6, %c0_7] : memref<512x24xf32, #tpu.memory_space<vmem>>, vector<512x24xf32>
    %c0_8 = arith.constant 0 : index
    %c0_9 = arith.constant 0 : index
    %c0_10 = arith.constant 0 : index
    %c0_11 = arith.constant 0 : index
    %11 = vector.load %arg4[%c0_8, %c0_9, %c0_10, %c0_11] : memref<1x3x48x24xbf16, #tpu.memory_space<vmem>>, vector<1x1x48x24xbf16>
    %12 = vector.shape_cast %11 : vector<1x1x48x24xbf16> to vector<48x24xbf16>
    %cst = arith.constant dense<0.000000e+00> : vector<512x24xf32>
    %13 = tpu.matmul %9, %12, %cst {dimension_numbers = #tpu.dot_dimension_numbers<[1], [0], [0], [1], [0, 0, 1, 1], [], []>} : vector<512x48xbf16>, vector<48x24xbf16>, vector<512x24xf32> -> vector<512x24xf32>
    %14 = arith.addf %10, %13 : vector<512x24xf32>
    %c0_12 = arith.constant 0 : index
    %c0_13 = arith.constant 0 : index
    %15 = vector.load %arg8[%c0_12, %c0_13] : memref<512x24xf32, #tpu.memory_space<vmem>>, vector<512x24xf32>
    tpu.vector_store %arg8[%c0_12, %c0_13], %14 {strides = array<i32>} : memref<512x24xf32, #tpu.memory_space<vmem>>, vector<512x24xf32>,
    %16 = vector.extract_strided_slice %4 {offsets = [1, 0, 0], sizes = [16, 32, 16], strides = [1, 1, 1]} : vector<18x34x16xbf16> to vector<16x32x16xbf16>
    %17 = vector.extract_strided_slice %4 {offsets = [1, 1, 0], sizes = [16, 32, 16], strides = [1, 1, 1]} : vector<18x34x16xbf16> to vector<16x32x16xbf16>
    %18 = vector.extract_strided_slice %4 {offsets = [1, 2, 0], sizes = [16, 32, 16], strides = [1, 1, 1]} : vector<18x34x16xbf16> to vector<16x32x16xbf16>
    %19 = tpu.concatenate %16, %17, %18 in 2 : vector<16x32x16xbf16>, vector<16x32x16xbf16>, vector<16x32x16xbf16> -> vector<16x32x48xbf16>
    %20 = vector.shape_cast %19 : vector<16x32x48xbf16> to vector<512x48xbf16>
    %c0_14 = arith.constant 0 : index
    %c0_15 = arith.constant 0 : index
    %21 = vector.load %arg8[%c0_14, %c0_15] : memref<512x24xf32, #tpu.memory_space<vmem>>, vector<512x24xf32>
    %c0_16 = arith.constant 0 : index
    %c1 = arith.constant 1 : index
    %c0_17 = arith.constant 0 : index
    %c0_18 = arith.constant 0 : index
    %22 = vector.load %arg4[%c0_16, %c1, %c0_17, %c0_18] : memref<1x3x48x24xbf16, #tpu.memory_space<vmem>>, vector<1x1x48x24xbf16>
    %23 = vector.shape_cast %22 : vector<1x1x48x24xbf16> to vector<48x24xbf16>
    %cst_19 = arith.constant dense<0.000000e+00> : vector<512x24xf32>
    %24 = tpu.matmul %20, %23, %cst_19 {dimension_numbers = #tpu.dot_dimension_numbers<[1], [0], [0], [1], [0, 0, 1, 1], [], []>} : vector<512x48xbf16>, vector<48x24xbf16>, vector<512x24xf32> -> vector<512x24xf32>
    %25 = arith.addf %21, %24 : vector<512x24xf32>
    %c0_20 = arith.constant 0 : index
    %c0_21 = arith.constant 0 : index
    %26 = vector.load %arg8[%c0_20, %c0_21] : memref<512x24xf32, #tpu.memory_space<vmem>>, vector<512x24xf32>
    tpu.vector_store %arg8[%c0_20, %c0_21], %25 {strides = array<i32>} : memref<512x24xf32, #tpu.memory_space<vmem>>, vector<512x24xf32>,
    %27 = vector.extract_strided_slice %4 {offsets = [2, 0, 0], sizes = [16, 32, 16], strides = [1, 1, 1]} : vector<18x34x16xbf16> to vector<16x32x16xbf16>
    %28 = vector.extract_strided_slice %4 {offsets = [2, 1, 0], sizes = [16, 32, 16], strides = [1, 1, 1]} : vector<18x34x16xbf16> to vector<16x32x16xbf16>
    %29 = vector.extract_strided_slice %4 {offsets = [2, 2, 0], sizes = [16, 32, 16], strides = [1, 1, 1]} : vector<18x34x16xbf16> to vector<16x32x16xbf16>
    %30 = tpu.concatenate %27, %28, %29 in 2 : vector<16x32x16xbf16>, vector<16x32x16xbf16>, vector<16x32x16xbf16> -> vector<16x32x48xbf16>
    %31 = vector.shape_cast %30 : vector<16x32x48xbf16> to vector<512x48xbf16>
    %c0_22 = arith.constant 0 : index
    %c0_23 = arith.constant 0 : index
    %32 = vector.load %arg8[%c0_22, %c0_23] : memref<512x24xf32, #tpu.memory_space<vmem>>, vector<512x24xf32>
    %c0_24 = arith.constant 0 : index
    %c2 = arith.constant 2 : index
    %c0_25 = arith.constant 0 : index
    %c0_26 = arith.constant 0 : index
    %33 = vector.load %arg4[%c0_24, %c2, %c0_25, %c0_26] : memref<1x3x48x24xbf16, #tpu.memory_space<vmem>>, vector<1x1x48x24xbf16>
    %34 = vector.shape_cast %33 : vector<1x1x48x24xbf16> to vector<48x24xbf16>
    %cst_27 = arith.constant dense<0.000000e+00> : vector<512x24xf32>
    %35 = tpu.matmul %31, %34, %cst_27 {dimension_numbers = #tpu.dot_dimension_numbers<[1], [0], [0], [1], [0, 0, 1, 1], [], []>} : vector<512x48xbf16>, vector<48x24xbf16>, vector<512x24xf32> -> vector<512x24xf32>
    %36 = arith.addf %32, %35 : vector<512x24xf32>
    %c0_28 = arith.constant 0 : index
    %c0_29 = arith.constant 0 : index
    %37 = vector.load %arg8[%c0_28, %c0_29] : memref<512x24xf32, #tpu.memory_space<vmem>>, vector<512x24xf32>
    tpu.vector_store %arg8[%c0_28, %c0_29], %36 {strides = array<i32>} : memref<512x24xf32, #tpu.memory_space<vmem>>, vector<512x24xf32>,
    %c1_i32 = arith.constant 1 : i32
    %38 = arith.cmpi eq, %arg2, %c1_i32 : i32
    %39 = arith.extui %38 : i1 to i32
    %c0_i32_30 = arith.constant 0 : i32
    %40 = arith.cmpi ne, %39, %c0_i32_30 : i32
    scf.if %40 {
      %c0_31 = arith.constant 0 : index
      %c0_32 = arith.constant 0 : index
      %41 = vector.load %arg8[%c0_31, %c0_32] : memref<512x24xf32, #tpu.memory_space<vmem>>, vector<512x24xf32>
      %c0_33 = arith.constant 0 : index
      %c0_34 = arith.constant 0 : index
      %42 = vector.load %arg5[%c0_33, %c0_34] : memref<1x24xf32, #tpu.memory_space<vmem>>, vector<1x24xf32>
      %43 = vector.broadcast %42 : vector<1x24xf32> to vector<512x24xf32>
      %44 = arith.mulf %41, %43 : vector<512x24xf32>
      %c0_35 = arith.constant 0 : index
      %c0_36 = arith.constant 0 : index
      %45 = vector.load %arg6[%c0_35, %c0_36] : memref<1x24xf32, #tpu.memory_space<vmem>>, vector<1x24xf32>
      %46 = vector.broadcast %45 : vector<1x24xf32> to vector<512x24xf32>
      %47 = arith.addf %44, %46 : vector<512x24xf32>
      %48 = vector.shape_cast %47 : vector<512x24xf32> to vector<16x32x24xf32>
      %49 = arith.truncf %48 : vector<16x32x24xf32> to vector<16x32x24xbf16>
      %c0_37 = arith.constant 0 : index
      %c0_38 = arith.constant 0 : index
      %c0_39 = arith.constant 0 : index
      %c0_40 = arith.constant 0 : index
      %50 = vector.load %arg7[%c0_37, %c0_38, %c0_39, %c0_40] : memref<1x16x32x24xbf16, #tpu.memory_space<vmem>>, vector<1x16x32x24xbf16>
      %51 = vector.shape_cast %50 : vector<1x16x32x24xbf16> to vector<16x32x24xbf16>
      %52 = vector.shape_cast %49 : vector<16x32x24xbf16> to vector<1x16x32x24xbf16>
      tpu.vector_store %arg7[%c0_37, %c0_38, %c0_39, %c0_40], %52 {strides = array<i32>} : memref<1x16x32x24xbf16, #tpu.memory_space<vmem>>, vector<1x16x32x24xbf16>,
    } else {
    }
    return
  }
  func.func @transform_0(%arg0: i32, %arg1: i32, %arg2: i32) -> (i32, i32, i32, i32, i32, i32) {
    %c0_i32 = arith.constant 0 : i32
    %c0_i32_0 = arith.constant 0 : i32
    %c0_i32_1 = arith.constant 0 : i32
    %c0_i32_2 = arith.constant 0 : i32
    return %arg2, %arg0, %arg1, %c0_i32, %c0_i32_0, %c0_i32_1 : i32, i32, i32, i32, i32, i32
  }
  func.func @transform_1(%arg0: i32, %arg1: i32, %arg2: i32) -> (i32, i32, i32, i32) {
    %c0_i32 = arith.constant 0 : i32
    %c0_i32_0 = arith.constant 0 : i32
    %c0_i32_1 = arith.constant 0 : i32
    %c0_i32_2 = arith.constant 0 : i32
    return %arg2, %c0_i32, %c0_i32_0, %c0_i32_1 : i32, i32, i32, i32
  }
  func.func @transform_2(%arg0: i32, %arg1: i32, %arg2: i32) -> (i32, i32) {
    %c0_i32 = arith.constant 0 : i32
    %c0_i32_0 = arith.constant 0 : i32
    %c0_i32_1 = arith.constant 0 : i32
    return %c0_i32, %c0_i32_0 : i32, i32
  }
  func.func @transform_3(%arg0: i32, %arg1: i32, %arg2: i32) -> (i32, i32) {
    %c0_i32 = arith.constant 0 : i32
    %c0_i32_0 = arith.constant 0 : i32
    %c0_i32_1 = arith.constant 0 : i32
    return %c0_i32, %c0_i32_0 : i32, i32
  }
  func.func @transform_4(%arg0: i32, %arg1: i32, %arg2: i32) -> (i32, i32, i32, i32) {
    %c0_i32 = arith.constant 0 : i32
    %c0_i32_0 = arith.constant 0 : i32
    %c0_i32_1 = arith.constant 0 : i32
    return %arg0, %arg1, %c0_i32, %c0_i32_0 : i32, i32, i32, i32
  }
}

</mosaic_0001>

<llo_original>
// kernel: tpu_custom_call.1
$region0: #{tpu_custom_call.1}
  #allocation0 [shape = 'u32[]', space=smem, size = 0x4, offset = 0x4, fixed_abs, tag = 'smem constant byte address 0x4 - core index']
  #allocation1 [shape = 'u32[72,128]{1,0:T(1,128)}', space=vmem, size = 0x9000, scoped, tag = 'internal scratch']
  #allocation2 [shape = 'f32[512,24]{1,0:T(8,128)}', space=vmem, size = 0x40000, scoped, tag = 'scratch operand']
  %s0 = inlined_call_operand.vmem [shape: bf16[2,1,2,18,34,16], index: 0, kind: input, shape index: {}]
  %s1 = inlined_call_operand.vmem [shape: bf16[2,3,48,24], index: 1, kind: input, shape index: {}]
  %s2 = inlined_call_operand.vmem [shape: f32[1,24], index: 2, kind: input, shape index: {}]
  %s3 = inlined_call_operand.vmem [shape: f32[1,24], index: 3, kind: input, shape index: {}]
  %s4 = inlined_call_operand.vmem [shape: bf16[1,32,32,24], index: 4, kind: output, shape index: {}]
  %s5 = sld [smem:[#allocation0]]
  $region57: #{tpu_custom_call.1} parent=0
    _
  %s7 = ssub.s32 1, %s5
  %s8 = scalar_select 0, %s7, %s5
  loop: start=0, step=1, limit=6
  $region2: #{tpu_custom_call.1} parent=0 // loop_pre_header
    _
  $region3: #{tpu_custom_call.1} parent=0 // loop_header
    %s10 = sphi 0, %s14
    %p11 = scmp.ge.s32.totalorder %s10, 6
    %s17 = sphi 0, %s36
    %s18 = sphi 0, %s32
    %s19 = sphi 0, %s28
    %s20 = sphi 0, %s17
    %s21 = sphi 0, %s18
    %s22 = sphi 0, %s19
    %s23 = sphi 0, %s20
    %s24 = sphi 0, %s21
    %s25 = sphi 0, %s22
    %s43 = sphi 0, %s45
    %s46 = sphi 0, %s43
    %s47 = sphi 0, %s46
    %s63 = sphi 0, %s47
    %s69 = sphi 0, %s71
    %s72 = sphi 0, %s69
    %s73 = sphi 0, %s72
    %s89 = sphi 0, %s73
    %s93 = sphi 0, %s93
    %s95 = sphi 0, %s93
    %s96 = sphi 0, %s95
    %s110 = sphi 0, %s96
    %s114 = sphi 0, %s114
    %s116 = sphi 0, %s114
    %s117 = sphi 0, %s116
    %s131 = sphi 0, %s117
    %s139 = sphi 0, %s141
    %s142 = sphi 0, %s139
    %s143 = sphi 0, %s142
    %s159 = sphi 0, %s143
  $region4: #{tpu_custom_call.1} parent=0 // loop_header_branch
    %13 = sbr.rel (%p11) target = $region8
  $region5: #{tpu_custom_call.1} parent=0 // loop_body
    %s15 = ssub.s32 %s10, 1
    %s16 = ssub.s32 %s10, 2
    %s26 = sadd.s32 1, %s19
    %p27 = scmp.ge.s32.totalorder %s26, 2
    %s28 = scalar_select %p27, 0, %s26
    %s29 = sadd.s32 1, %s18
    %s30 = scalar_select %p27, %s29, %s18
    %p31 = scmp.ge.s32.totalorder %s30, 2
    %s32 = scalar_select %p31, 0, %s30
    %s33 = sadd.s32 1, %s17
    %s34 = scalar_select %p31, %s33, %s17
    %p35 = scmp.ge.s32.totalorder %s34, 1
    %s36 = scalar_select %p35, 0, %s34
    %s37 = ssub.s32 %s19, %s28
    %s38 = ssub.s32 %s17, %s36
    %s39 = sor.u32 %s37, %s38
    %s40 = ssub.s32 %s18, %s32
    %s41 = sor.u32 %s39, %s40
    %p42 = scmp.eq.s32.totalorder %s41, 0
    %s44 = sadd.s32 %s43, 1
    %s45 = scalar_select %p42, %s43, %s44
    %p48 = pneg %p42
    %p49 = scmp.eq.s32.totalorder %s10, 3
    %p50 = por %p48, %p49
    %p51 = scmp.ne.s32.totalorder %s43, %s46
    %p52 = scmp.eq.s32.totalorder %s10, 0
    %p53 = por %p51, %p52
    %p54 = scmp.ne.s32.totalorder %s43, %s46
    %p55 = scmp.eq.s32.totalorder %s15, 3
    %p56 = por %p54, %p55
    %p57 = scmp.ne.s32.totalorder %s46, %s47
    %p58 = scmp.eq.s32.totalorder %s15, 0
    %p59 = por %p57, %p58
    %p60 = scmp.ne.s32.totalorder %s46, %s47
    %p61 = scmp.eq.s32.totalorder %s16, 3
    %p62 = por %p60, %p61
    %p64 = scmp.ne.s32.totalorder %s47, %s63
    %p65 = scmp.eq.s32.totalorder %s16, 0
    %p66 = por %p64, %p65
    %s67 = ssub.s32 %s19, %s28
    %p68 = scmp.eq.s32.totalorder %s67, 0
    %s70 = sadd.s32 %s69, 1
    %s71 = scalar_select %p68, %s69, %s70
    %p74 = pneg %p68
    %p75 = scmp.eq.s32.totalorder %s10, 3
    %p76 = por %p74, %p75
    %p77 = scmp.ne.s32.totalorder %s69, %s72
    %p78 = scmp.eq.s32.totalorder %s10, 0
    %p79 = por %p77, %p78
    %p80 = scmp.ne.s32.totalorder %s69, %s72
    %p81 = scmp.eq.s32.totalorder %s15, 3
    %p82 = por %p80, %p81
    %p83 = scmp.ne.s32.totalorder %s72, %s73
    %p84 = scmp.eq.s32.totalorder %s15, 0
    %p85 = por %p83, %p84
    %p86 = scmp.ne.s32.totalorder %s72, %s73
    %p87 = scmp.eq.s32.totalorder %s16, 3
    %p88 = por %p86, %p87
    %p90 = scmp.ne.s32.totalorder %s73, %s89
    %p91 = scmp.eq.s32.totalorder %s16, 0
    %p92 = por %p90, %p91
    %s94 = sadd.s32 %s93, 1
    %p97 = scmp.eq.s32.totalorder %s10, 3
    %p98 = scmp.ne.s32.totalorder %s93, %s95
    %p99 = scmp.eq.s32.totalorder %s10, 0
    %p100 = por %p98, %p99
    %p101 = scmp.ne.s32.totalorder %s93, %s95
    %p102 = scmp.eq.s32.totalorder %s15, 3
    %p103 = por %p101, %p102
    %p104 = scmp.ne.s32.totalorder %s95, %s96
    %p105 = scmp.eq.s32.totalorder %s15, 0
    %p106 = por %p104, %p105
    %p107 = scmp.ne.s32.totalorder %s95, %s96
    %p108 = scmp.eq.s32.totalorder %s16, 3
    %p109 = por %p107, %p108
    %p111 = scmp.ne.s32.totalorder %s96, %s110
    %p112 = scmp.eq.s32.totalorder %s16, 0
    %p113 = por %p111, %p112
    %s115 = sadd.s32 %s114, 1
    %p118 = scmp.eq.s32.totalorder %s10, 3
    %p119 = scmp.ne.s32.totalorder %s114, %s116
    %p120 = scmp.eq.s32.totalorder %s10, 0
    %p121 = por %p119, %p120
    %p122 = scmp.ne.s32.totalorder %s114, %s116
    %p123 = scmp.eq.s32.totalorder %s15, 3
    %p124 = por %p122, %p123
    %p125 = scmp.ne.s32.totalorder %s116, %s117
    %p126 = scmp.eq.s32.totalorder %s15, 0
    %p127 = por %p125, %p126
    %p128 = scmp.ne.s32.totalorder %s116, %s117
    %p129 = scmp.eq.s32.totalorder %s16, 3
    %p130 = por %p128, %p129
    %p132 = scmp.ne.s32.totalorder %s117, %s131
    %p133 = scmp.eq.s32.totalorder %s16, 0
    %p134 = por %p132, %p133
    %s135 = ssub.s32 %s17, %s36
    %s136 = ssub.s32 %s18, %s32
    %s137 = sor.u32 %s135, %s136
    %p138 = scmp.eq.s32.totalorder %s137, 0
    %s140 = sadd.s32 %s139, 1
    %s141 = scalar_select %p138, %s139, %s140
    %p144 = pneg %p138
    %p145 = scmp.eq.s32.totalorder %s10, 3
    %p146 = por %p144, %p145
    %p147 = scmp.ne.s32.totalorder %s139, %s142
    %p148 = scmp.eq.s32.totalorder %s10, 0
    %p149 = por %p147, %p148
    %p150 = scmp.ne.s32.totalorder %s139, %s142
    %p151 = scmp.eq.s32.totalorder %s15, 3
    %p152 = por %p150, %p151
    %p153 = scmp.ne.s32.totalorder %s142, %s143
    %p154 = scmp.eq.s32.totalorder %s15, 0
    %p155 = por %p153, %p154
    %p156 = scmp.ne.s32.totalorder %s142, %s143
    %p157 = scmp.eq.s32.totalorder %s16, 3
    %p158 = por %p156, %p157
    %p160 = scmp.ne.s32.totalorder %s143, %s159
    %p161 = scmp.eq.s32.totalorder %s16, 0
    %p162 = por %p160, %p161
    %p163 = scmp.le.s32.totalorder 1, %s10
    %p164 = scmp.lt.s32.totalorder %s10, 5
    %p165 = pnand %p163, %p164
    %p166 = pneg %p165
    // Predicated region
    $region9: #{tpu_custom_call.1} parent=5 // pred_check
      _
    $region10: #{tpu_custom_call.1} parent=5 // pred_check_branch
      %168 = sbr.rel (%p165) target = $region12
    $region11: #{tpu_custom_call.1} parent=5 // pred_region
      %s169 = ssub.s32 %s10, 1
      // Predicated region
      $region13: #{tpu_custom_call.1} parent=11 // pred_check
        %p170 = pneg %p106
      $region14: #{tpu_custom_call.1} parent=11 // pred_check_branch
        %172 = sbr.rel (%p170) target = $region16
      $region15: #{tpu_custom_call.1} parent=11 // pred_region
        _
      $region16: #{tpu_custom_call.1} parent=11 // pred_fallthru
        _
      // Predicated region
      $region17: #{tpu_custom_call.1} parent=11 // pred_check
        %p173 = pneg %p127
      $region18: #{tpu_custom_call.1} parent=11 // pred_check_branch
        %175 = sbr.rel (%p173) target = $region20
      $region19: #{tpu_custom_call.1} parent=11 // pred_region
        _
      $region20: #{tpu_custom_call.1} parent=11 // pred_fallthru
        _
    $region12: #{tpu_custom_call.1} parent=5 // pred_fallthru
      _
    %p176 = scmp.lt.s32.totalorder %s10, 4
    // Predicated region
    $region21: #{tpu_custom_call.1} parent=5 // pred_check
      %p177 = pneg %p176
    $region22: #{tpu_custom_call.1} parent=5 // pred_check_branch
      %179 = sbr.rel (%p177) target = $region24
    $region23: #{tpu_custom_call.1} parent=5 // pred_region
      // Predicated region
      $region25: #{tpu_custom_call.1} parent=23 // pred_check
        %p180 = pneg %p53
      $region26: #{tpu_custom_call.1} parent=23 // pred_check_branch
        %182 = sbr.rel (%p180) target = $region28
      $region27: #{tpu_custom_call.1} parent=23 // pred_region
        %p183 = scmp.lt.s32.totalorder %s19, 1
        %s184 = scalar_select %p183, %s19, 1
        %p185 = scmp.lt.s32.totalorder %s17, 0
        %s186 = scalar_select %p185, %s17, 0
        %p187 = scmp.lt.s32.totalorder %s18, 1
        %s188 = scalar_select %p187, %s18, 1
        %s189 = smul.addr %s188, 90
        %s190 = smul.addr %s186, 180
        %s191 = sadd.s32 %s189, %s190
        %s192 = smul.addr %s184, 180
        %s193 = sadd.s32 %s191, %s192
        %s194 = smul.addr %s193, 4
        %s195 = scalar_lea.vmem %s0, %s194
      $region28: #{tpu_custom_call.1} parent=23 // pred_fallthru
        _
      // Predicated region
      $region29: #{tpu_custom_call.1} parent=23 // pred_check
        %p196 = pneg %p79
      $region30: #{tpu_custom_call.1} parent=23 // pred_check_branch
        %198 = sbr.rel (%p196) target = $region32
      $region31: #{tpu_custom_call.1} parent=23 // pred_region
        %p199 = scmp.lt.s32.totalorder %s19, 1
        %s200 = scalar_select %p199, %s19, 1
        %s201 = smul.addr %s200, 18
        %s202 = smul.addr %s201, 4
        %s203 = scalar_lea.vmem %s1, %s202
      $region32: #{tpu_custom_call.1} parent=23 // pred_fallthru
        _
    $region24: #{tpu_custom_call.1} parent=5 // pred_fallthru
      _
    %p204 = scmp.le.s32.totalorder 1, %s10
    %p205 = scmp.lt.s32.totalorder %s10, 5
    %p206 = pnand %p204, %p205
    %p207 = pneg %p206
    // Predicated region
    $region33: #{tpu_custom_call.1} parent=5 // pred_check
      _
    $region34: #{tpu_custom_call.1} parent=5 // pred_check_branch
      %209 = sbr.rel (%p206) target = $region36
    $region35: #{tpu_custom_call.1} parent=5 // pred_region
      %s210 = ssub.s32 %s10, 1
      %p211 = scmp.lt.s32.totalorder %s22, 1
      %s212 = scalar_select %p211, %s22, 1
      %p213 = scmp.lt.s32.totalorder %s20, 0
      %s214 = scalar_select %p213, %s20, 0
      %p215 = scmp.lt.s32.totalorder %s21, 1
      %s216 = scalar_select %p215, %s21, 1
      %s217 = smul.addr %s216, 90
      %s218 = smul.addr %s214, 180
      %s219 = sadd.s32 %s217, %s218
      %s220 = smul.addr %s212, 180
      %s221 = sadd.s32 %s219, %s220
      %s222 = smul.addr %s221, 4
      %s223 = scalar_lea.vmem %s0, %s222
      %p224 = pneg %p59
      %p225 = pneg %p56
      %p226 = scmp.lt.s32.totalorder %s22, 1
      %s227 = scalar_select %p226, %s22, 1
      %s228 = smul.addr %s227, 18
      %s229 = smul.addr %s228, 4
      %s230 = scalar_lea.vmem %s1, %s229
      %p231 = pneg %p85
      %p232 = pneg %p82
      %p233 = pneg %p106
      %p234 = pneg %p103
      %p235 = pneg %p127
      %p236 = pneg %p124
      %p237 = pneg %p155
      %p238 = pneg %p152
      %s239 = smul.u32 16, %s21
      %p240 = scmp.lt.s32.totalorder %s20, 0
      %s241 = scalar_select %p240, %s20, 0
      %p242 = scmp.lt.s32.totalorder %s239, 31
      %s243 = scalar_select %p242, %s239, 31
      %s244 = smul.addr %s243, 4
      %s245 = smul.addr %s241, 128
      %s246 = sadd.s32 %s244, %s245
      %s247 = smul.addr %s246, 4
      %s248 = scalar_lea.vmem %s4, %s247
      %p249 = scmp.lt.s32.totalorder %s22, 1
      %s250 = scalar_select %p249, %s22, 1
      %p251 = scmp.lt.s32.totalorder %s20, 0
      %s252 = scalar_select %p251, %s20, 0
      %p253 = scmp.lt.s32.totalorder %s21, 1
      %s254 = scalar_select %p253, %s21, 1
      %s255 = smul.addr %s254, 90
      %s256 = smul.addr %s252, 180
      %s257 = sadd.s32 %s255, %s256
      %s258 = smul.addr %s250, 180
      %s259 = sadd.s32 %s257, %s258
      %s260 = smul.addr %s259, 4
      %s261 = scalar_lea.vmem %s0, %s260
      %p262 = scmp.lt.s32.totalorder %s22, 1
      %s263 = scalar_select %p262, %s22, 1
      %s264 = smul.addr %s263, 18
      %s265 = smul.addr %s264, 4
      %s266 = scalar_lea.vmem %s1, %s265
      %s267 = smul.u32 16, %s21
      %p268 = scmp.lt.s32.totalorder %s20, 0
      %s269 = scalar_select %p268, %s20, 0
      %p270 = scmp.lt.s32.totalorder %s267, 31
      %s271 = scalar_select %p270, %s267, 31
      %s272 = smul.addr %s271, 4
      %s273 = smul.addr %s269, 128
      %s274 = sadd.s32 %s272, %s273
      %s275 = smul.addr %s274, 4
      %s276 = scalar_lea.vmem %s4, %s275
      %s277 = smul.u32 16, %s21
      %p279 = scmp.eq.s32.totalorder %s22, 0
      // Predicated region
      $region37: #{tpu_custom_call.1} parent=35 // pred_check
        %p280 = pneg %p279
      $region38: #{tpu_custom_call.1} parent=35 // pred_check_branch
        %282 = sbr.rel (%p280) target = $region40
      $region39: #{tpu_custom_call.1} parent=35 // pred_region
        %vm283 = vcmask 195584
        %284 = vst.msk [vmem:[#allocation2] sm:$0xff] %vm283, 0.0
        %285 = vst.msk [vmem:[#allocation2 + $0x8] sm:$0xff] %vm283, 0.0
        %286 = vst.msk [vmem:[#allocation2 + $0x10] sm:$0xff] %vm283, 0.0
        %287 = vst.msk [vmem:[#allocation2 + $0x18] sm:$0xff] %vm283, 0.0
        %288 = vst.msk [vmem:[#allocation2 + $0x20] sm:$0xff] %vm283, 0.0
        %289 = vst.msk [vmem:[#allocation2 + $0x28] sm:$0xff] %vm283, 0.0
        %290 = vst.msk [vmem:[#allocation2 + $0x30] sm:$0xff] %vm283, 0.0
        %291 = vst.msk [vmem:[#allocation2 + $0x38] sm:$0xff] %vm283, 0.0
        %292 = vst.msk [vmem:[#allocation2 + $0x40] sm:$0xff] %vm283, 0.0
        %293 = vst.msk [vmem:[#allocation2 + $0x48] sm:$0xff] %vm283, 0.0
        %294 = vst.msk [vmem:[#allocation2 + $0x50] sm:$0xff] %vm283, 0.0
        %295 = vst.msk [vmem:[#allocation2 + $0x58] sm:$0xff] %vm283, 0.0
        %296 = vst.msk [vmem:[#allocation2 + $0x60] sm:$0xff] %vm283, 0.0
        %297 = vst.msk [vmem:[#allocation2 + $0x68] sm:$0xff] %vm283, 0.0
        %298 = vst.msk [vmem:[#allocation2 + $0x70] sm:$0xff] %vm283, 0.0
        %299 = vst.msk [vmem:[#allocation2 + $0x78] sm:$0xff] %vm283, 0.0
        %300 = vst.msk [vmem:[#allocation2 + $0x80] sm:$0xff] %vm283, 0.0
        %301 = vst.msk [vmem:[#allocation2 + $0x88] sm:$0xff] %vm283, 0.0
        %302 = vst.msk [vmem:[#allocation2 + $0x90] sm:$0xff] %vm283, 0.0
        %303 = vst.msk [vmem:[#allocation2 + $0x98] sm:$0xff] %vm283, 0.0
        %304 = vst.msk [vmem:[#allocation2 + $0xa0] sm:$0xff] %vm283, 0.0
        %305 = vst.msk [vmem:[#allocation2 + $0xa8] sm:$0xff] %vm283, 0.0
        %306 = vst.msk [vmem:[#allocation2 + $0xb0] sm:$0xff] %vm283, 0.0
        %307 = vst.msk [vmem:[#allocation2 + $0xb8] sm:$0xff] %vm283, 0.0
        %308 = vst.msk [vmem:[#allocation2 + $0xc0] sm:$0xff] %vm283, 0.0
        %309 = vst.msk [vmem:[#allocation2 + $0xc8] sm:$0xff] %vm283, 0.0
        %310 = vst.msk [vmem:[#allocation2 + $0xd0] sm:$0xff] %vm283, 0.0
        %311 = vst.msk [vmem:[#allocation2 + $0xd8] sm:$0xff] %vm283, 0.0
        %312 = vst.msk [vmem:[#allocation2 + $0xe0] sm:$0xff] %vm283, 0.0
        %313 = vst.msk [vmem:[#allocation2 + $0xe8] sm:$0xff] %vm283, 0.0
        %314 = vst.msk [vmem:[#allocation2 + $0xf0] sm:$0xff] %vm283, 0.0
        %315 = vst.msk [vmem:[#allocation2 + $0xf8] sm:$0xff] %vm283, 0.0
        %316 = vst.msk [vmem:[#allocation2 + $0x100] sm:$0xff] %vm283, 0.0
        %317 = vst.msk [vmem:[#allocation2 + $0x108] sm:$0xff] %vm283, 0.0
        %318 = vst.msk [vmem:[#allocation2 + $0x110] sm:$0xff] %vm283, 0.0
        %319 = vst.msk [vmem:[#allocation2 + $0x118] sm:$0xff] %vm283, 0.0
        %320 = vst.msk [vmem:[#allocation2 + $0x120] sm:$0xff] %vm283, 0.0
        %321 = vst.msk [vmem:[#allocation2 + $0x128] sm:$0xff] %vm283, 0.0
        %322 = vst.msk [vmem:[#allocation2 + $0x130] sm:$0xff] %vm283, 0.0
        %323 = vst.msk [vmem:[#allocation2 + $0x138] sm:$0xff] %vm283, 0.0
        %324 = vst.msk [vmem:[#allocation2 + $0x140] sm:$0xff] %vm283, 0.0
        %325 = vst.msk [vmem:[#allocation2 + $0x148] sm:$0xff] %vm283, 0.0
        %326 = vst.msk [vmem:[#allocation2 + $0x150] sm:$0xff] %vm283, 0.0
        %327 = vst.msk [vmem:[#allocation2 + $0x158] sm:$0xff] %vm283, 0.0
        %328 = vst.msk [vmem:[#allocation2 + $0x160] sm:$0xff] %vm283, 0.0
        %329 = vst.msk [vmem:[#allocation2 + $0x168] sm:$0xff] %vm283, 0.0
        %330 = vst.msk [vmem:[#allocation2 + $0x170] sm:$0xff] %vm283, 0.0
        %331 = vst.msk [vmem:[#allocation2 + $0x178] sm:$0xff] %vm283, 0.0
        %332 = vst.msk [vmem:[#allocation2 + $0x180] sm:$0xff] %vm283, 0.0
        %333 = vst.msk [vmem:[#allocation2 + $0x188] sm:$0xff] %vm283, 0.0
        %334 = vst.msk [vmem:[#allocation2 + $0x190] sm:$0xff] %vm283, 0.0
        %335 = vst.msk [vmem:[#allocation2 + $0x198] sm:$0xff] %vm283, 0.0
        %336 = vst.msk [vmem:[#allocation2 + $0x1a0] sm:$0xff] %vm283, 0.0
        %337 = vst.msk [vmem:[#allocation2 + $0x1a8] sm:$0xff] %vm283, 0.0
        %338 = vst.msk [vmem:[#allocation2 + $0x1b0] sm:$0xff] %vm283, 0.0
        %339 = vst.msk [vmem:[#allocation2 + $0x1b8] sm:$0xff] %vm283, 0.0
        %340 = vst.msk [vmem:[#allocation2 + $0x1c0] sm:$0xff] %vm283, 0.0
        %341 = vst.msk [vmem:[#allocation2 + $0x1c8] sm:$0xff] %vm283, 0.0
        %342 = vst.msk [vmem:[#allocation2 + $0x1d0] sm:$0xff] %vm283, 0.0
        %343 = vst.msk [vmem:[#allocation2 + $0x1d8] sm:$0xff] %vm283, 0.0
        %344 = vst.msk [vmem:[#allocation2 + $0x1e0] sm:$0xff] %vm283, 0.0
        %345 = vst.msk [vmem:[#allocation2 + $0x1e8] sm:$0xff] %vm283, 0.0
        %346 = vst.msk [vmem:[#allocation2 + $0x1f0] sm:$0xff] %vm283, 0.0
        %347 = vst.msk [vmem:[#allocation2 + $0x1f8] sm:$0xff] %vm283, 0.0
      $region40: #{tpu_custom_call.1} parent=35 // pred_fallthru
        _
      %v348 = vld [vmem:[%s261] sm:$0xf]
      %v349 = vld [vmem:[%s261 + $0x4] sm:$0xf]
      %v350 = vld [vmem:[%s261 + $0x8] sm:$0xf]
      %v351 = vld [vmem:[%s261 + $0xc] sm:$0xf]
      %v352 = vld [vmem:[%s261 + $0x10] sm:$0x1]
      %v353 = vld [vmem:[%s261 + $0x14] sm:$0xf]
      %v354 = vld [vmem:[%s261 + $0x18] sm:$0xf]
      %v355 = vld [vmem:[%s261 + $0x1c] sm:$0xf]
      %v356 = vld [vmem:[%s261 + $0x20] sm:$0xf]
      %v357 = vld [vmem:[%s261 + $0x24] sm:$0x1]
      %v358 = vld [vmem:[%s261 + $0x28] sm:$0xf]
      %v359 = vld [vmem:[%s261 + $0x2c] sm:$0xf]
      %v360 = vld [vmem:[%s261 + $0x30] sm:$0xf]
      %v361 = vld [vmem:[%s261 + $0x34] sm:$0xf]
      %v362 = vld [vmem:[%s261 + $0x38] sm:$0x1]
      %v363 = vld [vmem:[%s261 + $0x3c] sm:$0xf]
      %v364 = vld [vmem:[%s261 + $0x40] sm:$0xf]
      %v365 = vld [vmem:[%s261 + $0x44] sm:$0xf]
      %v366 = vld [vmem:[%s261 + $0x48] sm:$0xf]
      %v367 = vld [vmem:[%s261 + $0x4c] sm:$0x1]
      %v368 = vld [vmem:[%s261 + $0x50] sm:$0xf]
      %v369 = vld [vmem:[%s261 + $0x54] sm:$0xf]
      %v370 = vld [vmem:[%s261 + $0x58] sm:$0xf]
      %v371 = vld [vmem:[%s261 + $0x5c] sm:$0xf]
      %v372 = vld [vmem:[%s261 + $0x60] sm:$0x1]
      %v373 = vld [vmem:[%s261 + $0x64] sm:$0xf]
      %v374 = vld [vmem:[%s261 + $0x68] sm:$0xf]
      %v375 = vld [vmem:[%s261 + $0x6c] sm:$0xf]
      %v376 = vld [vmem:[%s261 + $0x70] sm:$0xf]
      %v377 = vld [vmem:[%s261 + $0x74] sm:$0x1]
      %v378 = vld [vmem:[%s261 + $0x78] sm:$0xf]
      %v379 = vld [vmem:[%s261 + $0x7c] sm:$0xf]
      %v380 = vld [vmem:[%s261 + $0x80] sm:$0xf]
      %v381 = vld [vmem:[%s261 + $0x84] sm:$0xf]
      %v382 = vld [vmem:[%s261 + $0x88] sm:$0x1]
      %v383 = vld [vmem:[%s261 + $0x8c] sm:$0xf]
      %v384 = vld [vmem:[%s261 + $0x90] sm:$0xf]
      %v385 = vld [vmem:[%s261 + $0x94] sm:$0xf]
      %v386 = vld [vmem:[%s261 + $0x98] sm:$0xf]
      %v387 = vld [vmem:[%s261 + $0x9c] sm:$0x1]
      %v388 = vld [vmem:[%s261 + $0xa0] sm:$0xf]
      %v389 = vld [vmem:[%s261 + $0xa4] sm:$0xf]
      %v390 = vld [vmem:[%s261 + $0xa8] sm:$0xf]
      %v391 = vld [vmem:[%s261 + $0xac] sm:$0xf]
      %v392 = vld [vmem:[%s261 + $0xb0] sm:$0x1]
      %v393 = vld [vmem:[%s261 + $0xb4] sm:$0xf]
      %v394 = vld [vmem:[%s261 + $0xb8] sm:$0xf]
      %v395 = vld [vmem:[%s261 + $0xbc] sm:$0xf]
      %v396 = vld [vmem:[%s261 + $0xc0] sm:$0xf]
      %v397 = vld [vmem:[%s261 + $0xc4] sm:$0x1]
      %v398 = vld [vmem:[%s261 + $0xc8] sm:$0xf]
      %v399 = vld [vmem:[%s261 + $0xcc] sm:$0xf]
      %v400 = vld [vmem:[%s261 + $0xd0] sm:$0xf]
      %v401 = vld [vmem:[%s261 + $0xd4] sm:$0xf]
      %v402 = vld [vmem:[%s261 + $0xd8] sm:$0x1]
      %v403 = vld [vmem:[%s261 + $0xdc] sm:$0xf]
      %v404 = vld [vmem:[%s261 + $0xe0] sm:$0xf]
      %v405 = vld [vmem:[%s261 + $0xe4] sm:$0xf]
      %v406 = vld [vmem:[%s261 + $0xe8] sm:$0xf]
      %v407 = vld [vmem:[%s261 + $0xec] sm:$0x1]
      %v408 = vld [vmem:[%s261 + $0xf0] sm:$0xf]
      %v409 = vld [vmem:[%s261 + $0xf4] sm:$0xf]
      %v410 = vld [vmem:[%s261 + $0xf8] sm:$0xf]
      %v411 = vld [vmem:[%s261 + $0xfc] sm:$0xf]
      %v412 = vld [vmem:[%s261 + $0x100] sm:$0x1]
      %v413 = vld [vmem:[%s261 + $0x104] sm:$0xf]
      %v414 = vld [vmem:[%s261 + $0x108] sm:$0xf]
      %v415 = vld [vmem:[%s261 + $0x10c] sm:$0xf]
      %v416 = vld [vmem:[%s261 + $0x110] sm:$0xf]
      %v417 = vld [vmem:[%s261 + $0x114] sm:$0x1]
      %v418 = vld [vmem:[%s261 + $0x118] sm:$0xf]
      %v419 = vld [vmem:[%s261 + $0x11c] sm:$0xf]
      %v420 = vld [vmem:[%s261 + $0x120] sm:$0xf]
      %v421 = vld [vmem:[%s261 + $0x124] sm:$0xf]
      %v422 = vld [vmem:[%s261 + $0x128] sm:$0x1]
      %v423 = vld [vmem:[%s261 + $0x12c] sm:$0xf]
      %v424 = vld [vmem:[%s261 + $0x130] sm:$0xf]
      %v425 = vld [vmem:[%s261 + $0x134] sm:$0xf]
      %v426 = vld [vmem:[%s261 + $0x138] sm:$0xf]
      %v427 = vld [vmem:[%s261 + $0x13c] sm:$0x1]
      %v428 = vld [vmem:[%s261 + $0x140] sm:$0xf]
      %v429 = vld [vmem:[%s261 + $0x144] sm:$0xf]
      %v430 = vld [vmem:[%s261 + $0x148] sm:$0xf]
      %v431 = vld [vmem:[%s261 + $0x14c] sm:$0xf]
      %v432 = vld [vmem:[%s261 + $0x150] sm:$0x1]
      %v433 = vld [vmem:[%s261 + $0x154] sm:$0xf]
      %v434 = vld [vmem:[%s261 + $0x158] sm:$0xf]
      %v435 = vld [vmem:[%s261 + $0x15c] sm:$0xf]
      %v436 = vld [vmem:[%s261 + $0x160] sm:$0xf]
      %v437 = vld [vmem:[%s261 + $0x164] sm:$0x1]
      %v502 = vunpack.c.l.b16 %v348
      %v503 = vunpack.c.l.b16 %v349
      %v504 = vunpack.c.l.b16 %v350
      %v505 = vunpack.c.l.b16 %v351
      %v506 = vunpack.c.l.b16 %v353
      %v507 = vunpack.c.l.b16 %v354
      %v508 = vunpack.c.l.b16 %v355
      %v509 = vunpack.c.l.b16 %v356
      %v510 = vunpack.c.l.b16 %v358
      %v511 = vunpack.c.l.b16 %v359
      %v512 = vunpack.c.l.b16 %v360
      %v513 = vunpack.c.l.b16 %v361
      %v514 = vunpack.c.l.b16 %v363
      %v515 = vunpack.c.l.b16 %v364
      %v516 = vunpack.c.l.b16 %v365
      %v517 = vunpack.c.l.b16 %v366
      %v518 = vunpack.c.l.b16 %v368
      %v519 = vunpack.c.l.b16 %v369
      %v520 = vunpack.c.l.b16 %v370
      %v521 = vunpack.c.l.b16 %v371
      %v522 = vunpack.c.l.b16 %v373
      %v523 = vunpack.c.l.b16 %v374
      %v524 = vunpack.c.l.b16 %v375
      %v525 = vunpack.c.l.b16 %v376
      %v526 = vunpack.c.l.b16 %v378
      %v527 = vunpack.c.l.b16 %v379
      %v528 = vunpack.c.l.b16 %v380
      %v529 = vunpack.c.l.b16 %v381
      %v530 = vunpack.c.l.b16 %v383
      %v531 = vunpack.c.l.b16 %v384
      %v532 = vunpack.c.l.b16 %v385
      %v533 = vunpack.c.l.b16 %v386
      %v534 = vunpack.c.l.b16 %v388
      %v535 = vunpack.c.l.b16 %v389
      %v536 = vunpack.c.l.b16 %v390
      %v537 = vunpack.c.l.b16 %v391
      %v538 = vunpack.c.l.b16 %v393
      %v539 = vunpack.c.l.b16 %v394
      %v540 = vunpack.c.l.b16 %v395
      %v541 = vunpack.c.l.b16 %v396
      %v542 = vunpack.c.l.b16 %v398
      %v543 = vunpack.c.l.b16 %v399
      %v544 = vunpack.c.l.b16 %v400
      %v545 = vunpack.c.l.b16 %v401
      %v546 = vunpack.c.l.b16 %v403
      %v547 = vunpack.c.l.b16 %v404
      %v548 = vunpack.c.l.b16 %v405
      %v549 = vunpack.c.l.b16 %v406
      %v550 = vunpack.c.l.b16 %v408
      %v551 = vunpack.c.l.b16 %v409
      %v552 = vunpack.c.l.b16 %v410
      %v553 = vunpack.c.l.b16 %v411
      %v554 = vunpack.c.l.b16 %v413
      %v555 = vunpack.c.l.b16 %v414
      %v556 = vunpack.c.l.b16 %v415
      %v557 = vunpack.c.l.b16 %v416
      %v558 = vunpack.c.l.b16 %v418
      %v559 = vunpack.c.l.b16 %v419
      %v560 = vunpack.c.l.b16 %v420
      %v561 = vunpack.c.l.b16 %v421
      %v562 = vunpack.c.l.b16 %v423
      %v563 = vunpack.c.l.b16 %v424
      %v564 = vunpack.c.l.b16 %v425
      %v565 = vunpack.c.l.b16 %v426
      %v566 = vpack.c.b16 %v503, %v502
      %v567 = vpack.c.b16 %v505, %v504
      %v568 = vpack.c.b16 %v507, %v506
      %v569 = vpack.c.b16 %v509, %v508
      %v570 = vpack.c.b16 %v511, %v510
      %v571 = vpack.c.b16 %v513, %v512
      %v572 = vpack.c.b16 %v515, %v514
      %v573 = vpack.c.b16 %v517, %v516
      %v574 = vpack.c.b16 %v519, %v518
      %v575 = vpack.c.b16 %v521, %v520
      %v576 = vpack.c.b16 %v523, %v522
      %v577 = vpack.c.b16 %v525, %v524
      %v578 = vpack.c.b16 %v527, %v526
      %v579 = vpack.c.b16 %v529, %v528
      %v580 = vpack.c.b16 %v531, %v530
      %v581 = vpack.c.b16 %v533, %v532
      %v582 = vpack.c.b16 %v535, %v534
      %v583 = vpack.c.b16 %v537, %v536
      %v584 = vpack.c.b16 %v539, %v538
      %v585 = vpack.c.b16 %v541, %v540
      %v586 = vpack.c.b16 %v543, %v542
      %v587 = vpack.c.b16 %v545, %v544
      %v588 = vpack.c.b16 %v547, %v546
      %v589 = vpack.c.b16 %v549, %v548
      %v590 = vpack.c.b16 %v551, %v550
      %v591 = vpack.c.b16 %v553, %v552
      %v592 = vpack.c.b16 %v555, %v554
      %v593 = vpack.c.b16 %v557, %v556
      %v594 = vpack.c.b16 %v559, %v558
      %v595 = vpack.c.b16 %v561, %v560
      %v596 = vpack.c.b16 %v563, %v562
      %v597 = vpack.c.b16 %v565, %v564
      %v614 = vunpack.c.l.b16 %v352
      %v615 = vunpack.c.l.b16 %v357
      %v616 = vunpack.c.l.b16 %v362
      %v617 = vunpack.c.l.b16 %v367
      %v618 = vunpack.c.l.b16 %v372
      %v619 = vunpack.c.l.b16 %v377
      %v620 = vunpack.c.l.b16 %v382
      %v621 = vunpack.c.l.b16 %v387
      %v622 = vunpack.c.l.b16 %v392
      %v623 = vunpack.c.l.b16 %v397
      %v624 = vunpack.c.l.b16 %v402
      %v625 = vunpack.c.l.b16 %v407
      %v626 = vunpack.c.l.b16 %v412
      %v627 = vunpack.c.l.b16 %v417
      %v628 = vunpack.c.l.b16 %v422
      %v629 = vunpack.c.l.b16 %v427
      %v630 = vpack.c.b16 %v614, %v614
      %v631 = vpack.c.b16 %v615, %v615
      %v632 = vpack.c.b16 %v616, %v616
      %v633 = vpack.c.b16 %v617, %v617
      %v634 = vpack.c.b16 %v618, %v618
      %v635 = vpack.c.b16 %v619, %v619
      %v636 = vpack.c.b16 %v620, %v620
      %v637 = vpack.c.b16 %v621, %v621
      %v638 = vpack.c.b16 %v622, %v622
      %v639 = vpack.c.b16 %v623, %v623
      %v640 = vpack.c.b16 %v624, %v624
      %v641 = vpack.c.b16 %v625, %v625
      %v642 = vpack.c.b16 %v626, %v626
      %v643 = vpack.c.b16 %v627, %v627
      %v644 = vpack.c.b16 %v628, %v628
      %v645 = vpack.c.b16 %v629, %v629
      %vm646 = vsmask.f32 7424
      %v648 = vshrl.u32 %v566, 16
      %v650 = vshll.u32 %v566, 16
      %v652 = vrot.slane %v650, 1
      %v653 = vor.u32 %v648, %v652
      %v655 = vshll.u32 %v567, 16
      %v657 = vrot.slane %v655, 1
      %v658 = vsel %vm646, %v653, %v657
      %v659 = vshrl.u32 %v567, 16
      %v661 = vor.u32 %v659, %v657
      %v663 = vshll.u32 %v630, 16
      %v665 = vrot.slane %v663, 1
      %v666 = vsel %vm646, %v661, %v665
      %v668 = vshrl.u32 %v568, 16
      %v670 = vshll.u32 %v568, 16
      %v672 = vrot.slane %v670, 1
      %v673 = vor.u32 %v668, %v672
      %v675 = vshll.u32 %v569, 16
      %v677 = vrot.slane %v675, 1
      %v678 = vsel %vm646, %v673, %v677
      %v679 = vshrl.u32 %v569, 16
      %v681 = vor.u32 %v679, %v677
      %v683 = vshll.u32 %v631, 16
      %v685 = vrot.slane %v683, 1
      %v686 = vsel %vm646, %v681, %v685
      %v688 = vshrl.u32 %v570, 16
      %v690 = vshll.u32 %v570, 16
      %v692 = vrot.slane %v690, 1
      %v693 = vor.u32 %v688, %v692
      %v695 = vshll.u32 %v571, 16
      %v697 = vrot.slane %v695, 1
      %v698 = vsel %vm646, %v693, %v697
      %v699 = vshrl.u32 %v571, 16
      %v701 = vor.u32 %v699, %v697
      %v703 = vshll.u32 %v632, 16
      %v705 = vrot.slane %v703, 1
      %v706 = vsel %vm646, %v701, %v705
      %v708 = vshrl.u32 %v572, 16
      %v710 = vshll.u32 %v572, 16
      %v712 = vrot.slane %v710, 1
      %v713 = vor.u32 %v708, %v712
      %v715 = vshll.u32 %v573, 16
      %v717 = vrot.slane %v715, 1
      %v718 = vsel %vm646, %v713, %v717
      %v719 = vshrl.u32 %v573, 16
      %v721 = vor.u32 %v719, %v717
      %v723 = vshll.u32 %v633, 16
      %v725 = vrot.slane %v723, 1
      %v726 = vsel %vm646, %v721, %v725
      %v728 = vshrl.u32 %v574, 16
      %v730 = vshll.u32 %v574, 16
      %v732 = vrot.slane %v730, 1
      %v733 = vor.u32 %v728, %v732
      %v735 = vshll.u32 %v575, 16
      %v737 = vrot.slane %v735, 1
      %v738 = vsel %vm646, %v733, %v737
      %v739 = vshrl.u32 %v575, 16
      %v741 = vor.u32 %v739, %v737
      %v743 = vshll.u32 %v634, 16
      %v745 = vrot.slane %v743, 1
      %v746 = vsel %vm646, %v741, %v745
      %v748 = vshrl.u32 %v576, 16
      %v750 = vshll.u32 %v576, 16
      %v752 = vrot.slane %v750, 1
      %v753 = vor.u32 %v748, %v752
      %v755 = vshll.u32 %v577, 16
      %v757 = vrot.slane %v755, 1
      %v758 = vsel %vm646, %v753, %v757
      %v759 = vshrl.u32 %v577, 16
      %v761 = vor.u32 %v759, %v757
      %v763 = vshll.u32 %v635, 16
      %v765 = vrot.slane %v763, 1
      %v766 = vsel %vm646, %v761, %v765
      %v768 = vshrl.u32 %v578, 16
      %v770 = vshll.u32 %v578, 16
      %v772 = vrot.slane %v770, 1
      %v773 = vor.u32 %v768, %v772
      %v775 = vshll.u32 %v579, 16
      %v777 = vrot.slane %v775, 1
      %v778 = vsel %vm646, %v773, %v777
      %v779 = vshrl.u32 %v579, 16
      %v781 = vor.u32 %v779, %v777
      %v783 = vshll.u32 %v636, 16
      %v785 = vrot.slane %v783, 1
      %v786 = vsel %vm646, %v781, %v785
      %v788 = vshrl.u32 %v580, 16
      %v790 = vshll.u32 %v580, 16
      %v792 = vrot.slane %v790, 1
      %v793 = vor.u32 %v788, %v792
      %v795 = vshll.u32 %v581, 16
      %v797 = vrot.slane %v795, 1
      %v798 = vsel %vm646, %v793, %v797
      %v799 = vshrl.u32 %v581, 16
      %v801 = vor.u32 %v799, %v797
      %v803 = vshll.u32 %v637, 16
      %v805 = vrot.slane %v803, 1
      %v806 = vsel %vm646, %v801, %v805
      %v808 = vshrl.u32 %v582, 16
      %v810 = vshll.u32 %v582, 16
      %v812 = vrot.slane %v810, 1
      %v813 = vor.u32 %v808, %v812
      %v815 = vshll.u32 %v583, 16
      %v817 = vrot.slane %v815, 1
      %v818 = vsel %vm646, %v813, %v817
      %v819 = vshrl.u32 %v583, 16
      %v821 = vor.u32 %v819, %v817
      %v823 = vshll.u32 %v638, 16
      %v825 = vrot.slane %v823, 1
      %v826 = vsel %vm646, %v821, %v825
      %v828 = vshrl.u32 %v584, 16
      %v830 = vshll.u32 %v584, 16
      %v832 = vrot.slane %v830, 1
      %v833 = vor.u32 %v828, %v832
      %v835 = vshll.u32 %v585, 16
      %v837 = vrot.slane %v835, 1
      %v838 = vsel %vm646, %v833, %v837
      %v839 = vshrl.u32 %v585, 16
      %v841 = vor.u32 %v839, %v837
      %v843 = vshll.u32 %v639, 16
      %v845 = vrot.slane %v843, 1
      %v846 = vsel %vm646, %v841, %v845
      %v848 = vshrl.u32 %v586, 16
      %v850 = vshll.u32 %v586, 16
      %v852 = vrot.slane %v850, 1
      %v853 = vor.u32 %v848, %v852
      %v855 = vshll.u32 %v587, 16
      %v857 = vrot.slane %v855, 1
      %v858 = vsel %vm646, %v853, %v857
      %v859 = vshrl.u32 %v587, 16
      %v861 = vor.u32 %v859, %v857
      %v863 = vshll.u32 %v640, 16
      %v865 = vrot.slane %v863, 1
      %v866 = vsel %vm646, %v861, %v865
      %v868 = vshrl.u32 %v588, 16
      %v870 = vshll.u32 %v588, 16
      %v872 = vrot.slane %v870, 1
      %v873 = vor.u32 %v868, %v872
      %v875 = vshll.u32 %v589, 16
      %v877 = vrot.slane %v875, 1
      %v878 = vsel %vm646, %v873, %v877
      %v879 = vshrl.u32 %v589, 16
      %v881 = vor.u32 %v879, %v877
      %v883 = vshll.u32 %v641, 16
      %v885 = vrot.slane %v883, 1
      %v886 = vsel %vm646, %v881, %v885
      %v888 = vshrl.u32 %v590, 16
      %v890 = vshll.u32 %v590, 16
      %v892 = vrot.slane %v890, 1
      %v893 = vor.u32 %v888, %v892
      %v895 = vshll.u32 %v591, 16
      %v897 = vrot.slane %v895, 1
      %v898 = vsel %vm646, %v893, %v897
      %v899 = vshrl.u32 %v591, 16
      %v901 = vor.u32 %v899, %v897
      %v903 = vshll.u32 %v642, 16
      %v905 = vrot.slane %v903, 1
      %v906 = vsel %vm646, %v901, %v905
      %v908 = vshrl.u32 %v592, 16
      %v910 = vshll.u32 %v592, 16
      %v912 = vrot.slane %v910, 1
      %v913 = vor.u32 %v908, %v912
      %v915 = vshll.u32 %v593, 16
      %v917 = vrot.slane %v915, 1
      %v918 = vsel %vm646, %v913, %v917
      %v919 = vshrl.u32 %v593, 16
      %v921 = vor.u32 %v919, %v917
      %v923 = vshll.u32 %v643, 16
      %v925 = vrot.slane %v923, 1
      %v926 = vsel %vm646, %v921, %v925
      %v928 = vshrl.u32 %v594, 16
      %v930 = vshll.u32 %v594, 16
      %v932 = vrot.slane %v930, 1
      %v933 = vor.u32 %v928, %v932
      %v935 = vshll.u32 %v595, 16
      %v937 = vrot.slane %v935, 1
      %v938 = vsel %vm646, %v933, %v937
      %v939 = vshrl.u32 %v595, 16
      %v941 = vor.u32 %v939, %v937
      %v943 = vshll.u32 %v644, 16
      %v945 = vrot.slane %v943, 1
      %v946 = vsel %vm646, %v941, %v945
      %v948 = vshrl.u32 %v596, 16
      %v950 = vshll.u32 %v596, 16
      %v952 = vrot.slane %v950, 1
      %v953 = vor.u32 %v948, %v952
      %v955 = vshll.u32 %v597, 16
      %v957 = vrot.slane %v955, 1
      %v958 = vsel %vm646, %v953, %v957
      %v959 = vshrl.u32 %v597, 16
      %v961 = vor.u32 %v959, %v957
      %v963 = vshll.u32 %v645, 16
      %v965 = vrot.slane %v963, 1
      %v966 = vsel %vm646, %v961, %v965
      %967 = vrot.lane.b32.xlu0 %v658, 16
      %v968 = vpop.permute.xlu0 %967
      %969 = vrot.lane.b32.xlu0 %v666, 16
      %v970 = vpop.permute.xlu0 %969
      %971 = vrot.lane.b32.xlu0 %v678, 16
      %v972 = vpop.permute.xlu0 %971
      %973 = vrot.lane.b32.xlu0 %v686, 16
      %v974 = vpop.permute.xlu0 %973
      %975 = vrot.lane.b32.xlu0 %v698, 16
      %v976 = vpop.permute.xlu0 %975
      %977 = vrot.lane.b32.xlu0 %v706, 16
      %v978 = vpop.permute.xlu0 %977
      %979 = vrot.lane.b32.xlu0 %v718, 16
      %v980 = vpop.permute.xlu0 %979
      %981 = vrot.lane.b32.xlu0 %v726, 16
      %v982 = vpop.permute.xlu0 %981
      %983 = vrot.lane.b32.xlu0 %v738, 16
      %v984 = vpop.permute.xlu0 %983
      %985 = vrot.lane.b32.xlu0 %v746, 16
      %v986 = vpop.permute.xlu0 %985
      %987 = vrot.lane.b32.xlu0 %v758, 16
      %v988 = vpop.permute.xlu0 %987
      %989 = vrot.lane.b32.xlu0 %v766, 16
      %v990 = vpop.permute.xlu0 %989
      %991 = vrot.lane.b32.xlu0 %v778, 16
      %v992 = vpop.permute.xlu0 %991
      %993 = vrot.lane.b32.xlu0 %v786, 16
      %v994 = vpop.permute.xlu0 %993
      %995 = vrot.lane.b32.xlu0 %v798, 16
      %v996 = vpop.permute.xlu0 %995
      %997 = vrot.lane.b32.xlu0 %v806, 16
      %v998 = vpop.permute.xlu0 %997
      %999 = vrot.lane.b32.xlu0 %v818, 16
      %v1000 = vpop.permute.xlu0 %999
      %1001 = vrot.lane.b32.xlu0 %v826, 16
      %v1002 = vpop.permute.xlu0 %1001
      %1003 = vrot.lane.b32.xlu0 %v838, 16
      %v1004 = vpop.permute.xlu0 %1003
      %1005 = vrot.lane.b32.xlu0 %v846, 16
      %v1006 = vpop.permute.xlu0 %1005
      %1007 = vrot.lane.b32.xlu0 %v858, 16
      %v1008 = vpop.permute.xlu0 %1007
      %1009 = vrot.lane.b32.xlu0 %v866, 16
      %v1010 = vpop.permute.xlu0 %1009
      %1011 = vrot.lane.b32.xlu0 %v878, 16
      %v1012 = vpop.permute.xlu0 %1011
      %1013 = vrot.lane.b32.xlu0 %v886, 16
      %v1014 = vpop.permute.xlu0 %1013
      %1015 = vrot.lane.b32.xlu0 %v898, 16
      %v1016 = vpop.permute.xlu0 %1015
      %1017 = vrot.lane.b32.xlu0 %v906, 16
      %v1018 = vpop.permute.xlu0 %1017
      %1019 = vrot.lane.b32.xlu0 %v918, 16
      %v1020 = vpop.permute.xlu0 %1019
      %1021 = vrot.lane.b32.xlu0 %v926, 16
      %v1022 = vpop.permute.xlu0 %1021
      %1023 = vrot.lane.b32.xlu0 %v938, 16
      %v1024 = vpop.permute.xlu0 %1023
      %1025 = vrot.lane.b32.xlu0 %v946, 16
      %v1026 = vpop.permute.xlu0 %1025
      %1027 = vrot.lane.b32.xlu0 %v958, 16
      %v1028 = vpop.permute.xlu0 %1027
      %1029 = vrot.lane.b32.xlu0 %v966, 16
      %v1030 = vpop.permute.xlu0 %1029
      %vm1031 = vcmask 1046528
      %v1032 = vrot.slane %v566, 1
      %v1033 = vrot.slane %v567, 1
      %v1034 = vsel %vm1031, %v1032, %v1033
      %v1035 = vrot.slane %v630, 1
      %v1036 = vsel %vm1031, %v1033, %v1035
      %v1037 = vrot.slane %v568, 1
      %v1038 = vrot.slane %v569, 1
      %v1039 = vsel %vm1031, %v1037, %v1038
      %v1040 = vrot.slane %v631, 1
      %v1041 = vsel %vm1031, %v1038, %v1040
      %v1042 = vrot.slane %v570, 1
      %v1043 = vrot.slane %v571, 1
      %v1044 = vsel %vm1031, %v1042, %v1043
      %v1045 = vrot.slane %v632, 1
      %v1046 = vsel %vm1031, %v1043, %v1045
      %v1047 = vrot.slane %v572, 1
      %v1048 = vrot.slane %v573, 1
      %v1049 = vsel %vm1031, %v1047, %v1048
      %v1050 = vrot.slane %v633, 1
      %v1051 = vsel %vm1031, %v1048, %v1050
      %v1052 = vrot.slane %v574, 1
      %v1053 = vrot.slane %v575, 1
      %v1054 = vsel %vm1031, %v1052, %v1053
      %v1055 = vrot.slane %v634, 1
      %v1056 = vsel %vm1031, %v1053, %v1055
      %v1057 = vrot.slane %v576, 1
      %v1058 = vrot.slane %v577, 1
      %v1059 = vsel %vm1031, %v1057, %v1058
      %v1060 = vrot.slane %v635, 1
      %v1061 = vsel %vm1031, %v1058, %v1060
      %v1062 = vrot.slane %v578, 1
      %v1063 = vrot.slane %v579, 1
      %v1064 = vsel %vm1031, %v1062, %v1063
      %v1065 = vrot.slane %v636, 1
      %v1066 = vsel %vm1031, %v1063, %v1065
      %v1067 = vrot.slane %v580, 1
      %v1068 = vrot.slane %v581, 1
      %v1069 = vsel %vm1031, %v1067, %v1068
      %v1070 = vrot.slane %v637, 1
      %v1071 = vsel %vm1031, %v1068, %v1070
      %v1072 = vrot.slane %v582, 1
      %v1073 = vrot.slane %v583, 1
      %v1074 = vsel %vm1031, %v1072, %v1073
      %v1075 = vrot.slane %v638, 1
      %v1076 = vsel %vm1031, %v1073, %v1075
      %v1077 = vrot.slane %v584, 1
      %v1078 = vrot.slane %v585, 1
      %v1079 = vsel %vm1031, %v1077, %v1078
      %v1080 = vrot.slane %v639, 1
      %v1081 = vsel %vm1031, %v1078, %v1080
      %v1082 = vrot.slane %v586, 1
      %v1083 = vrot.slane %v587, 1
      %v1084 = vsel %vm1031, %v1082, %v1083
      %v1085 = vrot.slane %v640, 1
      %v1086 = vsel %vm1031, %v1083, %v1085
      %v1087 = vrot.slane %v588, 1
      %v1088 = vrot.slane %v589, 1
      %v1089 = vsel %vm1031, %v1087, %v1088
      %v1090 = vrot.slane %v641, 1
      %v1091 = vsel %vm1031, %v1088, %v1090
      %v1092 = vrot.slane %v590, 1
      %v1093 = vrot.slane %v591, 1
      %v1094 = vsel %vm1031, %v1092, %v1093
      %v1095 = vrot.slane %v642, 1
      %v1096 = vsel %vm1031, %v1093, %v1095
      %v1097 = vrot.slane %v592, 1
      %v1098 = vrot.slane %v593, 1
      %v1099 = vsel %vm1031, %v1097, %v1098
      %v1100 = vrot.slane %v643, 1
      %v1101 = vsel %vm1031, %v1098, %v1100
      %v1102 = vrot.slane %v594, 1
      %v1103 = vrot.slane %v595, 1
      %v1104 = vsel %vm1031, %v1102, %v1103
      %v1105 = vrot.slane %v644, 1
      %v1106 = vsel %vm1031, %v1103, %v1105
      %v1107 = vrot.slane %v596, 1
      %v1108 = vrot.slane %v597, 1
      %v1109 = vsel %vm1031, %v1107, %v1108
      %v1110 = vrot.slane %v645, 1
      %v1111 = vsel %vm1031, %v1108, %v1110
      %1112 = vrot.lane.b32.xlu0 %v1034, 32
      %v1113 = vpop.permute.xlu0 %1112
      %1114 = vrot.lane.b32.xlu0 %v1036, 32
      %v1115 = vpop.permute.xlu0 %1114
      %1116 = vrot.lane.b32.xlu0 %v1039, 32
      %v1117 = vpop.permute.xlu0 %1116
      %1118 = vrot.lane.b32.xlu0 %v1041, 32
      %v1119 = vpop.permute.xlu0 %1118
      %1120 = vrot.lane.b32.xlu0 %v1044, 32
      %v1121 = vpop.permute.xlu0 %1120
      %1122 = vrot.lane.b32.xlu0 %v1046, 32
      %v1123 = vpop.permute.xlu0 %1122
      %1124 = vrot.lane.b32.xlu0 %v1049, 32
      %v1125 = vpop.permute.xlu0 %1124
      %1126 = vrot.lane.b32.xlu0 %v1051, 32
      %v1127 = vpop.permute.xlu0 %1126
      %1128 = vrot.lane.b32.xlu0 %v1054, 32
      %v1129 = vpop.permute.xlu0 %1128
      %1130 = vrot.lane.b32.xlu0 %v1056, 32
      %v1131 = vpop.permute.xlu0 %1130
      %1132 = vrot.lane.b32.xlu0 %v1059, 32
      %v1133 = vpop.permute.xlu0 %1132
      %1134 = vrot.lane.b32.xlu0 %v1061, 32
      %v1135 = vpop.permute.xlu0 %1134
      %1136 = vrot.lane.b32.xlu0 %v1064, 32
      %v1137 = vpop.permute.xlu0 %1136
      %1138 = vrot.lane.b32.xlu0 %v1066, 32
      %v1139 = vpop.permute.xlu0 %1138
      %1140 = vrot.lane.b32.xlu0 %v1069, 32
      %v1141 = vpop.permute.xlu0 %1140
      %1142 = vrot.lane.b32.xlu0 %v1071, 32
      %v1143 = vpop.permute.xlu0 %1142
      %1144 = vrot.lane.b32.xlu0 %v1074, 32
      %v1145 = vpop.permute.xlu0 %1144
      %1146 = vrot.lane.b32.xlu0 %v1076, 32
      %v1147 = vpop.permute.xlu0 %1146
      %1148 = vrot.lane.b32.xlu0 %v1079, 32
      %v1149 = vpop.permute.xlu0 %1148
      %1150 = vrot.lane.b32.xlu0 %v1081, 32
      %v1151 = vpop.permute.xlu0 %1150
      %1152 = vrot.lane.b32.xlu0 %v1084, 32
      %v1153 = vpop.permute.xlu0 %1152
      %1154 = vrot.lane.b32.xlu0 %v1086, 32
      %v1155 = vpop.permute.xlu0 %1154
      %1156 = vrot.lane.b32.xlu0 %v1089, 32
      %v1157 = vpop.permute.xlu0 %1156
      %1158 = vrot.lane.b32.xlu0 %v1091, 32
      %v1159 = vpop.permute.xlu0 %1158
      %1160 = vrot.lane.b32.xlu0 %v1094, 32
      %v1161 = vpop.permute.xlu0 %1160
      %1162 = vrot.lane.b32.xlu0 %v1096, 32
      %v1163 = vpop.permute.xlu0 %1162
      %1164 = vrot.lane.b32.xlu0 %v1099, 32
      %v1165 = vpop.permute.xlu0 %1164
      %1166 = vrot.lane.b32.xlu0 %v1101, 32
      %v1167 = vpop.permute.xlu0 %1166
      %1168 = vrot.lane.b32.xlu0 %v1104, 32
      %v1169 = vpop.permute.xlu0 %1168
      %1170 = vrot.lane.b32.xlu0 %v1106, 32
      %v1171 = vpop.permute.xlu0 %1170
      %1172 = vrot.lane.b32.xlu0 %v1109, 32
      %v1173 = vpop.permute.xlu0 %1172
      %1174 = vrot.lane.b32.xlu0 %v1111, 32
      %v1175 = vpop.permute.xlu0 %1174
      %vm1176 = vcmask 130048
      %v1178 = vsel %vm1176, %v566, %v968
      %v1180 = vsel %vm1176, %v567, %v970
      %v1182 = vsel %vm1176, %v568, %v972
      %v1184 = vsel %vm1176, %v569, %v974
      %v1186 = vsel %vm1176, %v570, %v976
      %v1188 = vsel %vm1176, %v571, %v978
      %v1190 = vsel %vm1176, %v572, %v980
      %v1192 = vsel %vm1176, %v573, %v982
      %v1194 = vsel %vm1176, %v574, %v984
      %v1196 = vsel %vm1176, %v575, %v986
      %v1198 = vsel %vm1176, %v576, %v988
      %v1200 = vsel %vm1176, %v577, %v990
      %v1202 = vsel %vm1176, %v578, %v992
      %v1204 = vsel %vm1176, %v579, %v994
      %v1206 = vsel %vm1176, %v580, %v996
      %v1208 = vsel %vm1176, %v581, %v998
      %v1210 = vsel %vm1176, %v582, %v1000
      %v1212 = vsel %vm1176, %v583, %v1002
      %v1214 = vsel %vm1176, %v584, %v1004
      %v1216 = vsel %vm1176, %v585, %v1006
      %v1218 = vsel %vm1176, %v586, %v1008
      %v1220 = vsel %vm1176, %v587, %v1010
      %v1222 = vsel %vm1176, %v588, %v1012
      %v1224 = vsel %vm1176, %v589, %v1014
      %v1226 = vsel %vm1176, %v590, %v1016
      %v1228 = vsel %vm1176, %v591, %v1018
      %v1230 = vsel %vm1176, %v592, %v1020
      %v1232 = vsel %vm1176, %v593, %v1022
      %v1234 = vsel %vm1176, %v594, %v1024
      %v1236 = vsel %vm1176, %v595, %v1026
      %v1238 = vsel %vm1176, %v596, %v1028
      %v1240 = vsel %vm1176, %v597, %v1030
      %vm1241 = vcmask 261120
      %v1243 = vsel %vm1241, %v1178, %v1113
      %v1245 = vsel %vm1241, %v1180, %v1115
      %v1247 = vsel %vm1241, %v1182, %v1117
      %v1249 = vsel %vm1241, %v1184, %v1119
      %v1251 = vsel %vm1241, %v1186, %v1121
      %v1253 = vsel %vm1241, %v1188, %v1123
      %v1255 = vsel %vm1241, %v1190, %v1125
      %v1257 = vsel %vm1241, %v1192, %v1127
      %v1259 = vsel %vm1241, %v1194, %v1129
      %v1261 = vsel %vm1241, %v1196, %v1131
      %v1263 = vsel %vm1241, %v1198, %v1133
      %v1265 = vsel %vm1241, %v1200, %v1135
      %v1267 = vsel %vm1241, %v1202, %v1137
      %v1269 = vsel %vm1241, %v1204, %v1139
      %v1271 = vsel %vm1241, %v1206, %v1141
      %v1273 = vsel %vm1241, %v1208, %v1143
      %v1275 = vsel %vm1241, %v1210, %v1145
      %v1277 = vsel %vm1241, %v1212, %v1147
      %v1279 = vsel %vm1241, %v1214, %v1149
      %v1281 = vsel %vm1241, %v1216, %v1151
      %v1283 = vsel %vm1241, %v1218, %v1153
      %v1285 = vsel %vm1241, %v1220, %v1155
      %v1287 = vsel %vm1241, %v1222, %v1157
      %v1289 = vsel %vm1241, %v1224, %v1159
      %v1291 = vsel %vm1241, %v1226, %v1161
      %v1293 = vsel %vm1241, %v1228, %v1163
      %v1295 = vsel %vm1241, %v1230, %v1165
      %v1297 = vsel %vm1241, %v1232, %v1167
      %v1299 = vsel %vm1241, %v1234, %v1169
      %v1301 = vsel %vm1241, %v1236, %v1171
      %v1303 = vsel %vm1241, %v1238, %v1173
      %v1305 = vsel %vm1241, %v1240, %v1175
      %v1306 = vld [vmem:[#allocation2] sm:$0xff]
      %v1307 = vld [vmem:[#allocation2 + $0x8] sm:$0xff]
      %v1308 = vld [vmem:[#allocation2 + $0x10] sm:$0xff]
      %v1309 = vld [vmem:[#allocation2 + $0x18] sm:$0xff]
      %v1310 = vld [vmem:[#allocation2 + $0x20] sm:$0xff]
      %v1311 = vld [vmem:[#allocation2 + $0x28] sm:$0xff]
      %v1312 = vld [vmem:[#allocation2 + $0x30] sm:$0xff]
      %v1313 = vld [vmem:[#allocation2 + $0x38] sm:$0xff]
      %v1314 = vld [vmem:[#allocation2 + $0x40] sm:$0xff]
      %v1315 = vld [vmem:[#allocation2 + $0x48] sm:$0xff]
      %v1316 = vld [vmem:[#allocation2 + $0x50] sm:$0xff]
      %v1317 = vld [vmem:[#allocation2 + $0x58] sm:$0xff]
      %v1318 = vld [vmem:[#allocation2 + $0x60] sm:$0xff]
      %v1319 = vld [vmem:[#allocation2 + $0x68] sm:$0xff]
      %v1320 = vld [vmem:[#allocation2 + $0x70] sm:$0xff]
      %v1321 = vld [vmem:[#allocation2 + $0x78] sm:$0xff]
      %v1322 = vld [vmem:[#allocation2 + $0x80] sm:$0xff]
      %v1323 = vld [vmem:[#allocation2 + $0x88] sm:$0xff]
      %v1324 = vld [vmem:[#allocation2 + $0x90] sm:$0xff]
      %v1325 = vld [vmem:[#allocation2 + $0x98] sm:$0xff]
      %v1326 = vld [vmem:[#allocation2 + $0xa0] sm:$0xff]
      %v1327 = vld [vmem:[#allocation2 + $0xa8] sm:$0xff]
      %v1328 = vld [vmem:[#allocation2 + $0xb0] sm:$0xff]
      %v1329 = vld [vmem:[#allocation2 + $0xb8] sm:$0xff]
      %v1330 = vld [vmem:[#allocation2 + $0xc0] sm:$0xff]
      %v1331 = vld [vmem:[#allocation2 + $0xc8] sm:$0xff]
      %v1332 = vld [vmem:[#allocation2 + $0xd0] sm:$0xff]
      %v1333 = vld [vmem:[#allocation2 + $0xd8] sm:$0xff]
      %v1334 = vld [vmem:[#allocation2 + $0xe0] sm:$0xff]
      %v1335 = vld [vmem:[#allocation2 + $0xe8] sm:$0xff]
      %v1336 = vld [vmem:[#allocation2 + $0xf0] sm:$0xff]
      %v1337 = vld [vmem:[#allocation2 + $0xf8] sm:$0xff]
      %v1338 = vld [vmem:[#allocation2 + $0x100] sm:$0xff]
      %v1339 = vld [vmem:[#allocation2 + $0x108] sm:$0xff]
      %v1340 = vld [vmem:[#allocation2 + $0x110] sm:$0xff]
      %v1341 = vld [vmem:[#allocation2 + $0x118] sm:$0xff]
      %v1342 = vld [vmem:[#allocation2 + $0x120] sm:$0xff]
      %v1343 = vld [vmem:[#allocation2 + $0x128] sm:$0xff]
      %v1344 = vld [vmem:[#allocation2 + $0x130] sm:$0xff]
      %v1345 = vld [vmem:[#allocation2 + $0x138] sm:$0xff]
      %v1346 = vld [vmem:[#allocation2 + $0x140] sm:$0xff]
      %v1347 = vld [vmem:[#allocation2 + $0x148] sm:$0xff]
      %v1348 = vld [vmem:[#allocation2 + $0x150] sm:$0xff]
      %v1349 = vld [vmem:[#allocation2 + $0x158] sm:$0xff]
      %v1350 = vld [vmem:[#allocation2 + $0x160] sm:$0xff]
      %v1351 = vld [vmem:[#allocation2 + $0x168] sm:$0xff]
      %v1352 = vld [vmem:[#allocation2 + $0x170] sm:$0xff]
      %v1353 = vld [vmem:[#allocation2 + $0x178] sm:$0xff]
      %v1354 = vld [vmem:[#allocation2 + $0x180] sm:$0xff]
      %v1355 = vld [vmem:[#allocation2 + $0x188] sm:$0xff]
      %v1356 = vld [vmem:[#allocation2 + $0x190] sm:$0xff]
      %v1357 = vld [vmem:[#allocation2 + $0x198] sm:$0xff]
      %v1358 = vld [vmem:[#allocation2 + $0x1a0] sm:$0xff]
      %v1359 = vld [vmem:[#allocation2 + $0x1a8] sm:$0xff]
      %v1360 = vld [vmem:[#allocation2 + $0x1b0] sm:$0xff]
      %v1361 = vld [vmem:[#allocation2 + $0x1b8] sm:$0xff]
      %v1362 = vld [vmem:[#allocation2 + $0x1c0] sm:$0xff]
      %v1363 = vld [vmem:[#allocation2 + $0x1c8] sm:$0xff]
      %v1364 = vld [vmem:[#allocation2 + $0x1d0] sm:$0xff]
      %v1365 = vld [vmem:[#allocation2 + $0x1d8] sm:$0xff]
      %v1366 = vld [vmem:[#allocation2 + $0x1e0] sm:$0xff]
      %v1367 = vld [vmem:[#allocation2 + $0x1e8] sm:$0xff]
      %v1368 = vld [vmem:[#allocation2 + $0x1f0] sm:$0xff]
      %v1369 = vld [vmem:[#allocation2 + $0x1f8] sm:$0xff]
      %v1370 = vld [vmem:[%s266] sm:$0xf]
      %v1371 = vld [vmem:[%s266 + $0x4] sm:$0xf]
      %v1372 = vld [vmem:[%s266 + $0x8] sm:$0xf]
      %v1373 = vld [vmem:[%s266 + $0xc] sm:$0xf]
      %v1374 = vld [vmem:[%s266 + $0x10] sm:$0xf]
      %v1375 = vld [vmem:[%s266 + $0x14] sm:$0xf]
      %v1382 = vunpack.c.l.b16 %v1370
      %v1383 = vunpack.c.l.b16 %v1371
      %v1384 = vunpack.c.l.b16 %v1372
      %v1385 = vunpack.c.l.b16 %v1373
      %v1386 = vunpack.c.l.b16 %v1374
      %v1387 = vunpack.c.l.b16 %v1375
      %v1388 = vpack.c.b16 %v1383, %v1382
      %v1389 = vpack.c.b16 %v1385, %v1384
      %v1390 = vpack.c.b16 %v1387, %v1386
      %vm1394 = vcmask 392192
      %v1395 = vsel %vm1394, %v1243, 0
      %v1397 = vsel %vm1394, %v1245, 0
      %v1399 = vsel %vm1394, %v1247, 0
      %v1401 = vsel %vm1394, %v1249, 0
      %v1403 = vsel %vm1394, %v1251, 0
      %v1405 = vsel %vm1394, %v1253, 0
      %v1407 = vsel %vm1394, %v1255, 0
      %v1409 = vsel %vm1394, %v1257, 0
      %v1411 = vsel %vm1394, %v1259, 0
      %v1413 = vsel %vm1394, %v1261, 0
      %v1415 = vsel %vm1394, %v1263, 0
      %v1417 = vsel %vm1394, %v1265, 0
      %v1419 = vsel %vm1394, %v1267, 0
      %v1421 = vsel %vm1394, %v1269, 0
      %v1423 = vsel %vm1394, %v1271, 0
      %v1425 = vsel %vm1394, %v1273, 0
      %v1427 = vsel %vm1394, %v1275, 0
      %v1429 = vsel %vm1394, %v1277, 0
      %v1431 = vsel %vm1394, %v1279, 0
      %v1433 = vsel %vm1394, %v1281, 0
      %v1435 = vsel %vm1394, %v1283, 0
      %v1437 = vsel %vm1394, %v1285, 0
      %v1439 = vsel %vm1394, %v1287, 0
      %v1441 = vsel %vm1394, %v1289, 0
      %v1443 = vsel %vm1394, %v1291, 0
      %v1445 = vsel %vm1394, %v1293, 0
      %v1447 = vsel %vm1394, %v1295, 0
      %v1449 = vsel %vm1394, %v1297, 0
      %v1451 = vsel %vm1394, %v1299, 0
      %v1453 = vsel %vm1394, %v1301, 0
      %v1455 = vsel %vm1394, %v1303, 0
      %v1457 = vsel %vm1394, %v1305, 0
      %1459 = vmatpush.bf16.msra.mxu0 0
      %1460 = vmatpush.bf16.msra.mxu0 0
      %1461 = vmatpush.bf16.msra.mxu0 0
      %1462 = vmatpush.bf16.msra.mxu0 0
      %1463 = vmatpush.bf16.msra.mxu0 0
      %1464 = vmatpush.bf16.msra.mxu0 %v1390
      %1465 = vmatpush.bf16.msra.mxu0 %v1389
      %1466 = vmatpush.bf16.msra.mxu0 %v1388
      %1467 = vmatmul.bf16.gmra.mxu0 %v1395
      %v1468 = vpop.f32.mrf.mxu0
      %v1469 = vadd.f32 0.0, %v1468
      %v1470 = vpop.f32.mrf.mxu0
      %v1471 = vadd.f32 0.0, %v1470
      %1472 = vmatmul.bf16.gmra.mxu0 %v1397
      %v1473 = vpop.f32.mrf.mxu0
      %v1474 = vadd.f32 0.0, %v1473
      %v1475 = vpop.f32.mrf.mxu0
      %v1476 = vadd.f32 0.0, %v1475
      %1477 = vmatmul.bf16.gmra.mxu0 %v1399
      %v1478 = vpop.f32.mrf.mxu0
      %v1479 = vadd.f32 0.0, %v1478
      %v1480 = vpop.f32.mrf.mxu0
      %v1481 = vadd.f32 0.0, %v1480
      %1482 = vmatmul.bf16.gmra.mxu0 %v1401
      %v1483 = vpop.f32.mrf.mxu0
      %v1484 = vadd.f32 0.0, %v1483
      %v1485 = vpop.f32.mrf.mxu0
      %v1486 = vadd.f32 0.0, %v1485
      %1487 = vmatmul.bf16.gmra.mxu0 %v1403
      %v1488 = vpop.f32.mrf.mxu0
      %v1489 = vadd.f32 0.0, %v1488
      %v1490 = vpop.f32.mrf.mxu0
      %v1491 = vadd.f32 0.0, %v1490
      %1492 = vmatmul.bf16.gmra.mxu0 %v1405
      %v1493 = vpop.f32.mrf.mxu0
      %v1494 = vadd.f32 0.0, %v1493
      %v1495 = vpop.f32.mrf.mxu0
      %v1496 = vadd.f32 0.0, %v1495
      %1497 = vmatmul.bf16.gmra.mxu0 %v1407
      %v1498 = vpop.f32.mrf.mxu0
      %v1499 = vadd.f32 0.0, %v1498
      %v1500 = vpop.f32.mrf.mxu0
      %v1501 = vadd.f32 0.0, %v1500
      %1502 = vmatmul.bf16.gmra.mxu0 %v1409
      %v1503 = vpop.f32.mrf.mxu0
      %v1504 = vadd.f32 0.0, %v1503
      %v1505 = vpop.f32.mrf.mxu0
      %v1506 = vadd.f32 0.0, %v1505
      %1507 = vmatmul.bf16.gmra.mxu0 %v1411
      %v1508 = vpop.f32.mrf.mxu0
      %v1509 = vadd.f32 0.0, %v1508
      %v1510 = vpop.f32.mrf.mxu0
      %v1511 = vadd.f32 0.0, %v1510
      %1512 = vmatmul.bf16.gmra.mxu0 %v1413
      %v1513 = vpop.f32.mrf.mxu0
      %v1514 = vadd.f32 0.0, %v1513
      %v1515 = vpop.f32.mrf.mxu0
      %v1516 = vadd.f32 0.0, %v1515
      %1517 = vmatmul.bf16.gmra.mxu0 %v1415
      %v1518 = vpop.f32.mrf.mxu0
      %v1519 = vadd.f32 0.0, %v1518
      %v1520 = vpop.f32.mrf.mxu0
      %v1521 = vadd.f32 0.0, %v1520
      %1522 = vmatmul.bf16.gmra.mxu0 %v1417
      %v1523 = vpop.f32.mrf.mxu0
      %v1524 = vadd.f32 0.0, %v1523
      %v1525 = vpop.f32.mrf.mxu0
      %v1526 = vadd.f32 0.0, %v1525
      %1527 = vmatmul.bf16.gmra.mxu0 %v1419
      %v1528 = vpop.f32.mrf.mxu0
      %v1529 = vadd.f32 0.0, %v1528
      %v1530 = vpop.f32.mrf.mxu0
      %v1531 = vadd.f32 0.0, %v1530
      %1532 = vmatmul.bf16.gmra.mxu0 %v1421
      %v1533 = vpop.f32.mrf.mxu0
      %v1534 = vadd.f32 0.0, %v1533
      %v1535 = vpop.f32.mrf.mxu0
      %v1536 = vadd.f32 0.0, %v1535
      %1537 = vmatmul.bf16.gmra.mxu0 %v1423
      %v1538 = vpop.f32.mrf.mxu0
      %v1539 = vadd.f32 0.0, %v1538
      %v1540 = vpop.f32.mrf.mxu0
      %v1541 = vadd.f32 0.0, %v1540
      %1542 = vmatmul.bf16.gmra.mxu0 %v1425
      %v1543 = vpop.f32.mrf.mxu0
      %v1544 = vadd.f32 0.0, %v1543
      %v1545 = vpop.f32.mrf.mxu0
      %v1546 = vadd.f32 0.0, %v1545
      %1547 = vmatmul.bf16.gmra.mxu0 %v1427
      %v1548 = vpop.f32.mrf.mxu0
      %v1549 = vadd.f32 0.0, %v1548
      %v1550 = vpop.f32.mrf.mxu0
      %v1551 = vadd.f32 0.0, %v1550
      %1552 = vmatmul.bf16.gmra.mxu0 %v1429
      %v1553 = vpop.f32.mrf.mxu0
      %v1554 = vadd.f32 0.0, %v1553
      %v1555 = vpop.f32.mrf.mxu0
      %v1556 = vadd.f32 0.0, %v1555
      %1557 = vmatmul.bf16.gmra.mxu0 %v1431
      %v1558 = vpop.f32.mrf.mxu0
      %v1559 = vadd.f32 0.0, %v1558
      %v1560 = vpop.f32.mrf.mxu0
      %v1561 = vadd.f32 0.0, %v1560
      %1562 = vmatmul.bf16.gmra.mxu0 %v1433
      %v1563 = vpop.f32.mrf.mxu0
      %v1564 = vadd.f32 0.0, %v1563
      %v1565 = vpop.f32.mrf.mxu0
      %v1566 = vadd.f32 0.0, %v1565
      %1567 = vmatmul.bf16.gmra.mxu0 %v1435
      %v1568 = vpop.f32.mrf.mxu0
      %v1569 = vadd.f32 0.0, %v1568
      %v1570 = vpop.f32.mrf.mxu0
      %v1571 = vadd.f32 0.0, %v1570
      %1572 = vmatmul.bf16.gmra.mxu0 %v1437
      %v1573 = vpop.f32.mrf.mxu0
      %v1574 = vadd.f32 0.0, %v1573
      %v1575 = vpop.f32.mrf.mxu0
      %v1576 = vadd.f32 0.0, %v1575
      %1577 = vmatmul.bf16.gmra.mxu0 %v1439
      %v1578 = vpop.f32.mrf.mxu0
      %v1579 = vadd.f32 0.0, %v1578
      %v1580 = vpop.f32.mrf.mxu0
      %v1581 = vadd.f32 0.0, %v1580
      %1582 = vmatmul.bf16.gmra.mxu0 %v1441
      %v1583 = vpop.f32.mrf.mxu0
      %v1584 = vadd.f32 0.0, %v1583
      %v1585 = vpop.f32.mrf.mxu0
      %v1586 = vadd.f32 0.0, %v1585
      %1587 = vmatmul.bf16.gmra.mxu0 %v1443
      %v1588 = vpop.f32.mrf.mxu0
      %v1589 = vadd.f32 0.0, %v1588
      %v1590 = vpop.f32.mrf.mxu0
      %v1591 = vadd.f32 0.0, %v1590
      %1592 = vmatmul.bf16.gmra.mxu0 %v1445
      %v1593 = vpop.f32.mrf.mxu0
      %v1594 = vadd.f32 0.0, %v1593
      %v1595 = vpop.f32.mrf.mxu0
      %v1596 = vadd.f32 0.0, %v1595
      %1597 = vmatmul.bf16.gmra.mxu0 %v1447
      %v1598 = vpop.f32.mrf.mxu0
      %v1599 = vadd.f32 0.0, %v1598
      %v1600 = vpop.f32.mrf.mxu0
      %v1601 = vadd.f32 0.0, %v1600
      %1602 = vmatmul.bf16.gmra.mxu0 %v1449
      %v1603 = vpop.f32.mrf.mxu0
      %v1604 = vadd.f32 0.0, %v1603
      %v1605 = vpop.f32.mrf.mxu0
      %v1606 = vadd.f32 0.0, %v1605
      %1607 = vmatmul.bf16.gmra.mxu0 %v1451
      %v1608 = vpop.f32.mrf.mxu0
      %v1609 = vadd.f32 0.0, %v1608
      %v1610 = vpop.f32.mrf.mxu0
      %v1611 = vadd.f32 0.0, %v1610
      %1612 = vmatmul.bf16.gmra.mxu0 %v1453
      %v1613 = vpop.f32.mrf.mxu0
      %v1614 = vadd.f32 0.0, %v1613
      %v1615 = vpop.f32.mrf.mxu0
      %v1616 = vadd.f32 0.0, %v1615
      %1617 = vmatmul.bf16.gmra.mxu0 %v1455
      %v1618 = vpop.f32.mrf.mxu0
      %v1619 = vadd.f32 0.0, %v1618
      %v1620 = vpop.f32.mrf.mxu0
      %v1621 = vadd.f32 0.0, %v1620
      %1622 = vmatmul.bf16.gmra.mxu0 %v1457
      %v1623 = vpop.f32.mrf.mxu0
      %v1624 = vadd.f32 0.0, %v1623
      %v1625 = vpop.f32.mrf.mxu0
      %v1626 = vadd.f32 0.0, %v1625
      %1627 = vdwg.mxu0
      %v1628 = vadd.f32 %v1306, %v1469
      %v1629 = vadd.f32 %v1307, %v1471
      %v1630 = vadd.f32 %v1308, %v1474
      %v1631 = vadd.f32 %v1309, %v1476
      %v1632 = vadd.f32 %v1310, %v1479
      %v1633 = vadd.f32 %v1311, %v1481
      %v1634 = vadd.f32 %v1312, %v1484
      %v1635 = vadd.f32 %v1313, %v1486
      %v1636 = vadd.f32 %v1314, %v1489
      %v1637 = vadd.f32 %v1315, %v1491
      %v1638 = vadd.f32 %v1316, %v1494
      %v1639 = vadd.f32 %v1317, %v1496
      %v1640 = vadd.f32 %v1318, %v1499
      %v1641 = vadd.f32 %v1319, %v1501
      %v1642 = vadd.f32 %v1320, %v1504
      %v1643 = vadd.f32 %v1321, %v1506
      %v1644 = vadd.f32 %v1322, %v1509
      %v1645 = vadd.f32 %v1323, %v1511
      %v1646 = vadd.f32 %v1324, %v1514
      %v1647 = vadd.f32 %v1325, %v1516
      %v1648 = vadd.f32 %v1326, %v1519
      %v1649 = vadd.f32 %v1327, %v1521
      %v1650 = vadd.f32 %v1328, %v1524
      %v1651 = vadd.f32 %v1329, %v1526
      %v1652 = vadd.f32 %v1330, %v1529
      %v1653 = vadd.f32 %v1331, %v1531
      %v1654 = vadd.f32 %v1332, %v1534
      %v1655 = vadd.f32 %v1333, %v1536
      %v1656 = vadd.f32 %v1334, %v1539
      %v1657 = vadd.f32 %v1335, %v1541
      %v1658 = vadd.f32 %v1336, %v1544
      %v1659 = vadd.f32 %v1337, %v1546
      %v1660 = vadd.f32 %v1338, %v1549
      %v1661 = vadd.f32 %v1339, %v1551
      %v1662 = vadd.f32 %v1340, %v1554
      %v1663 = vadd.f32 %v1341, %v1556
      %v1664 = vadd.f32 %v1342, %v1559
      %v1665 = vadd.f32 %v1343, %v1561
      %v1666 = vadd.f32 %v1344, %v1564
      %v1667 = vadd.f32 %v1345, %v1566
      %v1668 = vadd.f32 %v1346, %v1569
      %v1669 = vadd.f32 %v1347, %v1571
      %v1670 = vadd.f32 %v1348, %v1574
      %v1671 = vadd.f32 %v1349, %v1576
      %v1672 = vadd.f32 %v1350, %v1579
      %v1673 = vadd.f32 %v1351, %v1581
      %v1674 = vadd.f32 %v1352, %v1584
      %v1675 = vadd.f32 %v1353, %v1586
      %v1676 = vadd.f32 %v1354, %v1589
      %v1677 = vadd.f32 %v1355, %v1591
      %v1678 = vadd.f32 %v1356, %v1594
      %v1679 = vadd.f32 %v1357, %v1596
      %v1680 = vadd.f32 %v1358, %v1599
      %v1681 = vadd.f32 %v1359, %v1601
      %v1682 = vadd.f32 %v1360, %v1604
      %v1683 = vadd.f32 %v1361, %v1606
      %v1684 = vadd.f32 %v1362, %v1609
      %v1685 = vadd.f32 %v1363, %v1611
      %v1686 = vadd.f32 %v1364, %v1614
      %v1687 = vadd.f32 %v1365, %v1616
      %v1688 = vadd.f32 %v1366, %v1619
      %v1689 = vadd.f32 %v1367, %v1621
      %v1690 = vadd.f32 %v1368, %v1624
      %v1691 = vadd.f32 %v1369, %v1626
      %vm1692 = vcmask 195584
      %1693 = vst.msk [vmem:[#allocation2] sm:$0xff] %vm1692, %v1628
      %1694 = vst.msk [vmem:[#allocation2 + $0x8] sm:$0xff] %vm1692, %v1629
      %1695 = vst.msk [vmem:[#allocation2 + $0x10] sm:$0xff] %vm1692, %v1630
      %1696 = vst.msk [vmem:[#allocation2 + $0x18] sm:$0xff] %vm1692, %v1631
      %1697 = vst.msk [vmem:[#allocation2 + $0x20] sm:$0xff] %vm1692, %v1632
      %1698 = vst.msk [vmem:[#allocation2 + $0x28] sm:$0xff] %vm1692, %v1633
      %1699 = vst.msk [vmem:[#allocation2 + $0x30] sm:$0xff] %vm1692, %v1634
      %1700 = vst.msk [vmem:[#allocation2 + $0x38] sm:$0xff] %vm1692, %v1635
      %1701 = vst.msk [vmem:[#allocation2 + $0x40] sm:$0xff] %vm1692, %v1636
      %1702 = vst.msk [vmem:[#allocation2 + $0x48] sm:$0xff] %vm1692, %v1637
      %1703 = vst.msk [vmem:[#allocation2 + $0x50] sm:$0xff] %vm1692, %v1638
      %1704 = vst.msk [vmem:[#allocation2 + $0x58] sm:$0xff] %vm1692, %v1639
      %1705 = vst.msk [vmem:[#allocation2 + $0x60] sm:$0xff] %vm1692, %v1640
      %1706 = vst.msk [vmem:[#allocation2 + $0x68] sm:$0xff] %vm1692, %v1641
      %1707 = vst.msk [vmem:[#allocation2 + $0x70] sm:$0xff] %vm1692, %v1642
      %1708 = vst.msk [vmem:[#allocation2 + $0x78] sm:$0xff] %vm1692, %v1643
      %1709 = vst.msk [vmem:[#allocation2 + $0x80] sm:$0xff] %vm1692, %v1644
      %1710 = vst.msk [vmem:[#allocation2 + $0x88] sm:$0xff] %vm1692, %v1645
      %1711 = vst.msk [vmem:[#allocation2 + $0x90] sm:$0xff] %vm1692, %v1646
      %1712 = vst.msk [vmem:[#allocation2 + $0x98] sm:$0xff] %vm1692, %v1647
      %1713 = vst.msk [vmem:[#allocation2 + $0xa0] sm:$0xff] %vm1692, %v1648
      %1714 = vst.msk [vmem:[#allocation2 + $0xa8] sm:$0xff] %vm1692, %v1649
      %1715 = vst.msk [vmem:[#allocation2 + $0xb0] sm:$0xff] %vm1692, %v1650
      %1716 = vst.msk [vmem:[#allocation2 + $0xb8] sm:$0xff] %vm1692, %v1651
      %1717 = vst.msk [vmem:[#allocation2 + $0xc0] sm:$0xff] %vm1692, %v1652
      %1718 = vst.msk [vmem:[#allocation2 + $0xc8] sm:$0xff] %vm1692, %v1653
      %1719 = vst.msk [vmem:[#allocation2 + $0xd0] sm:$0xff] %vm1692, %v1654
      %1720 = vst.msk [vmem:[#allocation2 + $0xd8] sm:$0xff] %vm1692, %v1655
      %1721 = vst.msk [vmem:[#allocation2 + $0xe0] sm:$0xff] %vm1692, %v1656
      %1722 = vst.msk [vmem:[#allocation2 + $0xe8] sm:$0xff] %vm1692, %v1657
      %1723 = vst.msk [vmem:[#allocation2 + $0xf0] sm:$0xff] %vm1692, %v1658
      %1724 = vst.msk [vmem:[#allocation2 + $0xf8] sm:$0xff] %vm1692, %v1659
      %1725 = vst.msk [vmem:[#allocation2 + $0x100] sm:$0xff] %vm1692, %v1660
      %1726 = vst.msk [vmem:[#allocation2 + $0x108] sm:$0xff] %vm1692, %v1661
      %1727 = vst.msk [vmem:[#allocation2 + $0x110] sm:$0xff] %vm1692, %v1662
      %1728 = vst.msk [vmem:[#allocation2 + $0x118] sm:$0xff] %vm1692, %v1663
      %1729 = vst.msk [vmem:[#allocation2 + $0x120] sm:$0xff] %vm1692, %v1664
      %1730 = vst.msk [vmem:[#allocation2 + $0x128] sm:$0xff] %vm1692, %v1665
      %1731 = vst.msk [vmem:[#allocation2 + $0x130] sm:$0xff] %vm1692, %v1666
      %1732 = vst.msk [vmem:[#allocation2 + $0x138] sm:$0xff] %vm1692, %v1667
      %1733 = vst.msk [vmem:[#allocation2 + $0x140] sm:$0xff] %vm1692, %v1668
      %1734 = vst.msk [vmem:[#allocation2 + $0x148] sm:$0xff] %vm1692, %v1669
      %1735 = vst.msk [vmem:[#allocation2 + $0x150] sm:$0xff] %vm1692, %v1670
      %1736 = vst.msk [vmem:[#allocation2 + $0x158] sm:$0xff] %vm1692, %v1671
      %1737 = vst.msk [vmem:[#allocation2 + $0x160] sm:$0xff] %vm1692, %v1672
      %1738 = vst.msk [vmem:[#allocation2 + $0x168] sm:$0xff] %vm1692, %v1673
      %1739 = vst.msk [vmem:[#allocation2 + $0x170] sm:$0xff] %vm1692, %v1674
      %1740 = vst.msk [vmem:[#allocation2 + $0x178] sm:$0xff] %vm1692, %v1675
      %1741 = vst.msk [vmem:[#allocation2 + $0x180] sm:$0xff] %vm1692, %v1676
      %1742 = vst.msk [vmem:[#allocation2 + $0x188] sm:$0xff] %vm1692, %v1677
      %1743 = vst.msk [vmem:[#allocation2 + $0x190] sm:$0xff] %vm1692, %v1678
      %1744 = vst.msk [vmem:[#allocation2 + $0x198] sm:$0xff] %vm1692, %v1679
      %1745 = vst.msk [vmem:[#allocation2 + $0x1a0] sm:$0xff] %vm1692, %v1680
      %1746 = vst.msk [vmem:[#allocation2 + $0x1a8] sm:$0xff] %vm1692, %v1681
      %1747 = vst.msk [vmem:[#allocation2 + $0x1b0] sm:$0xff] %vm1692, %v1682
      %1748 = vst.msk [vmem:[#allocation2 + $0x1b8] sm:$0xff] %vm1692, %v1683
      %1749 = vst.msk [vmem:[#allocation2 + $0x1c0] sm:$0xff] %vm1692, %v1684
      %1750 = vst.msk [vmem:[#allocation2 + $0x1c8] sm:$0xff] %vm1692, %v1685
      %1751 = vst.msk [vmem:[#allocation2 + $0x1d0] sm:$0xff] %vm1692, %v1686
      %1752 = vst.msk [vmem:[#allocation2 + $0x1d8] sm:$0xff] %vm1692, %v1687
      %1753 = vst.msk [vmem:[#allocation2 + $0x1e0] sm:$0xff] %vm1692, %v1688
      %1754 = vst.msk [vmem:[#allocation2 + $0x1e8] sm:$0xff] %vm1692, %v1689
      %1755 = vst.msk [vmem:[#allocation2 + $0x1f0] sm:$0xff] %vm1692, %v1690
      %1756 = vst.msk [vmem:[#allocation2 + $0x1f8] sm:$0xff] %vm1692, %v1691
      %v1761 = vunpack.c.l.b16 %v428
      %v1762 = vunpack.c.l.b16 %v429
      %v1763 = vunpack.c.l.b16 %v430
      %v1764 = vunpack.c.l.b16 %v431
      %v1765 = vpack.c.b16 %v1762, %v1761
      %v1766 = vpack.c.b16 %v1764, %v1763
      %v1768 = vunpack.c.l.b16 %v432
      %v1769 = vpack.c.b16 %v1768, %v1768
      %v1771 = vshrl.u32 %v1765, 16
      %v1773 = vshll.u32 %v1765, 16
      %v1775 = vrot.slane %v1773, 1
      %v1776 = vor.u32 %v1771, %v1775
      %v1778 = vshll.u32 %v1766, 16
      %v1780 = vrot.slane %v1778, 1
      %v1781 = vsel %vm646, %v1776, %v1780
      %v1782 = vshrl.u32 %v1766, 16
      %v1784 = vor.u32 %v1782, %v1780
      %v1786 = vshll.u32 %v1769, 16
      %v1788 = vrot.slane %v1786, 1
      %v1789 = vsel %vm646, %v1784, %v1788
      %1790 = vrot.lane.b32.xlu0 %v1781, 16
      %v1791 = vpop.permute.xlu0 %1790
      %1792 = vrot.lane.b32.xlu0 %v1789, 16
      %v1793 = vpop.permute.xlu0 %1792
      %v1794 = vrot.slane %v1765, 1
      %v1795 = vrot.slane %v1766, 1
      %v1796 = vsel %vm1031, %v1794, %v1795
      %v1797 = vrot.slane %v1769, 1
      %v1798 = vsel %vm1031, %v1795, %v1797
      %1799 = vrot.lane.b32.xlu0 %v1796, 32
      %v1800 = vpop.permute.xlu0 %1799
      %1801 = vrot.lane.b32.xlu0 %v1798, 32
      %v1802 = vpop.permute.xlu0 %1801
      %v1804 = vsel %vm1176, %v1765, %v1791
      %v1806 = vsel %vm1176, %v1766, %v1793
      %v1808 = vsel %vm1241, %v1804, %v1800
      %v1810 = vsel %vm1241, %v1806, %v1802
      %v1811 = vld [vmem:[#allocation2] sm:$0xff]
      %v1812 = vld [vmem:[#allocation2 + $0x8] sm:$0xff]
      %v1813 = vld [vmem:[#allocation2 + $0x10] sm:$0xff]
      %v1814 = vld [vmem:[#allocation2 + $0x18] sm:$0xff]
      %v1815 = vld [vmem:[#allocation2 + $0x20] sm:$0xff]
      %v1816 = vld [vmem:[#allocation2 + $0x28] sm:$0xff]
      %v1817 = vld [vmem:[#allocation2 + $0x30] sm:$0xff]
      %v1818 = vld [vmem:[#allocation2 + $0x38] sm:$0xff]
      %v1819 = vld [vmem:[#allocation2 + $0x40] sm:$0xff]
      %v1820 = vld [vmem:[#allocation2 + $0x48] sm:$0xff]
      %v1821 = vld [vmem:[#allocation2 + $0x50] sm:$0xff]
      %v1822 = vld [vmem:[#allocation2 + $0x58] sm:$0xff]
      %v1823 = vld [vmem:[#allocation2 + $0x60] sm:$0xff]
      %v1824 = vld [vmem:[#allocation2 + $0x68] sm:$0xff]
      %v1825 = vld [vmem:[#allocation2 + $0x70] sm:$0xff]
      %v1826 = vld [vmem:[#allocation2 + $0x78] sm:$0xff]
      %v1827 = vld [vmem:[#allocation2 + $0x80] sm:$0xff]
      %v1828 = vld [vmem:[#allocation2 + $0x88] sm:$0xff]
      %v1829 = vld [vmem:[#allocation2 + $0x90] sm:$0xff]
      %v1830 = vld [vmem:[#allocation2 + $0x98] sm:$0xff]
      %v1831 = vld [vmem:[#allocation2 + $0xa0] sm:$0xff]
      %v1832 = vld [vmem:[#allocation2 + $0xa8] sm:$0xff]
      %v1833 = vld [vmem:[#allocation2 + $0xb0] sm:$0xff]
      %v1834 = vld [vmem:[#allocation2 + $0xb8] sm:$0xff]
      %v1835 = vld [vmem:[#allocation2 + $0xc0] sm:$0xff]
      %v1836 = vld [vmem:[#allocation2 + $0xc8] sm:$0xff]
      %v1837 = vld [vmem:[#allocation2 + $0xd0] sm:$0xff]
      %v1838 = vld [vmem:[#allocation2 + $0xd8] sm:$0xff]
      %v1839 = vld [vmem:[#allocation2 + $0xe0] sm:$0xff]
      %v1840 = vld [vmem:[#allocation2 + $0xe8] sm:$0xff]
      %v1841 = vld [vmem:[#allocation2 + $0xf0] sm:$0xff]
      %v1842 = vld [vmem:[#allocation2 + $0xf8] sm:$0xff]
      %v1843 = vld [vmem:[#allocation2 + $0x100] sm:$0xff]
      %v1844 = vld [vmem:[#allocation2 + $0x108] sm:$0xff]
      %v1845 = vld [vmem:[#allocation2 + $0x110] sm:$0xff]
      %v1846 = vld [vmem:[#allocation2 + $0x118] sm:$0xff]
      %v1847 = vld [vmem:[#allocation2 + $0x120] sm:$0xff]
      %v1848 = vld [vmem:[#allocation2 + $0x128] sm:$0xff]
      %v1849 = vld [vmem:[#allocation2 + $0x130] sm:$0xff]
      %v1850 = vld [vmem:[#allocation2 + $0x138] sm:$0xff]
      %v1851 = vld [vmem:[#allocation2 + $0x140] sm:$0xff]
      %v1852 = vld [vmem:[#allocation2 + $0x148] sm:$0xff]
      %v1853 = vld [vmem:[#allocation2 + $0x150] sm:$0xff]
      %v1854 = vld [vmem:[#allocation2 + $0x158] sm:$0xff]
      %v1855 = vld [vmem:[#allocation2 + $0x160] sm:$0xff]
      %v1856 = vld [vmem:[#allocation2 + $0x168] sm:$0xff]
      %v1857 = vld [vmem:[#allocation2 + $0x170] sm:$0xff]
      %v1858 = vld [vmem:[#allocation2 + $0x178] sm:$0xff]
      %v1859 = vld [vmem:[#allocation2 + $0x180] sm:$0xff]
      %v1860 = vld [vmem:[#allocation2 + $0x188] sm:$0xff]
      %v1861 = vld [vmem:[#allocation2 + $0x190] sm:$0xff]
      %v1862 = vld [vmem:[#allocation2 + $0x198] sm:$0xff]
      %v1863 = vld [vmem:[#allocation2 + $0x1a0] sm:$0xff]
      %v1864 = vld [vmem:[#allocation2 + $0x1a8] sm:$0xff]
      %v1865 = vld [vmem:[#allocation2 + $0x1b0] sm:$0xff]
      %v1866 = vld [vmem:[#allocation2 + $0x1b8] sm:$0xff]
      %v1867 = vld [vmem:[#allocation2 + $0x1c0] sm:$0xff]
      %v1868 = vld [vmem:[#allocation2 + $0x1c8] sm:$0xff]
      %v1869 = vld [vmem:[#allocation2 + $0x1d0] sm:$0xff]
      %v1870 = vld [vmem:[#allocation2 + $0x1d8] sm:$0xff]
      %v1871 = vld [vmem:[#allocation2 + $0x1e0] sm:$0xff]
      %v1872 = vld [vmem:[#allocation2 + $0x1e8] sm:$0xff]
      %v1873 = vld [vmem:[#allocation2 + $0x1f0] sm:$0xff]
      %v1874 = vld [vmem:[#allocation2 + $0x1f8] sm:$0xff]
      %s1875 = scalar_lea.vmem %s266, 24
      %v1876 = vld [vmem:[%s1875] sm:$0xf]
      %v1877 = vld [vmem:[%s1875 + $0x4] sm:$0xf]
      %v1878 = vld [vmem:[%s1875 + $0x8] sm:$0xf]
      %v1879 = vld [vmem:[%s1875 + $0xc] sm:$0xf]
      %v1880 = vld [vmem:[%s1875 + $0x10] sm:$0xf]
      %v1881 = vld [vmem:[%s1875 + $0x14] sm:$0xf]
      %v1888 = vunpack.c.l.b16 %v1876
      %v1889 = vunpack.c.l.b16 %v1877
      %v1890 = vunpack.c.l.b16 %v1878
      %v1891 = vunpack.c.l.b16 %v1879
      %v1892 = vunpack.c.l.b16 %v1880
      %v1893 = vunpack.c.l.b16 %v1881
      %v1894 = vpack.c.b16 %v1889, %v1888
      %v1895 = vpack.c.b16 %v1891, %v1890
      %v1896 = vpack.c.b16 %v1893, %v1892
      %v1900 = vsel %vm1394, %v1808, 0
      %v1902 = vsel %vm1394, %v1810, 0
      %1904 = vmatpush.bf16.msra.mxu0 0
      %1905 = vmatpush.bf16.msra.mxu0 0
      %1906 = vmatpush.bf16.msra.mxu0 0
      %1907 = vmatpush.bf16.msra.mxu0 0
      %1908 = vmatpush.bf16.msra.mxu0 0
      %1909 = vmatpush.bf16.msra.mxu0 %v1896
      %1910 = vmatpush.bf16.msra.mxu0 %v1895
      %1911 = vmatpush.bf16.msra.mxu0 %v1894
      %1912 = vmatmul.bf16.gmra.mxu0 %v1399
      %v1913 = vpop.f32.mrf.mxu0
      %v1914 = vadd.f32 0.0, %v1913
      %v1915 = vpop.f32.mrf.mxu0
      %v1916 = vadd.f32 0.0, %v1915
      %1917 = vmatmul.bf16.gmra.mxu0 %v1401
      %v1918 = vpop.f32.mrf.mxu0
      %v1919 = vadd.f32 0.0, %v1918
      %v1920 = vpop.f32.mrf.mxu0
      %v1921 = vadd.f32 0.0, %v1920
      %1922 = vmatmul.bf16.gmra.mxu0 %v1403
      %v1923 = vpop.f32.mrf.mxu0
      %v1924 = vadd.f32 0.0, %v1923
      %v1925 = vpop.f32.mrf.mxu0
      %v1926 = vadd.f32 0.0, %v1925
      %1927 = vmatmul.bf16.gmra.mxu0 %v1405
      %v1928 = vpop.f32.mrf.mxu0
      %v1929 = vadd.f32 0.0, %v1928
      %v1930 = vpop.f32.mrf.mxu0
      %v1931 = vadd.f32 0.0, %v1930
      %1932 = vmatmul.bf16.gmra.mxu0 %v1407
      %v1933 = vpop.f32.mrf.mxu0
      %v1934 = vadd.f32 0.0, %v1933
      %v1935 = vpop.f32.mrf.mxu0
      %v1936 = vadd.f32 0.0, %v1935
      %1937 = vmatmul.bf16.gmra.mxu0 %v1409
      %v1938 = vpop.f32.mrf.mxu0
      %v1939 = vadd.f32 0.0, %v1938
      %v1940 = vpop.f32.mrf.mxu0
      %v1941 = vadd.f32 0.0, %v1940
      %1942 = vmatmul.bf16.gmra.mxu0 %v1411
      %v1943 = vpop.f32.mrf.mxu0
      %v1944 = vadd.f32 0.0, %v1943
      %v1945 = vpop.f32.mrf.mxu0
      %v1946 = vadd.f32 0.0, %v1945
      %1947 = vmatmul.bf16.gmra.mxu0 %v1413
      %v1948 = vpop.f32.mrf.mxu0
      %v1949 = vadd.f32 0.0, %v1948
      %v1950 = vpop.f32.mrf.mxu0
      %v1951 = vadd.f32 0.0, %v1950
      %1952 = vmatmul.bf16.gmra.mxu0 %v1415
      %v1953 = vpop.f32.mrf.mxu0
      %v1954 = vadd.f32 0.0, %v1953
      %v1955 = vpop.f32.mrf.mxu0
      %v1956 = vadd.f32 0.0, %v1955
      %1957 = vmatmul.bf16.gmra.mxu0 %v1417
      %v1958 = vpop.f32.mrf.mxu0
      %v1959 = vadd.f32 0.0, %v1958
      %v1960 = vpop.f32.mrf.mxu0
      %v1961 = vadd.f32 0.0, %v1960
      %1962 = vmatmul.bf16.gmra.mxu0 %v1419
      %v1963 = vpop.f32.mrf.mxu0
      %v1964 = vadd.f32 0.0, %v1963
      %v1965 = vpop.f32.mrf.mxu0
      %v1966 = vadd.f32 0.0, %v1965
      %1967 = vmatmul.bf16.gmra.mxu0 %v1421
      %v1968 = vpop.f32.mrf.mxu0
      %v1969 = vadd.f32 0.0, %v1968
      %v1970 = vpop.f32.mrf.mxu0
      %v1971 = vadd.f32 0.0, %v1970
      %1972 = vmatmul.bf16.gmra.mxu0 %v1423
      %v1973 = vpop.f32.mrf.mxu0
      %v1974 = vadd.f32 0.0, %v1973
      %v1975 = vpop.f32.mrf.mxu0
      %v1976 = vadd.f32 0.0, %v1975
      %1977 = vmatmul.bf16.gmra.mxu0 %v1425
      %v1978 = vpop.f32.mrf.mxu0
      %v1979 = vadd.f32 0.0, %v1978
      %v1980 = vpop.f32.mrf.mxu0
      %v1981 = vadd.f32 0.0, %v1980
      %1982 = vmatmul.bf16.gmra.mxu0 %v1427
      %v1983 = vpop.f32.mrf.mxu0
      %v1984 = vadd.f32 0.0, %v1983
      %v1985 = vpop.f32.mrf.mxu0
      %v1986 = vadd.f32 0.0, %v1985
      %1987 = vmatmul.bf16.gmra.mxu0 %v1429
      %v1988 = vpop.f32.mrf.mxu0
      %v1989 = vadd.f32 0.0, %v1988
      %v1990 = vpop.f32.mrf.mxu0
      %v1991 = vadd.f32 0.0, %v1990
      %1992 = vmatmul.bf16.gmra.mxu0 %v1431
      %v1993 = vpop.f32.mrf.mxu0
      %v1994 = vadd.f32 0.0, %v1993
      %v1995 = vpop.f32.mrf.mxu0
      %v1996 = vadd.f32 0.0, %v1995
      %1997 = vmatmul.bf16.gmra.mxu0 %v1433
      %v1998 = vpop.f32.mrf.mxu0
      %v1999 = vadd.f32 0.0, %v1998
      %v2000 = vpop.f32.mrf.mxu0
      %v2001 = vadd.f32 0.0, %v2000
      %2002 = vmatmul.bf16.gmra.mxu0 %v1435
      %v2003 = vpop.f32.mrf.mxu0
      %v2004 = vadd.f32 0.0, %v2003
      %v2005 = vpop.f32.mrf.mxu0
      %v2006 = vadd.f32 0.0, %v2005
      %2007 = vmatmul.bf16.gmra.mxu0 %v1437
      %v2008 = vpop.f32.mrf.mxu0
      %v2009 = vadd.f32 0.0, %v2008
      %v2010 = vpop.f32.mrf.mxu0
      %v2011 = vadd.f32 0.0, %v2010
      %2012 = vmatmul.bf16.gmra.mxu0 %v1439
      %v2013 = vpop.f32.mrf.mxu0
      %v2014 = vadd.f32 0.0, %v2013
      %v2015 = vpop.f32.mrf.mxu0
      %v2016 = vadd.f32 0.0, %v2015
      %2017 = vmatmul.bf16.gmra.mxu0 %v1441
      %v2018 = vpop.f32.mrf.mxu0
      %v2019 = vadd.f32 0.0, %v2018
      %v2020 = vpop.f32.mrf.mxu0
      %v2021 = vadd.f32 0.0, %v2020
      %2022 = vmatmul.bf16.gmra.mxu0 %v1443
      %v2023 = vpop.f32.mrf.mxu0
      %v2024 = vadd.f32 0.0, %v2023
      %v2025 = vpop.f32.mrf.mxu0
      %v2026 = vadd.f32 0.0, %v2025
      %2027 = vmatmul.bf16.gmra.mxu0 %v1445
      %v2028 = vpop.f32.mrf.mxu0
      %v2029 = vadd.f32 0.0, %v2028
      %v2030 = vpop.f32.mrf.mxu0
      %v2031 = vadd.f32 0.0, %v2030
      %2032 = vmatmul.bf16.gmra.mxu0 %v1447
      %v2033 = vpop.f32.mrf.mxu0
      %v2034 = vadd.f32 0.0, %v2033
      %v2035 = vpop.f32.mrf.mxu0
      %v2036 = vadd.f32 0.0, %v2035
      %2037 = vmatmul.bf16.gmra.mxu0 %v1449
      %v2038 = vpop.f32.mrf.mxu0
      %v2039 = vadd.f32 0.0, %v2038
      %v2040 = vpop.f32.mrf.mxu0
      %v2041 = vadd.f32 0.0, %v2040
      %2042 = vmatmul.bf16.gmra.mxu0 %v1451
      %v2043 = vpop.f32.mrf.mxu0
      %v2044 = vadd.f32 0.0, %v2043
      %v2045 = vpop.f32.mrf.mxu0
      %v2046 = vadd.f32 0.0, %v2045
      %2047 = vmatmul.bf16.gmra.mxu0 %v1453
      %v2048 = vpop.f32.mrf.mxu0
      %v2049 = vadd.f32 0.0, %v2048
      %v2050 = vpop.f32.mrf.mxu0
      %v2051 = vadd.f32 0.0, %v2050
      %2052 = vmatmul.bf16.gmra.mxu0 %v1455
      %v2053 = vpop.f32.mrf.mxu0
      %v2054 = vadd.f32 0.0, %v2053
      %v2055 = vpop.f32.mrf.mxu0
      %v2056 = vadd.f32 0.0, %v2055
      %2057 = vmatmul.bf16.gmra.mxu0 %v1457
      %v2058 = vpop.f32.mrf.mxu0
      %v2059 = vadd.f32 0.0, %v2058
      %v2060 = vpop.f32.mrf.mxu0
      %v2061 = vadd.f32 0.0, %v2060
      %2062 = vmatmul.bf16.gmra.mxu0 %v1900
      %v2063 = vpop.f32.mrf.mxu0
      %v2064 = vadd.f32 0.0, %v2063
      %v2065 = vpop.f32.mrf.mxu0
      %v2066 = vadd.f32 0.0, %v2065
      %2067 = vmatmul.bf16.gmra.mxu0 %v1902
      %v2068 = vpop.f32.mrf.mxu0
      %v2069 = vadd.f32 0.0, %v2068
      %v2070 = vpop.f32.mrf.mxu0
      %v2071 = vadd.f32 0.0, %v2070
      %2072 = vdwg.mxu0
      %v2073 = vadd.f32 %v1811, %v1914
      %v2074 = vadd.f32 %v1812, %v1916
      %v2075 = vadd.f32 %v1813, %v1919
      %v2076 = vadd.f32 %v1814, %v1921
      %v2077 = vadd.f32 %v1815, %v1924
      %v2078 = vadd.f32 %v1816, %v1926
      %v2079 = vadd.f32 %v1817, %v1929
      %v2080 = vadd.f32 %v1818, %v1931
      %v2081 = vadd.f32 %v1819, %v1934
      %v2082 = vadd.f32 %v1820, %v1936
      %v2083 = vadd.f32 %v1821, %v1939
      %v2084 = vadd.f32 %v1822, %v1941
      %v2085 = vadd.f32 %v1823, %v1944
      %v2086 = vadd.f32 %v1824, %v1946
      %v2087 = vadd.f32 %v1825, %v1949
      %v2088 = vadd.f32 %v1826, %v1951
      %v2089 = vadd.f32 %v1827, %v1954
      %v2090 = vadd.f32 %v1828, %v1956
      %v2091 = vadd.f32 %v1829, %v1959
      %v2092 = vadd.f32 %v1830, %v1961
      %v2093 = vadd.f32 %v1831, %v1964
      %v2094 = vadd.f32 %v1832, %v1966
      %v2095 = vadd.f32 %v1833, %v1969
      %v2096 = vadd.f32 %v1834, %v1971
      %v2097 = vadd.f32 %v1835, %v1974
      %v2098 = vadd.f32 %v1836, %v1976
      %v2099 = vadd.f32 %v1837, %v1979
      %v2100 = vadd.f32 %v1838, %v1981
      %v2101 = vadd.f32 %v1839, %v1984
      %v2102 = vadd.f32 %v1840, %v1986
      %v2103 = vadd.f32 %v1841, %v1989
      %v2104 = vadd.f32 %v1842, %v1991
      %v2105 = vadd.f32 %v1843, %v1994
      %v2106 = vadd.f32 %v1844, %v1996
      %v2107 = vadd.f32 %v1845, %v1999
      %v2108 = vadd.f32 %v1846, %v2001
      %v2109 = vadd.f32 %v1847, %v2004
      %v2110 = vadd.f32 %v1848, %v2006
      %v2111 = vadd.f32 %v1849, %v2009
      %v2112 = vadd.f32 %v1850, %v2011
      %v2113 = vadd.f32 %v1851, %v2014
      %v2114 = vadd.f32 %v1852, %v2016
      %v2115 = vadd.f32 %v1853, %v2019
      %v2116 = vadd.f32 %v1854, %v2021
      %v2117 = vadd.f32 %v1855, %v2024
      %v2118 = vadd.f32 %v1856, %v2026
      %v2119 = vadd.f32 %v1857, %v2029
      %v2120 = vadd.f32 %v1858, %v2031
      %v2121 = vadd.f32 %v1859, %v2034
      %v2122 = vadd.f32 %v1860, %v2036
      %v2123 = vadd.f32 %v1861, %v2039
      %v2124 = vadd.f32 %v1862, %v2041
      %v2125 = vadd.f32 %v1863, %v2044
      %v2126 = vadd.f32 %v1864, %v2046
      %v2127 = vadd.f32 %v1865, %v2049
      %v2128 = vadd.f32 %v1866, %v2051
      %v2129 = vadd.f32 %v1867, %v2054
      %v2130 = vadd.f32 %v1868, %v2056
      %v2131 = vadd.f32 %v1869, %v2059
      %v2132 = vadd.f32 %v1870, %v2061
      %v2133 = vadd.f32 %v1871, %v2064
      %v2134 = vadd.f32 %v1872, %v2066
      %v2135 = vadd.f32 %v1873, %v2069
      %v2136 = vadd.f32 %v1874, %v2071
      %2137 = vst.msk [vmem:[#allocation2] sm:$0xff] %vm1692, %v2073
      %2138 = vst.msk [vmem:[#allocation2 + $0x8] sm:$0xff] %vm1692, %v2074
      %2139 = vst.msk [vmem:[#allocation2 + $0x10] sm:$0xff] %vm1692, %v2075
      %2140 = vst.msk [vmem:[#allocation2 + $0x18] sm:$0xff] %vm1692, %v2076
      %2141 = vst.msk [vmem:[#allocation2 + $0x20] sm:$0xff] %vm1692, %v2077
      %2142 = vst.msk [vmem:[#allocation2 + $0x28] sm:$0xff] %vm1692, %v2078
      %2143 = vst.msk [vmem:[#allocation2 + $0x30] sm:$0xff] %vm1692, %v2079
      %2144 = vst.msk [vmem:[#allocation2 + $0x38] sm:$0xff] %vm1692, %v2080
      %2145 = vst.msk [vmem:[#allocation2 + $0x40] sm:$0xff] %vm1692, %v2081
      %2146 = vst.msk [vmem:[#allocation2 + $0x48] sm:$0xff] %vm1692, %v2082
      %2147 = vst.msk [vmem:[#allocation2 + $0x50] sm:$0xff] %vm1692, %v2083
      %2148 = vst.msk [vmem:[#allocation2 + $0x58] sm:$0xff] %vm1692, %v2084
      %2149 = vst.msk [vmem:[#allocation2 + $0x60] sm:$0xff] %vm1692, %v2085
      %2150 = vst.msk [vmem:[#allocation2 + $0x68] sm:$0xff] %vm1692, %v2086
      %2151 = vst.msk [vmem:[#allocation2 + $0x70] sm:$0xff] %vm1692, %v2087
      %2152 = vst.msk [vmem:[#allocation2 + $0x78] sm:$0xff] %vm1692, %v2088
      %2153 = vst.msk [vmem:[#allocation2 + $0x80] sm:$0xff] %vm1692, %v2089
      %2154 = vst.msk [vmem:[#allocation2 + $0x88] sm:$0xff] %vm1692, %v2090
      %2155 = vst.msk [vmem:[#allocation2 + $0x90] sm:$0xff] %vm1692, %v2091
      %2156 = vst.msk [vmem:[#allocation2 + $0x98] sm:$0xff] %vm1692, %v2092
      %2157 = vst.msk [vmem:[#allocation2 + $0xa0] sm:$0xff] %vm1692, %v2093
      %2158 = vst.msk [vmem:[#allocation2 + $0xa8] sm:$0xff] %vm1692, %v2094
      %2159 = vst.msk [vmem:[#allocation2 + $0xb0] sm:$0xff] %vm1692, %v2095
      %2160 = vst.msk [vmem:[#allocation2 + $0xb8] sm:$0xff] %vm1692, %v2096
      %2161 = vst.msk [vmem:[#allocation2 + $0xc0] sm:$0xff] %vm1692, %v2097
      %2162 = vst.msk [vmem:[#allocation2 + $0xc8] sm:$0xff] %vm1692, %v2098
      %2163 = vst.msk [vmem:[#allocation2 + $0xd0] sm:$0xff] %vm1692, %v2099
      %2164 = vst.msk [vmem:[#allocation2 + $0xd8] sm:$0xff] %vm1692, %v2100
      %2165 = vst.msk [vmem:[#allocation2 + $0xe0] sm:$0xff] %vm1692, %v2101
      %2166 = vst.msk [vmem:[#allocation2 + $0xe8] sm:$0xff] %vm1692, %v2102
      %2167 = vst.msk [vmem:[#allocation2 + $0xf0] sm:$0xff] %vm1692, %v2103
      %2168 = vst.msk [vmem:[#allocation2 + $0xf8] sm:$0xff] %vm1692, %v2104
      %2169 = vst.msk [vmem:[#allocation2 + $0x100] sm:$0xff] %vm1692, %v2105
      %2170 = vst.msk [vmem:[#allocation2 + $0x108] sm:$0xff] %vm1692, %v2106
      %2171 = vst.msk [vmem:[#allocation2 + $0x110] sm:$0xff] %vm1692, %v2107
      %2172 = vst.msk [vmem:[#allocation2 + $0x118] sm:$0xff] %vm1692, %v2108
      %2173 = vst.msk [vmem:[#allocation2 + $0x120] sm:$0xff] %vm1692, %v2109
      %2174 = vst.msk [vmem:[#allocation2 + $0x128] sm:$0xff] %vm1692, %v2110
      %2175 = vst.msk [vmem:[#allocation2 + $0x130] sm:$0xff] %vm1692, %v2111
      %2176 = vst.msk [vmem:[#allocation2 + $0x138] sm:$0xff] %vm1692, %v2112
      %2177 = vst.msk [vmem:[#allocation2 + $0x140] sm:$0xff] %vm1692, %v2113
      %2178 = vst.msk [vmem:[#allocation2 + $0x148] sm:$0xff] %vm1692, %v2114
      %2179 = vst.msk [vmem:[#allocation2 + $0x150] sm:$0xff] %vm1692, %v2115
      %2180 = vst.msk [vmem:[#allocation2 + $0x158] sm:$0xff] %vm1692, %v2116
      %2181 = vst.msk [vmem:[#allocation2 + $0x160] sm:$0xff] %vm1692, %v2117
      %2182 = vst.msk [vmem:[#allocation2 + $0x168] sm:$0xff] %vm1692, %v2118
      %2183 = vst.msk [vmem:[#allocation2 + $0x170] sm:$0xff] %vm1692, %v2119
      %2184 = vst.msk [vmem:[#allocation2 + $0x178] sm:$0xff] %vm1692, %v2120
      %2185 = vst.msk [vmem:[#allocation2 + $0x180] sm:$0xff] %vm1692, %v2121
      %2186 = vst.msk [vmem:[#allocation2 + $0x188] sm:$0xff] %vm1692, %v2122
      %2187 = vst.msk [vmem:[#allocation2 + $0x190] sm:$0xff] %vm1692, %v2123
      %2188 = vst.msk [vmem:[#allocation2 + $0x198] sm:$0xff] %vm1692, %v2124
      %2189 = vst.msk [vmem:[#allocation2 + $0x1a0] sm:$0xff] %vm1692, %v2125
      %2190 = vst.msk [vmem:[#allocation2 + $0x1a8] sm:$0xff] %vm1692, %v2126
      %2191 = vst.msk [vmem:[#allocation2 + $0x1b0] sm:$0xff] %vm1692, %v2127
      %2192 = vst.msk [vmem:[#allocation2 + $0x1b8] sm:$0xff] %vm1692, %v2128
      %2193 = vst.msk [vmem:[#allocation2 + $0x1c0] sm:$0xff] %vm1692, %v2129
      %2194 = vst.msk [vmem:[#allocation2 + $0x1c8] sm:$0xff] %vm1692, %v2130
      %2195 = vst.msk [vmem:[#allocation2 + $0x1d0] sm:$0xff] %vm1692, %v2131
      %2196 = vst.msk [vmem:[#allocation2 + $0x1d8] sm:$0xff] %vm1692, %v2132
      %2197 = vst.msk [vmem:[#allocation2 + $0x1e0] sm:$0xff] %vm1692, %v2133
      %2198 = vst.msk [vmem:[#allocation2 + $0x1e8] sm:$0xff] %vm1692, %v2134
      %2199 = vst.msk [vmem:[#allocation2 + $0x1f0] sm:$0xff] %vm1692, %v2135
      %2200 = vst.msk [vmem:[#allocation2 + $0x1f8] sm:$0xff] %vm1692, %v2136
      %v2205 = vunpack.c.l.b16 %v433
      %v2206 = vunpack.c.l.b16 %v434
      %v2207 = vunpack.c.l.b16 %v435
      %v2208 = vunpack.c.l.b16 %v436
      %v2209 = vpack.c.b16 %v2206, %v2205
      %v2210 = vpack.c.b16 %v2208, %v2207
      %v2212 = vunpack.c.l.b16 %v437
      %v2213 = vpack.c.b16 %v2212, %v2212
      %v2215 = vshrl.u32 %v2209, 16
      %v2217 = vshll.u32 %v2209, 16
      %v2219 = vrot.slane %v2217, 1
      %v2220 = vor.u32 %v2215, %v2219
      %v2222 = vshll.u32 %v2210, 16
      %v2224 = vrot.slane %v2222, 1
      %v2225 = vsel %vm646, %v2220, %v2224
      %v2226 = vshrl.u32 %v2210, 16
      %v2228 = vor.u32 %v2226, %v2224
      %v2230 = vshll.u32 %v2213, 16
      %v2232 = vrot.slane %v2230, 1
      %v2233 = vsel %vm646, %v2228, %v2232
      %2234 = vrot.lane.b32.xlu0 %v2225, 16
      %v2235 = vpop.permute.xlu0 %2234
      %2236 = vrot.lane.b32.xlu0 %v2233, 16
      %v2237 = vpop.permute.xlu0 %2236
      %v2238 = vrot.slane %v2209, 1
      %v2239 = vrot.slane %v2210, 1
      %v2240 = vsel %vm1031, %v2238, %v2239
      %v2241 = vrot.slane %v2213, 1
      %v2242 = vsel %vm1031, %v2239, %v2241
      %2243 = vrot.lane.b32.xlu0 %v2240, 32
      %v2244 = vpop.permute.xlu0 %2243
      %2245 = vrot.lane.b32.xlu0 %v2242, 32
      %v2246 = vpop.permute.xlu0 %2245
      %v2248 = vsel %vm1176, %v2209, %v2235
      %v2250 = vsel %vm1176, %v2210, %v2237
      %v2252 = vsel %vm1241, %v2248, %v2244
      %v2254 = vsel %vm1241, %v2250, %v2246
      %v2255 = vld [vmem:[#allocation2] sm:$0xff]
      %v2256 = vld [vmem:[#allocation2 + $0x8] sm:$0xff]
      %v2257 = vld [vmem:[#allocation2 + $0x10] sm:$0xff]
      %v2258 = vld [vmem:[#allocation2 + $0x18] sm:$0xff]
      %v2259 = vld [vmem:[#allocation2 + $0x20] sm:$0xff]
      %v2260 = vld [vmem:[#allocation2 + $0x28] sm:$0xff]
      %v2261 = vld [vmem:[#allocation2 + $0x30] sm:$0xff]
      %v2262 = vld [vmem:[#allocation2 + $0x38] sm:$0xff]
      %v2263 = vld [vmem:[#allocation2 + $0x40] sm:$0xff]
      %v2264 = vld [vmem:[#allocation2 + $0x48] sm:$0xff]
      %v2265 = vld [vmem:[#allocation2 + $0x50] sm:$0xff]
      %v2266 = vld [vmem:[#allocation2 + $0x58] sm:$0xff]
      %v2267 = vld [vmem:[#allocation2 + $0x60] sm:$0xff]
      %v2268 = vld [vmem:[#allocation2 + $0x68] sm:$0xff]
      %v2269 = vld [vmem:[#allocation2 + $0x70] sm:$0xff]
      %v2270 = vld [vmem:[#allocation2 + $0x78] sm:$0xff]
      %v2271 = vld [vmem:[#allocation2 + $0x80] sm:$0xff]
      %v2272 = vld [vmem:[#allocation2 + $0x88] sm:$0xff]
      %v2273 = vld [vmem:[#allocation2 + $0x90] sm:$0xff]
      %v2274 = vld [vmem:[#allocation2 + $0x98] sm:$0xff]
      %v2275 = vld [vmem:[#allocation2 + $0xa0] sm:$0xff]
      %v2276 = vld [vmem:[#allocation2 + $0xa8] sm:$0xff]
      %v2277 = vld [vmem:[#allocation2 + $0xb0] sm:$0xff]
      %v2278 = vld [vmem:[#allocation2 + $0xb8] sm:$0xff]
      %v2279 = vld [vmem:[#allocation2 + $0xc0] sm:$0xff]
      %v2280 = vld [vmem:[#allocation2 + $0xc8] sm:$0xff]
      %v2281 = vld [vmem:[#allocation2 + $0xd0] sm:$0xff]
      %v2282 = vld [vmem:[#allocation2 + $0xd8] sm:$0xff]
      %v2283 = vld [vmem:[#allocation2 + $0xe0] sm:$0xff]
      %v2284 = vld [vmem:[#allocation2 + $0xe8] sm:$0xff]
      %v2285 = vld [vmem:[#allocation2 + $0xf0] sm:$0xff]
      %v2286 = vld [vmem:[#allocation2 + $0xf8] sm:$0xff]
      %v2287 = vld [vmem:[#allocation2 + $0x100] sm:$0xff]
      %v2288 = vld [vmem:[#allocation2 + $0x108] sm:$0xff]
      %v2289 = vld [vmem:[#allocation2 + $0x110] sm:$0xff]
      %v2290 = vld [vmem:[#allocation2 + $0x118] sm:$0xff]
      %v2291 = vld [vmem:[#allocation2 + $0x120] sm:$0xff]
      %v2292 = vld [vmem:[#allocation2 + $0x128] sm:$0xff]
      %v2293 = vld [vmem:[#allocation2 + $0x130] sm:$0xff]
      %v2294 = vld [vmem:[#allocation2 + $0x138] sm:$0xff]
      %v2295 = vld [vmem:[#allocation2 + $0x140] sm:$0xff]
      %v2296 = vld [vmem:[#allocation2 + $0x148] sm:$0xff]
      %v2297 = vld [vmem:[#allocation2 + $0x150] sm:$0xff]
      %v2298 = vld [vmem:[#allocation2 + $0x158] sm:$0xff]
      %v2299 = vld [vmem:[#allocation2 + $0x160] sm:$0xff]
      %v2300 = vld [vmem:[#allocation2 + $0x168] sm:$0xff]
      %v2301 = vld [vmem:[#allocation2 + $0x170] sm:$0xff]
      %v2302 = vld [vmem:[#allocation2 + $0x178] sm:$0xff]
      %v2303 = vld [vmem:[#allocation2 + $0x180] sm:$0xff]
      %v2304 = vld [vmem:[#allocation2 + $0x188] sm:$0xff]
      %v2305 = vld [vmem:[#allocation2 + $0x190] sm:$0xff]
      %v2306 = vld [vmem:[#allocation2 + $0x198] sm:$0xff]
      %v2307 = vld [vmem:[#allocation2 + $0x1a0] sm:$0xff]
      %v2308 = vld [vmem:[#allocation2 + $0x1a8] sm:$0xff]
      %v2309 = vld [vmem:[#allocation2 + $0x1b0] sm:$0xff]
      %v2310 = vld [vmem:[#allocation2 + $0x1b8] sm:$0xff]
      %v2311 = vld [vmem:[#allocation2 + $0x1c0] sm:$0xff]
      %v2312 = vld [vmem:[#allocation2 + $0x1c8] sm:$0xff]
      %v2313 = vld [vmem:[#allocation2 + $0x1d0] sm:$0xff]
      %v2314 = vld [vmem:[#allocation2 + $0x1d8] sm:$0xff]
      %v2315 = vld [vmem:[#allocation2 + $0x1e0] sm:$0xff]
      %v2316 = vld [vmem:[#allocation2 + $0x1e8] sm:$0xff]
      %v2317 = vld [vmem:[#allocation2 + $0x1f0] sm:$0xff]
      %v2318 = vld [vmem:[#allocation2 + $0x1f8] sm:$0xff]
      %s2319 = scalar_lea.vmem %s266, 48
      %v2320 = vld [vmem:[%s2319] sm:$0xf]
      %v2321 = vld [vmem:[%s2319 + $0x4] sm:$0xf]
      %v2322 = vld [vmem:[%s2319 + $0x8] sm:$0xf]
      %v2323 = vld [vmem:[%s2319 + $0xc] sm:$0xf]
      %v2324 = vld [vmem:[%s2319 + $0x10] sm:$0xf]
      %v2325 = vld [vmem:[%s2319 + $0x14] sm:$0xf]
      %v2332 = vunpack.c.l.b16 %v2320
      %v2333 = vunpack.c.l.b16 %v2321
      %v2334 = vunpack.c.l.b16 %v2322
      %v2335 = vunpack.c.l.b16 %v2323
      %v2336 = vunpack.c.l.b16 %v2324
      %v2337 = vunpack.c.l.b16 %v2325
      %v2338 = vpack.c.b16 %v2333, %v2332
      %v2339 = vpack.c.b16 %v2335, %v2334
      %v2340 = vpack.c.b16 %v2337, %v2336
      %v2344 = vsel %vm1394, %v2252, 0
      %v2346 = vsel %vm1394, %v2254, 0
      %2348 = vmatpush.bf16.msra.mxu0 0
      %2349 = vmatpush.bf16.msra.mxu0 0
      %2350 = vmatpush.bf16.msra.mxu0 0
      %2351 = vmatpush.bf16.msra.mxu0 0
      %2352 = vmatpush.bf16.msra.mxu0 0
      %2353 = vmatpush.bf16.msra.mxu0 %v2340
      %2354 = vmatpush.bf16.msra.mxu0 %v2339
      %2355 = vmatpush.bf16.msra.mxu0 %v2338
      %2356 = vmatmul.bf16.gmra.mxu0 %v1403
      %v2357 = vpop.f32.mrf.mxu0
      %v2358 = vadd.f32 0.0, %v2357
      %v2359 = vpop.f32.mrf.mxu0
      %v2360 = vadd.f32 0.0, %v2359
      %2361 = vmatmul.bf16.gmra.mxu0 %v1405
      %v2362 = vpop.f32.mrf.mxu0
      %v2363 = vadd.f32 0.0, %v2362
      %v2364 = vpop.f32.mrf.mxu0
      %v2365 = vadd.f32 0.0, %v2364
      %2366 = vmatmul.bf16.gmra.mxu0 %v1407
      %v2367 = vpop.f32.mrf.mxu0
      %v2368 = vadd.f32 0.0, %v2367
      %v2369 = vpop.f32.mrf.mxu0
      %v2370 = vadd.f32 0.0, %v2369
      %2371 = vmatmul.bf16.gmra.mxu0 %v1409
      %v2372 = vpop.f32.mrf.mxu0
      %v2373 = vadd.f32 0.0, %v2372
      %v2374 = vpop.f32.mrf.mxu0
      %v2375 = vadd.f32 0.0, %v2374
      %2376 = vmatmul.bf16.gmra.mxu0 %v1411
      %v2377 = vpop.f32.mrf.mxu0
      %v2378 = vadd.f32 0.0, %v2377
      %v2379 = vpop.f32.mrf.mxu0
      %v2380 = vadd.f32 0.0, %v2379
      %2381 = vmatmul.bf16.gmra.mxu0 %v1413
      %v2382 = vpop.f32.mrf.mxu0
      %v2383 = vadd.f32 0.0, %v2382
      %v2384 = vpop.f32.mrf.mxu0
      %v2385 = vadd.f32 0.0, %v2384
      %2386 = vmatmul.bf16.gmra.mxu0 %v1415
      %v2387 = vpop.f32.mrf.mxu0
      %v2388 = vadd.f32 0.0, %v2387
      %v2389 = vpop.f32.mrf.mxu0
      %v2390 = vadd.f32 0.0, %v2389
      %2391 = vmatmul.bf16.gmra.mxu0 %v1417
      %v2392 = vpop.f32.mrf.mxu0
      %v2393 = vadd.f32 0.0, %v2392
      %v2394 = vpop.f32.mrf.mxu0
      %v2395 = vadd.f32 0.0, %v2394
      %2396 = vmatmul.bf16.gmra.mxu0 %v1419
      %v2397 = vpop.f32.mrf.mxu0
      %v2398 = vadd.f32 0.0, %v2397
      %v2399 = vpop.f32.mrf.mxu0
      %v2400 = vadd.f32 0.0, %v2399
      %2401 = vmatmul.bf16.gmra.mxu0 %v1421
      %v2402 = vpop.f32.mrf.mxu0
      %v2403 = vadd.f32 0.0, %v2402
      %v2404 = vpop.f32.mrf.mxu0
      %v2405 = vadd.f32 0.0, %v2404
      %2406 = vmatmul.bf16.gmra.mxu0 %v1423
      %v2407 = vpop.f32.mrf.mxu0
      %v2408 = vadd.f32 0.0, %v2407
      %v2409 = vpop.f32.mrf.mxu0
      %v2410 = vadd.f32 0.0, %v2409
      %2411 = vmatmul.bf16.gmra.mxu0 %v1425
      %v2412 = vpop.f32.mrf.mxu0
      %v2413 = vadd.f32 0.0, %v2412
      %v2414 = vpop.f32.mrf.mxu0
      %v2415 = vadd.f32 0.0, %v2414
      %2416 = vmatmul.bf16.gmra.mxu0 %v1427
      %v2417 = vpop.f32.mrf.mxu0
      %v2418 = vadd.f32 0.0, %v2417
      %v2419 = vpop.f32.mrf.mxu0
      %v2420 = vadd.f32 0.0, %v2419
      %2421 = vmatmul.bf16.gmra.mxu0 %v1429
      %v2422 = vpop.f32.mrf.mxu0
      %v2423 = vadd.f32 0.0, %v2422
      %v2424 = vpop.f32.mrf.mxu0
      %v2425 = vadd.f32 0.0, %v2424
      %2426 = vmatmul.bf16.gmra.mxu0 %v1431
      %v2427 = vpop.f32.mrf.mxu0
      %v2428 = vadd.f32 0.0, %v2427
      %v2429 = vpop.f32.mrf.mxu0
      %v2430 = vadd.f32 0.0, %v2429
      %2431 = vmatmul.bf16.gmra.mxu0 %v1433
      %v2432 = vpop.f32.mrf.mxu0
      %v2433 = vadd.f32 0.0, %v2432
      %v2434 = vpop.f32.mrf.mxu0
      %v2435 = vadd.f32 0.0, %v2434
      %2436 = vmatmul.bf16.gmra.mxu0 %v1435
      %v2437 = vpop.f32.mrf.mxu0
      %v2438 = vadd.f32 0.0, %v2437
      %v2439 = vpop.f32.mrf.mxu0
      %v2440 = vadd.f32 0.0, %v2439
      %2441 = vmatmul.bf16.gmra.mxu0 %v1437
      %v2442 = vpop.f32.mrf.mxu0
      %v2443 = vadd.f32 0.0, %v2442
      %v2444 = vpop.f32.mrf.mxu0
      %v2445 = vadd.f32 0.0, %v2444
      %2446 = vmatmul.bf16.gmra.mxu0 %v1439
      %v2447 = vpop.f32.mrf.mxu0
      %v2448 = vadd.f32 0.0, %v2447
      %v2449 = vpop.f32.mrf.mxu0
      %v2450 = vadd.f32 0.0, %v2449
      %2451 = vmatmul.bf16.gmra.mxu0 %v1441
      %v2452 = vpop.f32.mrf.mxu0
      %v2453 = vadd.f32 0.0, %v2452
      %v2454 = vpop.f32.mrf.mxu0
      %v2455 = vadd.f32 0.0, %v2454
      %2456 = vmatmul.bf16.gmra.mxu0 %v1443
      %v2457 = vpop.f32.mrf.mxu0
      %v2458 = vadd.f32 0.0, %v2457
      %v2459 = vpop.f32.mrf.mxu0
      %v2460 = vadd.f32 0.0, %v2459
      %2461 = vmatmul.bf16.gmra.mxu0 %v1445
      %v2462 = vpop.f32.mrf.mxu0
      %v2463 = vadd.f32 0.0, %v2462
      %v2464 = vpop.f32.mrf.mxu0
      %v2465 = vadd.f32 0.0, %v2464
      %2466 = vmatmul.bf16.gmra.mxu0 %v1447
      %v2467 = vpop.f32.mrf.mxu0
      %v2468 = vadd.f32 0.0, %v2467
      %v2469 = vpop.f32.mrf.mxu0
      %v2470 = vadd.f32 0.0, %v2469
      %2471 = vmatmul.bf16.gmra.mxu0 %v1449
      %v2472 = vpop.f32.mrf.mxu0
      %v2473 = vadd.f32 0.0, %v2472
      %v2474 = vpop.f32.mrf.mxu0
      %v2475 = vadd.f32 0.0, %v2474
      %2476 = vmatmul.bf16.gmra.mxu0 %v1451
      %v2477 = vpop.f32.mrf.mxu0
      %v2478 = vadd.f32 0.0, %v2477
      %v2479 = vpop.f32.mrf.mxu0
      %v2480 = vadd.f32 0.0, %v2479
      %2481 = vmatmul.bf16.gmra.mxu0 %v1453
      %v2482 = vpop.f32.mrf.mxu0
      %v2483 = vadd.f32 0.0, %v2482
      %v2484 = vpop.f32.mrf.mxu0
      %v2485 = vadd.f32 0.0, %v2484
      %2486 = vmatmul.bf16.gmra.mxu0 %v1455
      %v2487 = vpop.f32.mrf.mxu0
      %v2488 = vadd.f32 0.0, %v2487
      %v2489 = vpop.f32.mrf.mxu0
      %v2490 = vadd.f32 0.0, %v2489
      %2491 = vmatmul.bf16.gmra.mxu0 %v1457
      %v2492 = vpop.f32.mrf.mxu0
      %v2493 = vadd.f32 0.0, %v2492
      %v2494 = vpop.f32.mrf.mxu0
      %v2495 = vadd.f32 0.0, %v2494
      %2496 = vmatmul.bf16.gmra.mxu0 %v1900
      %v2497 = vpop.f32.mrf.mxu0
      %v2498 = vadd.f32 0.0, %v2497
      %v2499 = vpop.f32.mrf.mxu0
      %v2500 = vadd.f32 0.0, %v2499
      %2501 = vmatmul.bf16.gmra.mxu0 %v1902
      %v2502 = vpop.f32.mrf.mxu0
      %v2503 = vadd.f32 0.0, %v2502
      %v2504 = vpop.f32.mrf.mxu0
      %v2505 = vadd.f32 0.0, %v2504
      %2506 = vmatmul.bf16.gmra.mxu0 %v2344
      %v2507 = vpop.f32.mrf.mxu0
      %v2508 = vadd.f32 0.0, %v2507
      %v2509 = vpop.f32.mrf.mxu0
      %v2510 = vadd.f32 0.0, %v2509
      %2511 = vmatmul.bf16.gmra.mxu0 %v2346
      %v2512 = vpop.f32.mrf.mxu0
      %v2513 = vadd.f32 0.0, %v2512
      %v2514 = vpop.f32.mrf.mxu0
      %v2515 = vadd.f32 0.0, %v2514
      %2516 = vdwg.mxu0
      %v2517 = vadd.f32 %v2255, %v2358
      %v2518 = vadd.f32 %v2256, %v2360
      %v2519 = vadd.f32 %v2257, %v2363
      %v2520 = vadd.f32 %v2258, %v2365
      %v2521 = vadd.f32 %v2259, %v2368
      %v2522 = vadd.f32 %v2260, %v2370
      %v2523 = vadd.f32 %v2261, %v2373
      %v2524 = vadd.f32 %v2262, %v2375
      %v2525 = vadd.f32 %v2263, %v2378
      %v2526 = vadd.f32 %v2264, %v2380
      %v2527 = vadd.f32 %v2265, %v2383
      %v2528 = vadd.f32 %v2266, %v2385
      %v2529 = vadd.f32 %v2267, %v2388
      %v2530 = vadd.f32 %v2268, %v2390
      %v2531 = vadd.f32 %v2269, %v2393
      %v2532 = vadd.f32 %v2270, %v2395
      %v2533 = vadd.f32 %v2271, %v2398
      %v2534 = vadd.f32 %v2272, %v2400
      %v2535 = vadd.f32 %v2273, %v2403
      %v2536 = vadd.f32 %v2274, %v2405
      %v2537 = vadd.f32 %v2275, %v2408
      %v2538 = vadd.f32 %v2276, %v2410
      %v2539 = vadd.f32 %v2277, %v2413
      %v2540 = vadd.f32 %v2278, %v2415
      %v2541 = vadd.f32 %v2279, %v2418
      %v2542 = vadd.f32 %v2280, %v2420
      %v2543 = vadd.f32 %v2281, %v2423
      %v2544 = vadd.f32 %v2282, %v2425
      %v2545 = vadd.f32 %v2283, %v2428
      %v2546 = vadd.f32 %v2284, %v2430
      %v2547 = vadd.f32 %v2285, %v2433
      %v2548 = vadd.f32 %v2286, %v2435
      %v2549 = vadd.f32 %v2287, %v2438
      %v2550 = vadd.f32 %v2288, %v2440
      %v2551 = vadd.f32 %v2289, %v2443
      %v2552 = vadd.f32 %v2290, %v2445
      %v2553 = vadd.f32 %v2291, %v2448
      %v2554 = vadd.f32 %v2292, %v2450
      %v2555 = vadd.f32 %v2293, %v2453
      %v2556 = vadd.f32 %v2294, %v2455
      %v2557 = vadd.f32 %v2295, %v2458
      %v2558 = vadd.f32 %v2296, %v2460
      %v2559 = vadd.f32 %v2297, %v2463
      %v2560 = vadd.f32 %v2298, %v2465
      %v2561 = vadd.f32 %v2299, %v2468
      %v2562 = vadd.f32 %v2300, %v2470
      %v2563 = vadd.f32 %v2301, %v2473
      %v2564 = vadd.f32 %v2302, %v2475
      %v2565 = vadd.f32 %v2303, %v2478
      %v2566 = vadd.f32 %v2304, %v2480
      %v2567 = vadd.f32 %v2305, %v2483
      %v2568 = vadd.f32 %v2306, %v2485
      %v2569 = vadd.f32 %v2307, %v2488
      %v2570 = vadd.f32 %v2308, %v2490
      %v2571 = vadd.f32 %v2309, %v2493
      %v2572 = vadd.f32 %v2310, %v2495
      %v2573 = vadd.f32 %v2311, %v2498
      %v2574 = vadd.f32 %v2312, %v2500
      %v2575 = vadd.f32 %v2313, %v2503
      %v2576 = vadd.f32 %v2314, %v2505
      %v2577 = vadd.f32 %v2315, %v2508
      %v2578 = vadd.f32 %v2316, %v2510
      %v2579 = vadd.f32 %v2317, %v2513
      %v2580 = vadd.f32 %v2318, %v2515
      %2581 = vst.msk [vmem:[#allocation2] sm:$0xff] %vm1692, %v2517
      %2582 = vst.msk [vmem:[#allocation2 + $0x8] sm:$0xff] %vm1692, %v2518
      %2583 = vst.msk [vmem:[#allocation2 + $0x10] sm:$0xff] %vm1692, %v2519
      %2584 = vst.msk [vmem:[#allocation2 + $0x18] sm:$0xff] %vm1692, %v2520
      %2585 = vst.msk [vmem:[#allocation2 + $0x20] sm:$0xff] %vm1692, %v2521
      %2586 = vst.msk [vmem:[#allocation2 + $0x28] sm:$0xff] %vm1692, %v2522
      %2587 = vst.msk [vmem:[#allocation2 + $0x30] sm:$0xff] %vm1692, %v2523
      %2588 = vst.msk [vmem:[#allocation2 + $0x38] sm:$0xff] %vm1692, %v2524
      %2589 = vst.msk [vmem:[#allocation2 + $0x40] sm:$0xff] %vm1692, %v2525
      %2590 = vst.msk [vmem:[#allocation2 + $0x48] sm:$0xff] %vm1692, %v2526
      %2591 = vst.msk [vmem:[#allocation2 + $0x50] sm:$0xff] %vm1692, %v2527
      %2592 = vst.msk [vmem:[#allocation2 + $0x58] sm:$0xff] %vm1692, %v2528
      %2593 = vst.msk [vmem:[#allocation2 + $0x60] sm:$0xff] %vm1692, %v2529
      %2594 = vst.msk [vmem:[#allocation2 + $0x68] sm:$0xff] %vm1692, %v2530
      %2595 = vst.msk [vmem:[#allocation2 + $0x70] sm:$0xff] %vm1692, %v2531
      %2596 = vst.msk [vmem:[#allocation2 + $0x78] sm:$0xff] %vm1692, %v2532
      %2597 = vst.msk [vmem:[#allocation2 + $0x80] sm:$0xff] %vm1692, %v2533
      %2598 = vst.msk [vmem:[#allocation2 + $0x88] sm:$0xff] %vm1692, %v2534
      %2599 = vst.msk [vmem:[#allocation2 + $0x90] sm:$0xff] %vm1692, %v2535
      %2600 = vst.msk [vmem:[#allocation2 + $0x98] sm:$0xff] %vm1692, %v2536
      %2601 = vst.msk [vmem:[#allocation2 + $0xa0] sm:$0xff] %vm1692, %v2537
      %2602 = vst.msk [vmem:[#allocation2 + $0xa8] sm:$0xff] %vm1692, %v2538
      %2603 = vst.msk [vmem:[#allocation2 + $0xb0] sm:$0xff] %vm1692, %v2539
      %2604 = vst.msk [vmem:[#allocation2 + $0xb8] sm:$0xff] %vm1692, %v2540
      %2605 = vst.msk [vmem:[#allocation2 + $0xc0] sm:$0xff] %vm1692, %v2541
      %2606 = vst.msk [vmem:[#allocation2 + $0xc8] sm:$0xff] %vm1692, %v2542
      %2607 = vst.msk [vmem:[#allocation2 + $0xd0] sm:$0xff] %vm1692, %v2543
      %2608 = vst.msk [vmem:[#allocation2 + $0xd8] sm:$0xff] %vm1692, %v2544
      %2609 = vst.msk [vmem:[#allocation2 + $0xe0] sm:$0xff] %vm1692, %v2545
      %2610 = vst.msk [vmem:[#allocation2 + $0xe8] sm:$0xff] %vm1692, %v2546
      %2611 = vst.msk [vmem:[#allocation2 + $0xf0] sm:$0xff] %vm1692, %v2547
      %2612 = vst.msk [vmem:[#allocation2 + $0xf8] sm:$0xff] %vm1692, %v2548
      %2613 = vst.msk [vmem:[#allocation2 + $0x100] sm:$0xff] %vm1692, %v2549
      %2614 = vst.msk [vmem:[#allocation2 + $0x108] sm:$0xff] %vm1692, %v2550
      %2615 = vst.msk [vmem:[#allocation2 + $0x110] sm:$0xff] %vm1692, %v2551
      %2616 = vst.msk [vmem:[#allocation2 + $0x118] sm:$0xff] %vm1692, %v2552
      %2617 = vst.msk [vmem:[#allocation2 + $0x120] sm:$0xff] %vm1692, %v2553
      %2618 = vst.msk [vmem:[#allocation2 + $0x128] sm:$0xff] %vm1692, %v2554
      %2619 = vst.msk [vmem:[#allocation2 + $0x130] sm:$0xff] %vm1692, %v2555
      %2620 = vst.msk [vmem:[#allocation2 + $0x138] sm:$0xff] %vm1692, %v2556
      %2621 = vst.msk [vmem:[#allocation2 + $0x140] sm:$0xff] %vm1692, %v2557
      %2622 = vst.msk [vmem:[#allocation2 + $0x148] sm:$0xff] %vm1692, %v2558
      %2623 = vst.msk [vmem:[#allocation2 + $0x150] sm:$0xff] %vm1692, %v2559
      %2624 = vst.msk [vmem:[#allocation2 + $0x158] sm:$0xff] %vm1692, %v2560
      %2625 = vst.msk [vmem:[#allocation2 + $0x160] sm:$0xff] %vm1692, %v2561
      %2626 = vst.msk [vmem:[#allocation2 + $0x168] sm:$0xff] %vm1692, %v2562
      %2627 = vst.msk [vmem:[#allocation2 + $0x170] sm:$0xff] %vm1692, %v2563
      %2628 = vst.msk [vmem:[#allocation2 + $0x178] sm:$0xff] %vm1692, %v2564
      %2629 = vst.msk [vmem:[#allocation2 + $0x180] sm:$0xff] %vm1692, %v2565
      %2630 = vst.msk [vmem:[#allocation2 + $0x188] sm:$0xff] %vm1692, %v2566
      %2631 = vst.msk [vmem:[#allocation2 + $0x190] sm:$0xff] %vm1692, %v2567
      %2632 = vst.msk [vmem:[#allocation2 + $0x198] sm:$0xff] %vm1692, %v2568
      %2633 = vst.msk [vmem:[#allocation2 + $0x1a0] sm:$0xff] %vm1692, %v2569
      %2634 = vst.msk [vmem:[#allocation2 + $0x1a8] sm:$0xff] %vm1692, %v2570
      %2635 = vst.msk [vmem:[#allocation2 + $0x1b0] sm:$0xff] %vm1692, %v2571
      %2636 = vst.msk [vmem:[#allocation2 + $0x1b8] sm:$0xff] %vm1692, %v2572
      %2637 = vst.msk [vmem:[#allocation2 + $0x1c0] sm:$0xff] %vm1692, %v2573
      %2638 = vst.msk [vmem:[#allocation2 + $0x1c8] sm:$0xff] %vm1692, %v2574
      %2639 = vst.msk [vmem:[#allocation2 + $0x1d0] sm:$0xff] %vm1692, %v2575
      %2640 = vst.msk [vmem:[#allocation2 + $0x1d8] sm:$0xff] %vm1692, %v2576
      %2641 = vst.msk [vmem:[#allocation2 + $0x1e0] sm:$0xff] %vm1692, %v2577
      %2642 = vst.msk [vmem:[#allocation2 + $0x1e8] sm:$0xff] %vm1692, %v2578
      %2643 = vst.msk [vmem:[#allocation2 + $0x1f0] sm:$0xff] %vm1692, %v2579
      %2644 = vst.msk [vmem:[#allocation2 + $0x1f8] sm:$0xff] %vm1692, %v2580
      %p2645 = scmp.eq.s32.totalorder %s22, 1
      // Predicated region
      $region41: #{tpu_custom_call.1} parent=35 // pred_check
        %p2646 = pneg %p2645
      $region42: #{tpu_custom_call.1} parent=35 // pred_check_branch
        %2648 = sbr.rel (%p2646) target = $region44
      $region43: #{tpu_custom_call.1} parent=35 // pred_region
        %v2649 = vld [vmem:[#allocation2] sm:$0xff]
        %v2650 = vld [vmem:[#allocation2 + $0x8] sm:$0xff]
        %v2651 = vld [vmem:[#allocation2 + $0x10] sm:$0xff]
        %v2652 = vld [vmem:[#allocation2 + $0x18] sm:$0xff]
        %v2653 = vld [vmem:[#allocation2 + $0x20] sm:$0xff]
        %v2654 = vld [vmem:[#allocation2 + $0x28] sm:$0xff]
        %v2655 = vld [vmem:[#allocation2 + $0x30] sm:$0xff]
        %v2656 = vld [vmem:[#allocation2 + $0x38] sm:$0xff]
        %v2657 = vld [vmem:[#allocation2 + $0x40] sm:$0xff]
        %v2658 = vld [vmem:[#allocation2 + $0x48] sm:$0xff]
        %v2659 = vld [vmem:[#allocation2 + $0x50] sm:$0xff]
        %v2660 = vld [vmem:[#allocation2 + $0x58] sm:$0xff]
        %v2661 = vld [vmem:[#allocation2 + $0x60] sm:$0xff]
        %v2662 = vld [vmem:[#allocation2 + $0x68] sm:$0xff]
        %v2663 = vld [vmem:[#allocation2 + $0x70] sm:$0xff]
        %v2664 = vld [vmem:[#allocation2 + $0x78] sm:$0xff]
        %v2665 = vld [vmem:[#allocation2 + $0x80] sm:$0xff]
        %v2666 = vld [vmem:[#allocation2 + $0x88] sm:$0xff]
        %v2667 = vld [vmem:[#allocation2 + $0x90] sm:$0xff]
        %v2668 = vld [vmem:[#allocation2 + $0x98] sm:$0xff]
        %v2669 = vld [vmem:[#allocation2 + $0xa0] sm:$0xff]
        %v2670 = vld [vmem:[#allocation2 + $0xa8] sm:$0xff]
        %v2671 = vld [vmem:[#allocation2 + $0xb0] sm:$0xff]
        %v2672 = vld [vmem:[#allocation2 + $0xb8] sm:$0xff]
        %v2673 = vld [vmem:[#allocation2 + $0xc0] sm:$0xff]
        %v2674 = vld [vmem:[#allocation2 + $0xc8] sm:$0xff]
        %v2675 = vld [vmem:[#allocation2 + $0xd0] sm:$0xff]
        %v2676 = vld [vmem:[#allocation2 + $0xd8] sm:$0xff]
        %v2677 = vld [vmem:[#allocation2 + $0xe0] sm:$0xff]
        %v2678 = vld [vmem:[#allocation2 + $0xe8] sm:$0xff]
        %v2679 = vld [vmem:[#allocation2 + $0xf0] sm:$0xff]
        %v2680 = vld [vmem:[#allocation2 + $0xf8] sm:$0xff]
        %v2681 = vld [vmem:[#allocation2 + $0x100] sm:$0xff]
        %v2682 = vld [vmem:[#allocation2 + $0x108] sm:$0xff]
        %v2683 = vld [vmem:[#allocation2 + $0x110] sm:$0xff]
        %v2684 = vld [vmem:[#allocation2 + $0x118] sm:$0xff]
        %v2685 = vld [vmem:[#allocation2 + $0x120] sm:$0xff]
        %v2686 = vld [vmem:[#allocation2 + $0x128] sm:$0xff]
        %v2687 = vld [vmem:[#allocation2 + $0x130] sm:$0xff]
        %v2688 = vld [vmem:[#allocation2 + $0x138] sm:$0xff]
        %v2689 = vld [vmem:[#allocation2 + $0x140] sm:$0xff]
        %v2690 = vld [vmem:[#allocation2 + $0x148] sm:$0xff]
        %v2691 = vld [vmem:[#allocation2 + $0x150] sm:$0xff]
        %v2692 = vld [vmem:[#allocation2 + $0x158] sm:$0xff]
        %v2693 = vld [vmem:[#allocation2 + $0x160] sm:$0xff]
        %v2694 = vld [vmem:[#allocation2 + $0x168] sm:$0xff]
        %v2695 = vld [vmem:[#allocation2 + $0x170] sm:$0xff]
        %v2696 = vld [vmem:[#allocation2 + $0x178] sm:$0xff]
        %v2697 = vld [vmem:[#allocation2 + $0x180] sm:$0xff]
        %v2698 = vld [vmem:[#allocation2 + $0x188] sm:$0xff]
        %v2699 = vld [vmem:[#allocation2 + $0x190] sm:$0xff]
        %v2700 = vld [vmem:[#allocation2 + $0x198] sm:$0xff]
        %v2701 = vld [vmem:[#allocation2 + $0x1a0] sm:$0xff]
        %v2702 = vld [vmem:[#allocation2 + $0x1a8] sm:$0xff]
        %v2703 = vld [vmem:[#allocation2 + $0x1b0] sm:$0xff]
        %v2704 = vld [vmem:[#allocation2 + $0x1b8] sm:$0xff]
        %v2705 = vld [vmem:[#allocation2 + $0x1c0] sm:$0xff]
        %v2706 = vld [vmem:[#allocation2 + $0x1c8] sm:$0xff]
        %v2707 = vld [vmem:[#allocation2 + $0x1d0] sm:$0xff]
        %v2708 = vld [vmem:[#allocation2 + $0x1d8] sm:$0xff]
        %v2709 = vld [vmem:[#allocation2 + $0x1e0] sm:$0xff]
        %v2710 = vld [vmem:[#allocation2 + $0x1e8] sm:$0xff]
        %v2711 = vld [vmem:[#allocation2 + $0x1f0] sm:$0xff]
        %v2712 = vld [vmem:[#allocation2 + $0x1f8] sm:$0xff]
        %v2713 = vld [vmem:[%s2] sm:$0x1]
        %v2715 = vperm.slane %v2713, 0
        %v2717 = vmul.f32 %v2649, %v2715
        %v2718 = vmul.f32 %v2650, %v2715
        %v2719 = vmul.f32 %v2651, %v2715
        %v2720 = vmul.f32 %v2652, %v2715
        %v2721 = vmul.f32 %v2653, %v2715
        %v2722 = vmul.f32 %v2654, %v2715
        %v2723 = vmul.f32 %v2655, %v2715
        %v2724 = vmul.f32 %v2656, %v2715
        %v2725 = vmul.f32 %v2657, %v2715
        %v2726 = vmul.f32 %v2658, %v2715
        %v2727 = vmul.f32 %v2659, %v2715
        %v2728 = vmul.f32 %v2660, %v2715
        %v2729 = vmul.f32 %v2661, %v2715
        %v2730 = vmul.f32 %v2662, %v2715
        %v2731 = vmul.f32 %v2663, %v2715
        %v2732 = vmul.f32 %v2664, %v2715
        %v2733 = vmul.f32 %v2665, %v2715
        %v2734 = vmul.f32 %v2666, %v2715
        %v2735 = vmul.f32 %v2667, %v2715
        %v2736 = vmul.f32 %v2668, %v2715
        %v2737 = vmul.f32 %v2669, %v2715
        %v2738 = vmul.f32 %v2670, %v2715
        %v2739 = vmul.f32 %v2671, %v2715
        %v2740 = vmul.f32 %v2672, %v2715
        %v2741 = vmul.f32 %v2673, %v2715
        %v2742 = vmul.f32 %v2674, %v2715
        %v2743 = vmul.f32 %v2675, %v2715
        %v2744 = vmul.f32 %v2676, %v2715
        %v2745 = vmul.f32 %v2677, %v2715
        %v2746 = vmul.f32 %v2678, %v2715
        %v2747 = vmul.f32 %v2679, %v2715
        %v2748 = vmul.f32 %v2680, %v2715
        %v2749 = vmul.f32 %v2681, %v2715
        %v2750 = vmul.f32 %v2682, %v2715
        %v2751 = vmul.f32 %v2683, %v2715
        %v2752 = vmul.f32 %v2684, %v2715
        %v2753 = vmul.f32 %v2685, %v2715
        %v2754 = vmul.f32 %v2686, %v2715
        %v2755 = vmul.f32 %v2687, %v2715
        %v2756 = vmul.f32 %v2688, %v2715
        %v2757 = vmul.f32 %v2689, %v2715
        %v2758 = vmul.f32 %v2690, %v2715
        %v2759 = vmul.f32 %v2691, %v2715
        %v2760 = vmul.f32 %v2692, %v2715
        %v2761 = vmul.f32 %v2693, %v2715
        %v2762 = vmul.f32 %v2694, %v2715
        %v2763 = vmul.f32 %v2695, %v2715
        %v2764 = vmul.f32 %v2696, %v2715
        %v2765 = vmul.f32 %v2697, %v2715
        %v2766 = vmul.f32 %v2698, %v2715
        %v2767 = vmul.f32 %v2699, %v2715
        %v2768 = vmul.f32 %v2700, %v2715
        %v2769 = vmul.f32 %v2701, %v2715
        %v2770 = vmul.f32 %v2702, %v2715
        %v2771 = vmul.f32 %v2703, %v2715
        %v2772 = vmul.f32 %v2704, %v2715
        %v2773 = vmul.f32 %v2705, %v2715
        %v2774 = vmul.f32 %v2706, %v2715
        %v2775 = vmul.f32 %v2707, %v2715
        %v2776 = vmul.f32 %v2708, %v2715
        %v2777 = vmul.f32 %v2709, %v2715
        %v2778 = vmul.f32 %v2710, %v2715
        %v2779 = vmul.f32 %v2711, %v2715
        %v2780 = vmul.f32 %v2712, %v2715
        %v2781 = vld [vmem:[%s3] sm:$0x1]
        %v2783 = vperm.slane %v2781, 0
        %v2785 = vadd.f32 %v2717, %v2783
        %v2786 = vadd.f32 %v2718, %v2783
        %v2787 = vadd.f32 %v2719, %v2783
        %v2788 = vadd.f32 %v2720, %v2783
        %v2789 = vadd.f32 %v2721, %v2783
        %v2790 = vadd.f32 %v2722, %v2783
        %v2791 = vadd.f32 %v2723, %v2783
        %v2792 = vadd.f32 %v2724, %v2783
        %v2793 = vadd.f32 %v2725, %v2783
        %v2794 = vadd.f32 %v2726, %v2783
        %v2795 = vadd.f32 %v2727, %v2783
        %v2796 = vadd.f32 %v2728, %v2783
        %v2797 = vadd.f32 %v2729, %v2783
        %v2798 = vadd.f32 %v2730, %v2783
        %v2799 = vadd.f32 %v2731, %v2783
        %v2800 = vadd.f32 %v2732, %v2783
        %v2801 = vadd.f32 %v2733, %v2783
        %v2802 = vadd.f32 %v2734, %v2783
        %v2803 = vadd.f32 %v2735, %v2783
        %v2804 = vadd.f32 %v2736, %v2783
        %v2805 = vadd.f32 %v2737, %v2783
        %v2806 = vadd.f32 %v2738, %v2783
        %v2807 = vadd.f32 %v2739, %v2783
        %v2808 = vadd.f32 %v2740, %v2783
        %v2809 = vadd.f32 %v2741, %v2783
        %v2810 = vadd.f32 %v2742, %v2783
        %v2811 = vadd.f32 %v2743, %v2783
        %v2812 = vadd.f32 %v2744, %v2783
        %v2813 = vadd.f32 %v2745, %v2783
        %v2814 = vadd.f32 %v2746, %v2783
        %v2815 = vadd.f32 %v2747, %v2783
        %v2816 = vadd.f32 %v2748, %v2783
        %v2817 = vadd.f32 %v2749, %v2783
        %v2818 = vadd.f32 %v2750, %v2783
        %v2819 = vadd.f32 %v2751, %v2783
        %v2820 = vadd.f32 %v2752, %v2783
        %v2821 = vadd.f32 %v2753, %v2783
        %v2822 = vadd.f32 %v2754, %v2783
        %v2823 = vadd.f32 %v2755, %v2783
        %v2824 = vadd.f32 %v2756, %v2783
        %v2825 = vadd.f32 %v2757, %v2783
        %v2826 = vadd.f32 %v2758, %v2783
        %v2827 = vadd.f32 %v2759, %v2783
        %v2828 = vadd.f32 %v2760, %v2783
        %v2829 = vadd.f32 %v2761, %v2783
        %v2830 = vadd.f32 %v2762, %v2783
        %v2831 = vadd.f32 %v2763, %v2783
        %v2832 = vadd.f32 %v2764, %v2783
        %v2833 = vadd.f32 %v2765, %v2783
        %v2834 = vadd.f32 %v2766, %v2783
        %v2835 = vadd.f32 %v2767, %v2783
        %v2836 = vadd.f32 %v2768, %v2783
        %v2837 = vadd.f32 %v2769, %v2783
        %v2838 = vadd.f32 %v2770, %v2783
        %v2839 = vadd.f32 %v2771, %v2783
        %v2840 = vadd.f32 %v2772, %v2783
        %v2841 = vadd.f32 %v2773, %v2783
        %v2842 = vadd.f32 %v2774, %v2783
        %v2843 = vadd.f32 %v2775, %v2783
        %v2844 = vadd.f32 %v2776, %v2783
        %v2845 = vadd.f32 %v2777, %v2783
        %v2846 = vadd.f32 %v2778, %v2783
        %v2847 = vadd.f32 %v2779, %v2783
        %v2848 = vadd.f32 %v2780, %v2783
        %v2849 = vpack.c.bf16 %v2785, %v2785
        %v2850 = vpack.c.bf16 %v2786, %v2786
        %v2851 = vpack.c.bf16 %v2787, %v2787
        %v2852 = vpack.c.bf16 %v2788, %v2788
        %v2853 = vpack.c.bf16 %v2789, %v2789
        %v2854 = vpack.c.bf16 %v2790, %v2790
        %v2855 = vpack.c.bf16 %v2791, %v2791
        %v2856 = vpack.c.bf16 %v2792, %v2792
        %v2857 = vpack.c.bf16 %v2793, %v2793
        %v2858 = vpack.c.bf16 %v2794, %v2794
        %v2859 = vpack.c.bf16 %v2795, %v2795
        %v2860 = vpack.c.bf16 %v2796, %v2796
        %v2861 = vpack.c.bf16 %v2797, %v2797
        %v2862 = vpack.c.bf16 %v2798, %v2798
        %v2863 = vpack.c.bf16 %v2799, %v2799
        %v2864 = vpack.c.bf16 %v2800, %v2800
        %v2865 = vpack.c.bf16 %v2801, %v2801
        %v2866 = vpack.c.bf16 %v2802, %v2802
        %v2867 = vpack.c.bf16 %v2803, %v2803
        %v2868 = vpack.c.bf16 %v2804, %v2804
        %v2869 = vpack.c.bf16 %v2805, %v2805
        %v2870 = vpack.c.bf16 %v2806, %v2806
        %v2871 = vpack.c.bf16 %v2807, %v2807
        %v2872 = vpack.c.bf16 %v2808, %v2808
        %v2873 = vpack.c.bf16 %v2809, %v2809
        %v2874 = vpack.c.bf16 %v2810, %v2810
        %v2875 = vpack.c.bf16 %v2811, %v2811
        %v2876 = vpack.c.bf16 %v2812, %v2812
        %v2877 = vpack.c.bf16 %v2813, %v2813
        %v2878 = vpack.c.bf16 %v2814, %v2814
        %v2879 = vpack.c.bf16 %v2815, %v2815
        %v2880 = vpack.c.bf16 %v2816, %v2816
        %v2881 = vpack.c.bf16 %v2817, %v2817
        %v2882 = vpack.c.bf16 %v2818, %v2818
        %v2883 = vpack.c.bf16 %v2819, %v2819
        %v2884 = vpack.c.bf16 %v2820, %v2820
        %v2885 = vpack.c.bf16 %v2821, %v2821
        %v2886 = vpack.c.bf16 %v2822, %v2822
        %v2887 = vpack.c.bf16 %v2823, %v2823
        %v2888 = vpack.c.bf16 %v2824, %v2824
        %v2889 = vpack.c.bf16 %v2825, %v2825
        %v2890 = vpack.c.bf16 %v2826, %v2826
        %v2891 = vpack.c.bf16 %v2827, %v2827
        %v2892 = vpack.c.bf16 %v2828, %v2828
        %v2893 = vpack.c.bf16 %v2829, %v2829
        %v2894 = vpack.c.bf16 %v2830, %v2830
        %v2895 = vpack.c.bf16 %v2831, %v2831
        %v2896 = vpack.c.bf16 %v2832, %v2832
        %v2897 = vpack.c.bf16 %v2833, %v2833
        %v2898 = vpack.c.bf16 %v2834, %v2834
        %v2899 = vpack.c.bf16 %v2835, %v2835
        %v2900 = vpack.c.bf16 %v2836, %v2836
        %v2901 = vpack.c.bf16 %v2837, %v2837
        %v2902 = vpack.c.bf16 %v2838, %v2838
        %v2903 = vpack.c.bf16 %v2839, %v2839
        %v2904 = vpack.c.bf16 %v2840, %v2840
        %v2905 = vpack.c.bf16 %v2841, %v2841
        %v2906 = vpack.c.bf16 %v2842, %v2842
        %v2907 = vpack.c.bf16 %v2843, %v2843
        %v2908 = vpack.c.bf16 %v2844, %v2844
        %v2909 = vpack.c.bf16 %v2845, %v2845
        %v2910 = vpack.c.bf16 %v2846, %v2846
        %v2911 = vpack.c.bf16 %v2847, %v2847
        %v2912 = vpack.c.bf16 %v2848, %v2848
        %vm2913 = vcmask 191488
        %2914 = vst.msk [vmem:[%s276] sm:$0xf] %vm2913, %v2849
        %2915 = vst.msk [vmem:[%s276 + $0x4] sm:$0xf] %vm2913, %v2850
        %2916 = vst.msk [vmem:[%s276 + $0x8] sm:$0xf] %vm2913, %v2851
        %2917 = vst.msk [vmem:[%s276 + $0xc] sm:$0xf] %vm2913, %v2852
        %2918 = vst.msk [vmem:[%s276 + $0x10] sm:$0xf] %vm2913, %v2853
        %2919 = vst.msk [vmem:[%s276 + $0x14] sm:$0xf] %vm2913, %v2854
        %2920 = vst.msk [vmem:[%s276 + $0x18] sm:$0xf] %vm2913, %v2855
        %2921 = vst.msk [vmem:[%s276 + $0x1c] sm:$0xf] %vm2913, %v2856
        %2922 = vst.msk [vmem:[%s276 + $0x20] sm:$0xf] %vm2913, %v2857
        %2923 = vst.msk [vmem:[%s276 + $0x24] sm:$0xf] %vm2913, %v2858
        %2924 = vst.msk [vmem:[%s276 + $0x28] sm:$0xf] %vm2913, %v2859
        %2925 = vst.msk [vmem:[%s276 + $0x2c] sm:$0xf] %vm2913, %v2860
        %2926 = vst.msk [vmem:[%s276 + $0x30] sm:$0xf] %vm2913, %v2861
        %2927 = vst.msk [vmem:[%s276 + $0x34] sm:$0xf] %vm2913, %v2862
        %2928 = vst.msk [vmem:[%s276 + $0x38] sm:$0xf] %vm2913, %v2863
        %2929 = vst.msk [vmem:[%s276 + $0x3c] sm:$0xf] %vm2913, %v2864
        %2930 = vst.msk [vmem:[%s276 + $0x40] sm:$0xf] %vm2913, %v2865
        %2931 = vst.msk [vmem:[%s276 + $0x44] sm:$0xf] %vm2913, %v2866
        %2932 = vst.msk [vmem:[%s276 + $0x48] sm:$0xf] %vm2913, %v2867
        %2933 = vst.msk [vmem:[%s276 + $0x4c] sm:$0xf] %vm2913, %v2868
        %2934 = vst.msk [vmem:[%s276 + $0x50] sm:$0xf] %vm2913, %v2869
        %2935 = vst.msk [vmem:[%s276 + $0x54] sm:$0xf] %vm2913, %v2870
        %2936 = vst.msk [vmem:[%s276 + $0x58] sm:$0xf] %vm2913, %v2871
        %2937 = vst.msk [vmem:[%s276 + $0x5c] sm:$0xf] %vm2913, %v2872
        %2938 = vst.msk [vmem:[%s276 + $0x60] sm:$0xf] %vm2913, %v2873
        %2939 = vst.msk [vmem:[%s276 + $0x64] sm:$0xf] %vm2913, %v2874
        %2940 = vst.msk [vmem:[%s276 + $0x68] sm:$0xf] %vm2913, %v2875
        %2941 = vst.msk [vmem:[%s276 + $0x6c] sm:$0xf] %vm2913, %v2876
        %2942 = vst.msk [vmem:[%s276 + $0x70] sm:$0xf] %vm2913, %v2877
        %2943 = vst.msk [vmem:[%s276 + $0x74] sm:$0xf] %vm2913, %v2878
        %2944 = vst.msk [vmem:[%s276 + $0x78] sm:$0xf] %vm2913, %v2879
        %2945 = vst.msk [vmem:[%s276 + $0x7c] sm:$0xf] %vm2913, %v2880
        %2946 = vst.msk [vmem:[%s276 + $0x80] sm:$0xf] %vm2913, %v2881
        %2947 = vst.msk [vmem:[%s276 + $0x84] sm:$0xf] %vm2913, %v2882
        %2948 = vst.msk [vmem:[%s276 + $0x88] sm:$0xf] %vm2913, %v2883
        %2949 = vst.msk [vmem:[%s276 + $0x8c] sm:$0xf] %vm2913, %v2884
        %2950 = vst.msk [vmem:[%s276 + $0x90] sm:$0xf] %vm2913, %v2885
        %2951 = vst.msk [vmem:[%s276 + $0x94] sm:$0xf] %vm2913, %v2886
        %2952 = vst.msk [vmem:[%s276 + $0x98] sm:$0xf] %vm2913, %v2887
        %2953 = vst.msk [vmem:[%s276 + $0x9c] sm:$0xf] %vm2913, %v2888
        %2954 = vst.msk [vmem:[%s276 + $0xa0] sm:$0xf] %vm2913, %v2889
        %2955 = vst.msk [vmem:[%s276 + $0xa4] sm:$0xf] %vm2913, %v2890
        %2956 = vst.msk [vmem:[%s276 + $0xa8] sm:$0xf] %vm2913, %v2891
        %2957 = vst.msk [vmem:[%s276 + $0xac] sm:$0xf] %vm2913, %v2892
        %2958 = vst.msk [vmem:[%s276 + $0xb0] sm:$0xf] %vm2913, %v2893
        %2959 = vst.msk [vmem:[%s276 + $0xb4] sm:$0xf] %vm2913, %v2894
        %2960 = vst.msk [vmem:[%s276 + $0xb8] sm:$0xf] %vm2913, %v2895
        %2961 = vst.msk [vmem:[%s276 + $0xbc] sm:$0xf] %vm2913, %v2896
        %2962 = vst.msk [vmem:[%s276 + $0xc0] sm:$0xf] %vm2913, %v2897
        %2963 = vst.msk [vmem:[%s276 + $0xc4] sm:$0xf] %vm2913, %v2898
        %2964 = vst.msk [vmem:[%s276 + $0xc8] sm:$0xf] %vm2913, %v2899
        %2965 = vst.msk [vmem:[%s276 + $0xcc] sm:$0xf] %vm2913, %v2900
        %2966 = vst.msk [vmem:[%s276 + $0xd0] sm:$0xf] %vm2913, %v2901
        %2967 = vst.msk [vmem:[%s276 + $0xd4] sm:$0xf] %vm2913, %v2902
        %2968 = vst.msk [vmem:[%s276 + $0xd8] sm:$0xf] %vm2913, %v2903
        %2969 = vst.msk [vmem:[%s276 + $0xdc] sm:$0xf] %vm2913, %v2904
        %2970 = vst.msk [vmem:[%s276 + $0xe0] sm:$0xf] %vm2913, %v2905
        %2971 = vst.msk [vmem:[%s276 + $0xe4] sm:$0xf] %vm2913, %v2906
        %2972 = vst.msk [vmem:[%s276 + $0xe8] sm:$0xf] %vm2913, %v2907
        %2973 = vst.msk [vmem:[%s276 + $0xec] sm:$0xf] %vm2913, %v2908
        %2974 = vst.msk [vmem:[%s276 + $0xf0] sm:$0xf] %vm2913, %v2909
        %2975 = vst.msk [vmem:[%s276 + $0xf4] sm:$0xf] %vm2913, %v2910
        %2976 = vst.msk [vmem:[%s276 + $0xf8] sm:$0xf] %vm2913, %v2911
        %2977 = vst.msk [vmem:[%s276 + $0xfc] sm:$0xf] %vm2913, %v2912
      $region44: #{tpu_custom_call.1} parent=35 // pred_fallthru
        _
      %s2978 = smul.u32 16, %s21
      %p2979 = scmp.lt.s32.totalorder %s20, 0
      %s2980 = scalar_select %p2979, %s20, 0
      %p2981 = scmp.lt.s32.totalorder %s2978, 31
      %s2982 = scalar_select %p2981, %s2978, 31
      %s2983 = smul.addr %s2982, 4
      %s2984 = smul.addr %s2980, 128
      %s2985 = sadd.s32 %s2983, %s2984
      %s2986 = smul.addr %s2985, 4
      %s2987 = scalar_lea.vmem %s4, %s2986
      // Predicated region
      $region45: #{tpu_custom_call.1} parent=35 // pred_check
        %p2988 = pneg %p152
      $region46: #{tpu_custom_call.1} parent=35 // pred_check_branch
        %2990 = sbr.rel (%p2988) target = $region48
      $region47: #{tpu_custom_call.1} parent=35 // pred_region
        %s2991 = smul.u32 16, %s21
      $region48: #{tpu_custom_call.1} parent=35 // pred_fallthru
        _
    $region36: #{tpu_custom_call.1} parent=5 // pred_fallthru
      _
    %p2992 = scmp.le.s32.totalorder 2, %s10
    // Predicated region
    $region49: #{tpu_custom_call.1} parent=5 // pred_check
      %p2993 = pneg %p2992
    $region50: #{tpu_custom_call.1} parent=5 // pred_check_branch
      %2995 = sbr.rel (%p2993) target = $region52
    $region51: #{tpu_custom_call.1} parent=5 // pred_region
      %s2996 = ssub.s32 %s10, 2
      // Predicated region
      $region53: #{tpu_custom_call.1} parent=51 // pred_check
        %p2997 = pneg %p158
      $region54: #{tpu_custom_call.1} parent=51 // pred_check_branch
        %2999 = sbr.rel (%p2997) target = $region56
      $region55: #{tpu_custom_call.1} parent=51 // pred_region
        %s3000 = smul.u32 16, %s24
        %p3001 = scmp.lt.s32.totalorder %s23, 0
        %s3002 = scalar_select %p3001, %s23, 0
        %p3003 = scmp.lt.s32.totalorder %s3000, 31
        %s3004 = scalar_select %p3003, %s3000, 31
        %s3005 = smul.addr %s3004, 4
        %s3006 = smul.addr %s3002, 128
        %s3007 = sadd.s32 %s3005, %s3006
        %s3008 = smul.addr %s3007, 4
        %s3009 = scalar_lea.vmem %s4, %s3008
      $region56: #{tpu_custom_call.1} parent=51 // pred_fallthru
        _
    $region52: #{tpu_custom_call.1} parent=5 // pred_fallthru
      _
  $region6: #{tpu_custom_call.1} parent=0 // loop_footer
    %s14 = sadd.s32 1, %s10
  $region7: #{tpu_custom_call.1} parent=0 // loop_footer_branch
    %9 = sbr.rel target = $region3
  $region8: #{tpu_custom_call.1} parent=0 // loop_exit
    _

</llo_original>
